<compile_context>
chip_gen: v7x
topology: tpu7x:2x2x1
jax: 0.10.0
libtpu: 0.0.40
codegen_flags: <defaults>
</compile_context>

<pallas_src>
import functools

import jax
import jax.numpy as jnp
from jax import lax
from jax.experimental import pallas as pl
from jax.experimental.pallas import tpu as pltpu


def ca_kernel(x_ref, m_hw_ref, r_hw_ref, w1_ref, bn_ref, whw_ref, bhw_ref,
              o_ref, *, H, W):
    Nb, C, HW = x_ref.shape
    mid = w1_ref.shape[0]
    K = H + W

    # Load small constants once.
    m_hw = m_hw_ref[...]        # (HW, H+W)  fused mean-over-W | mean-over-H selector
    r_hw = r_hw_ref[...]        # (H+W, HW)  fused 0/1 broadcast selector
    w1b = w1_ref[...]           # (mid, C)   bf16
    bn = bn_ref[...]            # (2, mid, 1) [scale, bias+shift]
    whw = whw_ref[...]          # (2, C, mid) bf16 [wh, ww]
    bhw = bhw_ref[...]          # (2, C, 1)   [bh, bw]

    # Lane-dense flat view of the whole block (leading-dim merge is layout-free).
    x2 = x_ref[...].reshape(Nb * C, HW)                               # (Nb*C, HW)

    # ---- adaptive avg pools: ONE exact-f32 selector matmul over the whole block ----
    pooled = jnp.dot(x2, m_hw, preferred_element_type=jnp.float32,
                     precision=lax.Precision.HIGHEST)                 # (Nb*C, H+W)
    pooled3 = pooled.reshape(Nb, C, K).astype(jnp.bfloat16)           # (Nb, C, H+W)

    # ---- conv1 (1x1) + folded eval-BN(+bias) + ReLU, batched over the Nb images ----
    w1_bc = jnp.broadcast_to(w1b[None], (Nb, mid, C))
    y = jnp.einsum('nmc,nck->nmk', w1_bc, pooled3,
                   preferred_element_type=jnp.float32)                # (Nb, mid, H+W)
    y = jnp.maximum(y * bn[0][None] + bn[1][None], 0.0)               # f32 elementwise

    y_h = y[:, :, :H].astype(jnp.bfloat16)                            # (Nb, mid, H)
    y_w = y[:, :, H:].astype(jnp.bfloat16)                            # (Nb, mid, W)

    # ---- conv_h / conv_w (1x1) + sigmoid, batched; outputs stay in (Nb, C, .) ----
    wh_bc = jnp.broadcast_to(whw[0][None], (Nb, C, mid))
    ww_bc = jnp.broadcast_to(whw[1][None], (Nb, C, mid))
    a_h = jax.nn.sigmoid(
        jnp.einsum('ncm,nmk->nck', wh_bc, y_h,
                   preferred_element_type=jnp.float32) + bhw[0][None])   # (Nb, C, H)
    a_w = jax.nn.sigmoid(
        jnp.einsum('ncm,nmk->nck', ww_bc, y_w,
                   preferred_element_type=jnp.float32) + bhw[1][None])   # (Nb, C, W)

    # ---- gating: expand a_h / a_w over the H*W lanes via exact 0/1 selector matmuls ----
    gate = jnp.dot(a_h.reshape(Nb * C, H), r_hw[:H],
                   preferred_element_type=jnp.float32,
                   precision=lax.Precision.HIGHEST)                   # (Nb*C, HW)
    gate = gate * jnp.dot(a_w.reshape(Nb * C, W), r_hw[H:],
                          preferred_element_type=jnp.float32,
                          precision=lax.Precision.HIGHEST)

    # Single unmasked, lane-dense full-block store.
    o_ref[...] = (x2 * gate).reshape(Nb, C, HW).astype(o_ref.dtype)


def _vmem_budgets():
    """(target_block_bytes, per_step_vmem_budget, vmem_limit_cap) per TPU generation."""
    kind = ""
    try:
        kind = jax.devices()[0].device_kind.lower()
    except Exception:
        pass
    if "v5" in kind or "v6" in kind:
        # 128 MiB physical VMEM: larger blocks, fewer grid steps.
        return 8 << 20, 88 << 20, 96 << 20
    # Conservative defaults, safe on v7x (64 MiB physical VMEM, 2 TensorCores).
    return 4 << 20, 40 << 20, 48 << 20


def _choose_batch_block(N, C, HW, itemsize, target_block_bytes, budget_bytes,
                        min_grid_steps=4):
    """Images per grid step.

    Big enough to amortize the ~0.35us/step overhead (byte-based target), small
    enough that in/out double buffers + the block-sized gate intermediates
    (~7x the input block) fit the per-generation VMEM budget, and leaving
    >= min_grid_steps grid steps (2 TCs x >=2 for intra-core pipelining) when
    the batch allows it.  No artificial nb cap.
    """
    per_image = C * HW * itemsize
    nb = max(1, min(target_block_bytes // per_image,
                    budget_bytes // (7 * per_image)))
    if N >= min_grid_steps:
        nb = min(nb, max(1, N // min_grid_steps))
    return int(max(1, min(nb, N)))


def coordinate_attention(x, w1, b1, bn_gamma, bn_beta, bn_mean, bn_var,
                         wh, bh, ww, bw, eps=1e-5):
    """x: [N, C, H, W] float32 (NCHW, matching PyTorch).  Eval-mode BatchNorm."""
    N, C, H, W = x.shape
    HW = H * W
    mid = w1.shape[0]

    # Fold eval-mode BN and the conv1 bias into a per-channel scale/shift.
    bn_scale = bn_gamma / jnp.sqrt(bn_var + eps)                        # [mid]
    shift = b1 * bn_scale + (bn_beta - bn_mean * bn_scale)              # [mid]
    bn_params = jnp.stack([bn_scale, shift]).reshape(2, mid, 1).astype(jnp.float32)

    # bf16 MXU operands for the three 1x1 convs (f32 accumulation in-kernel).
    w1_b = w1.astype(jnp.bfloat16)                                      # (mid, C)
    w_hw = jnp.stack([wh, ww]).astype(jnp.bfloat16)                     # (2, C, mid)
    b_hw = jnp.stack([bh, bw]).reshape(2, C, 1).astype(jnp.float32)     # (2, C, 1)

    # Fused pool / broadcast selection matrices (exact in f32).
    k_idx = jnp.arange(HW)
    h_of_k = k_idx // W
    w_of_k = k_idx % W
    m_h = (h_of_k[:, None] == jnp.arange(H)[None, :]).astype(jnp.float32) / W  # (HW, H)
    m_w = (w_of_k[:, None] == jnp.arange(W)[None, :]).astype(jnp.float32) / H  # (HW, W)
    m_hw = jnp.concatenate([m_h, m_w], axis=1)                          # (HW, H+W)
    r_h = (jnp.arange(H)[:, None] == h_of_k[None, :]).astype(jnp.float32)      # (H, HW)
    r_w = (jnp.arange(W)[:, None] == w_of_k[None, :]).astype(jnp.float32)      # (W, HW)
    r_hw = jnp.concatenate([r_h, r_w], axis=0)                          # (H+W, HW)

    # Lane-dense flat view of x (free reshape of contiguous NCHW).
    x_flat = x.reshape(N, C, HW)

    target_blk, budget, vmem_cap = _vmem_budgets()
    nb = _choose_batch_block(N, C, HW, x.dtype.itemsize, target_blk, budget)

    # Pad the batch so the grid tiles it exactly (padded images are sliced off).
    n_pad = int(pl.cdiv(N, nb)) * nb
    if n_pad != N:
        x_flat = jnp.concatenate(
            [x_flat, jnp.zeros((n_pad - N, C, HW), x_flat.dtype)], axis=0)
    grid = (n_pad // nb,)

    block_bytes = nb * C * HW * x.dtype.itemsize
    vmem_limit = int(min(vmem_cap, max(32 << 20, 7 * block_bytes + (4 << 20))))

    kernel = functools.partial(ca_kernel, H=H, W=W)

    out_flat = pl.pallas_call(
        kernel,
        out_shape=jax.ShapeDtypeStruct((n_pad, C, HW), x.dtype),
        grid_spec=pltpu.PrefetchScalarGridSpec(
            num_scalar_prefetch=0,
            grid=grid,
            in_specs=[
                pl.BlockSpec((nb, C, HW), lambda n: (n, 0, 0)),   # x (lane-dense)
                pl.BlockSpec((HW, H + W), lambda n: (0, 0)),      # fused pool selector
                pl.BlockSpec((H + W, HW), lambda n: (0, 0)),      # fused broadcast selector
                pl.BlockSpec((mid, C), lambda n: (0, 0)),         # conv1 weight (bf16)
                pl.BlockSpec((2, mid, 1), lambda n: (0, 0, 0)),   # BN scale / (bias+shift)
                pl.BlockSpec((2, C, mid), lambda n: (0, 0, 0)),   # conv_h|conv_w weights (bf16)
                pl.BlockSpec((2, C, 1), lambda n: (0, 0, 0)),     # conv_h|conv_w biases
            ],
            out_specs=pl.BlockSpec((nb, C, HW), lambda n: (n, 0, 0)),
        ),
        compiler_params=pltpu.CompilerParams(
            dimension_semantics=("parallel",),
            vmem_limit_bytes=vmem_limit),
    )(x_flat, m_hw, r_hw, w1_b, bn_params, w_hw, b_hw)

    return out_flat[:N].reshape(N, C, H, W)


def reference(x, w1, b1, bn_gamma, bn_beta, bn_mean, bn_var, wh, bh, ww, bw, eps=1e-5):
    """Pure-JAX reference mirroring the PyTorch forward (eval-mode BN, all f32)."""
    N, C, H, W = x.shape
    pooled_h = x.mean(axis=3)                                      # [N, C, H]
    pooled_w = x.mean(axis=2)                                      # [N, C, W]
    y = jnp.concatenate([pooled_h, pooled_w], axis=2)              # [N, C, H+W]
    y = jnp.einsum('mc,nck->nmk', w1, y) + b1.reshape(1, -1, 1)    # conv1
    scale = (bn_gamma / jnp.sqrt(bn_var + eps)).reshape(1, -1, 1)
    shift = (bn_beta - bn_mean * bn_gamma / jnp.sqrt(bn_var + eps)).reshape(1, -1, 1)
    y = jnp.maximum(y * scale + shift, 0.0)                        # bn1 + relu
    y_h, y_w = y[:, :, :H], y[:, :, H:]
    a_h = jax.nn.sigmoid(jnp.einsum('cm,nmk->nck', wh, y_h) + bh.reshape(1, -1, 1))
    a_w = jax.nn.sigmoid(jnp.einsum('cm,nmk->nck', ww, y_w) + bw.reshape(1, -1, 1))
    return x * a_h[:, :, :, None] * a_w[:, :, None, :]


if __name__ == "__main__":
    # Small deterministic example: N=2, C=32, H=W=16, reduction=32 -> mid=8.
    N, C, H, W = 2, 32, 16, 16
    reduction = 32
    mid = max(8, C // reduction)

    key = jax.random.PRNGKey(0)
    ks = jax.random.split(key, 9)

    x = jax.random.normal(ks[0], (N, C, H, W), dtype=jnp.float32)

    # conv1: Conv2d(C, mid, 1) -> weight [mid, C], bias [mid]
    w1 = jax.random.normal(ks[1], (mid, C), dtype=jnp.float32) * 0.2
    b1 = jax.random.normal(ks[2], (mid,), dtype=jnp.float32) * 0.1
    # bn1: BatchNorm2d(mid) eval-mode parameters / running stats
    bn_gamma = 1.0 + 0.1 * jax.random.normal(ks[3], (mid,), dtype=jnp.float32)
    bn_beta = 0.1 * jax.random.normal(ks[4], (mid,), dtype=jnp.float32)
    bn_mean = 0.05 * jax.random.normal(ks[5], (mid,), dtype=jnp.float32)
    bn_var = jnp.abs(1.0 + 0.1 * jax.random.normal(ks[6], (mid,), dtype=jnp.float32))
    # conv_h / conv_w: Conv2d(mid, C, 1) -> weight [C, mid], bias [C]
    wh = jax.random.normal(ks[7], (C, mid), dtype=jnp.float32) * 0.2
    bh = jnp.zeros((C,), dtype=jnp.float32)
    ww = jax.random.normal(ks[8], (C, mid), dtype=jnp.float32) * 0.2
    bw = jnp.zeros((C,), dtype=jnp.float32)

    out = coordinate_attention(x, w1, b1, bn_gamma, bn_beta, bn_mean, bn_var,
                               wh, bh, ww, bw)
    out = jax.block_until_ready(out)

    ref = reference(x, w1, b1, bn_gamma, bn_beta, bn_mean, bn_var, wh, bh, ww, bw)
    assert out.shape == (N, C, H, W)
    # Selector matmuls are exact (precision=HIGHEST); the only approximation is the
    # bf16 MXU operands of the three 1x1 convs (f32 accumulation), well within 2e-2.
    assert jnp.allclose(out, ref, atol=2e-2, rtol=2e-2), "mismatch vs JAX reference"

    print("KERNEL_OK")
</pallas_src>

<mosaic_0001>
module attributes {stable_mosaic.version = 11 : i64} {
  func.func @ca_kernel(%arg0: i32, %arg1: memref<2x32x256xf32, #tpu.memory_space<vmem>>, %arg2: memref<256x32xf32, #tpu.memory_space<vmem>>, %arg3: memref<32x256xf32, #tpu.memory_space<vmem>>, %arg4: memref<8x32xbf16, #tpu.memory_space<vmem>>, %arg5: memref<2x8x1xf32, #tpu.memory_space<vmem>>, %arg6: memref<2x32x8xbf16, #tpu.memory_space<vmem>>, %arg7: memref<2x32x1xf32, #tpu.memory_space<vmem>>, %arg8: memref<2x32x256xf32, #tpu.memory_space<vmem>>) attributes {dimension_semantics = [#tpu.dimension_semantics<parallel>], iteration_bounds = array<i64: 1>, scalar_prefetch = 0 : i64, scratch_operands = 0 : i64, tpu.core_type = #tpu.core_type<tc>, window_params = [{transform_indices = @transform_0, window_bounds = array<i64: 2, 32, 256>}, {pipeline_mode = #tpu.pipeline_mode<synchronous>, transform_indices = @transform_1, window_bounds = array<i64: 256, 32>}, {pipeline_mode = #tpu.pipeline_mode<synchronous>, transform_indices = @transform_2, window_bounds = array<i64: 32, 256>}, {pipeline_mode = #tpu.pipeline_mode<synchronous>, transform_indices = @transform_3, window_bounds = array<i64: 8, 32>}, {pipeline_mode = #tpu.pipeline_mode<synchronous>, transform_indices = @transform_4, window_bounds = array<i64: 2, 8, 1>}, {pipeline_mode = #tpu.pipeline_mode<synchronous>, transform_indices = @transform_5, window_bounds = array<i64: 2, 32, 8>}, {pipeline_mode = #tpu.pipeline_mode<synchronous>, transform_indices = @transform_6, window_bounds = array<i64: 2, 32, 1>}, {transform_indices = @transform_7, window_bounds = array<i64: 2, 32, 256>}]} {
    %c0 = arith.constant 0 : index
    %c0_0 = arith.constant 0 : index
    %0 = vector.load %arg2[%c0, %c0_0] : memref<256x32xf32, #tpu.memory_space<vmem>>, vector<256x32xf32>
    %c0_1 = arith.constant 0 : index
    %c0_2 = arith.constant 0 : index
    %1 = vector.load %arg3[%c0_1, %c0_2] : memref<32x256xf32, #tpu.memory_space<vmem>>, vector<32x256xf32>
    %c0_3 = arith.constant 0 : index
    %c0_4 = arith.constant 0 : index
    %2 = vector.load %arg4[%c0_3, %c0_4] : memref<8x32xbf16, #tpu.memory_space<vmem>>, vector<8x32xbf16>
    %c0_5 = arith.constant 0 : index
    %c0_6 = arith.constant 0 : index
    %c0_7 = arith.constant 0 : index
    %3 = vector.load %arg5[%c0_5, %c0_6, %c0_7] : memref<2x8x1xf32, #tpu.memory_space<vmem>>, vector<2x8x1xf32>
    %c0_8 = arith.constant 0 : index
    %c0_9 = arith.constant 0 : index
    %c0_10 = arith.constant 0 : index
    %4 = vector.load %arg6[%c0_8, %c0_9, %c0_10] : memref<2x32x8xbf16, #tpu.memory_space<vmem>>, vector<2x32x8xbf16>
    %c0_11 = arith.constant 0 : index
    %c0_12 = arith.constant 0 : index
    %c0_13 = arith.constant 0 : index
    %5 = vector.load %arg7[%c0_11, %c0_12, %c0_13] : memref<2x32x1xf32, #tpu.memory_space<vmem>>, vector<2x32x1xf32>
    %c0_14 = arith.constant 0 : index
    %c0_15 = arith.constant 0 : index
    %c0_16 = arith.constant 0 : index
    %6 = vector.load %arg1[%c0_14, %c0_15, %c0_16] : memref<2x32x256xf32, #tpu.memory_space<vmem>>, vector<2x32x256xf32>
    %7 = vector.shape_cast %6 : vector<2x32x256xf32> to vector<64x256xf32>
    %cst = arith.constant dense<0.000000e+00> : vector<64x32xf32>
    %8 = tpu.matmul %7, %0, %cst {dimension_numbers = #tpu.dot_dimension_numbers<[1], [0], [0], [1], [0, 0, 1, 1], [], []>, precision = #tpu.contract_precision<fp32>} : vector<64x256xf32>, vector<256x32xf32>, vector<64x32xf32> -> vector<64x32xf32>
    %9 = vector.shape_cast %8 : vector<64x32xf32> to vector<2x32x32xf32>
    %10 = arith.truncf %9 : vector<2x32x32xf32> to vector<2x32x32xbf16>
    %11 = vector.shape_cast %2 : vector<8x32xbf16> to vector<1x8x32xbf16>
    %12 = vector.shape_cast %11 : vector<1x8x32xbf16> to vector<1x8x32xbf16>
    %13 = vector.broadcast %12 : vector<1x8x32xbf16> to vector<2x8x32xbf16>
    "tpu.trace_start"() <{level = 10 : i32, message = "nmc,nck->nmk"}> : () -> ()
    %cst_17 = arith.constant dense<0.000000e+00> : vector<2x8x32xf32>
    %14 = tpu.matmul %13, %10, %cst_17 {dimension_numbers = #tpu.dot_dimension_numbers<[2], [1], [1], [2], [0, 0, 0, 1, 1, 2], [0], [0]>} : vector<2x8x32xbf16>, vector<2x32x32xbf16>, vector<2x8x32xf32> -> vector<2x8x32xf32>
    "tpu.trace_stop"() : () -> ()
    %15 = vector.extract_strided_slice %3 {offsets = [0, 0, 0], sizes = [1, 8, 1], strides = [1, 1, 1]} : vector<2x8x1xf32> to vector<1x8x1xf32>
    %16 = vector.shape_cast %15 : vector<1x8x1xf32> to vector<8x1xf32>
    %17 = vector.shape_cast %16 : vector<8x1xf32> to vector<1x8x1xf32>
    %18 = vector.broadcast %17 : vector<1x8x1xf32> to vector<2x8x32xf32>
    %19 = arith.mulf %14, %18 : vector<2x8x32xf32>
    %20 = vector.extract_strided_slice %3 {offsets = [1, 0, 0], sizes = [1, 8, 1], strides = [1, 1, 1]} : vector<2x8x1xf32> to vector<1x8x1xf32>
    %21 = vector.shape_cast %20 : vector<1x8x1xf32> to vector<8x1xf32>
    %22 = vector.shape_cast %21 : vector<8x1xf32> to vector<1x8x1xf32>
    %23 = vector.broadcast %22 : vector<1x8x1xf32> to vector<2x8x32xf32>
    %24 = arith.addf %19, %23 : vector<2x8x32xf32>
    %cst_18 = arith.constant 0.000000e+00 : f32
    %25 = vector.broadcast %cst_18 : f32 to vector<2x8x32xf32>
    %26 = arith.maximumf %24, %25 : vector<2x8x32xf32>
    %27 = vector.extract_strided_slice %26 {offsets = [0, 0, 0], sizes = [2, 8, 16], strides = [1, 1, 1]} : vector<2x8x32xf32> to vector<2x8x16xf32>
    %28 = arith.truncf %27 : vector<2x8x16xf32> to vector<2x8x16xbf16>
    %29 = vector.extract_strided_slice %26 {offsets = [0, 0, 16], sizes = [2, 8, 16], strides = [1, 1, 1]} : vector<2x8x32xf32> to vector<2x8x16xf32>
    %30 = arith.truncf %29 : vector<2x8x16xf32> to vector<2x8x16xbf16>
    %31 = vector.extract_strided_slice %4 {offsets = [0, 0, 0], sizes = [1, 32, 8], strides = [1, 1, 1]} : vector<2x32x8xbf16> to vector<1x32x8xbf16>
    %32 = vector.shape_cast %31 : vector<1x32x8xbf16> to vector<32x8xbf16>
    %33 = vector.shape_cast %32 : vector<32x8xbf16> to vector<1x32x8xbf16>
    %34 = vector.shape_cast %33 : vector<1x32x8xbf16> to vector<1x32x8xbf16>
    %35 = vector.broadcast %34 : vector<1x32x8xbf16> to vector<2x32x8xbf16>
    %36 = vector.extract_strided_slice %4 {offsets = [1, 0, 0], sizes = [1, 32, 8], strides = [1, 1, 1]} : vector<2x32x8xbf16> to vector<1x32x8xbf16>
    %37 = vector.shape_cast %36 : vector<1x32x8xbf16> to vector<32x8xbf16>
    %38 = vector.shape_cast %37 : vector<32x8xbf16> to vector<1x32x8xbf16>
    %39 = vector.shape_cast %38 : vector<1x32x8xbf16> to vector<1x32x8xbf16>
    %40 = vector.broadcast %39 : vector<1x32x8xbf16> to vector<2x32x8xbf16>
    "tpu.trace_start"() <{level = 10 : i32, message = "ncm,nmk->nck"}> : () -> ()
    %cst_19 = arith.constant dense<0.000000e+00> : vector<2x32x16xf32>
    %41 = tpu.matmul %35, %28, %cst_19 {dimension_numbers = #tpu.dot_dimension_numbers<[2], [1], [1], [2], [0, 0, 0, 1, 1, 2], [0], [0]>} : vector<2x32x8xbf16>, vector<2x8x16xbf16>, vector<2x32x16xf32> -> vector<2x32x16xf32>
    "tpu.trace_stop"() : () -> ()
    %42 = vector.extract_strided_slice %5 {offsets = [0, 0, 0], sizes = [1, 32, 1], strides = [1, 1, 1]} : vector<2x32x1xf32> to vector<1x32x1xf32>
    %43 = vector.shape_cast %42 : vector<1x32x1xf32> to vector<32x1xf32>
    %44 = vector.shape_cast %43 : vector<32x1xf32> to vector<1x32x1xf32>
    %45 = vector.broadcast %44 : vector<1x32x1xf32> to vector<2x32x16xf32>
    %46 = arith.addf %41, %45 : vector<2x32x16xf32>
    %47 = arith.negf %46 : vector<2x32x16xf32>
    %48 = math.exp %47 : vector<2x32x16xf32>
    %cst_20 = arith.constant 1.000000e+00 : f32
    %49 = vector.broadcast %cst_20 : f32 to vector<2x32x16xf32>
    %50 = arith.addf %49, %48 : vector<2x32x16xf32>
    %51 = arith.divf %49, %50 : vector<2x32x16xf32>
    "tpu.trace_start"() <{level = 10 : i32, message = "ncm,nmk->nck"}> : () -> ()
    %cst_21 = arith.constant dense<0.000000e+00> : vector<2x32x16xf32>
    %52 = tpu.matmul %40, %30, %cst_21 {dimension_numbers = #tpu.dot_dimension_numbers<[2], [1], [1], [2], [0, 0, 0, 1, 1, 2], [0], [0]>} : vector<2x32x8xbf16>, vector<2x8x16xbf16>, vector<2x32x16xf32> -> vector<2x32x16xf32>
    "tpu.trace_stop"() : () -> ()
    %53 = vector.extract_strided_slice %5 {offsets = [1, 0, 0], sizes = [1, 32, 1], strides = [1, 1, 1]} : vector<2x32x1xf32> to vector<1x32x1xf32>
    %54 = vector.shape_cast %53 : vector<1x32x1xf32> to vector<32x1xf32>
    %55 = vector.shape_cast %54 : vector<32x1xf32> to vector<1x32x1xf32>
    %56 = vector.broadcast %55 : vector<1x32x1xf32> to vector<2x32x16xf32>
    %57 = arith.addf %52, %56 : vector<2x32x16xf32>
    %58 = arith.negf %57 : vector<2x32x16xf32>
    %59 = math.exp %58 : vector<2x32x16xf32>
    %cst_22 = arith.constant 1.000000e+00 : f32
    %60 = vector.broadcast %cst_22 : f32 to vector<2x32x16xf32>
    %61 = arith.addf %60, %59 : vector<2x32x16xf32>
    %62 = arith.divf %60, %61 : vector<2x32x16xf32>
    %63 = vector.shape_cast %51 : vector<2x32x16xf32> to vector<64x16xf32>
    %64 = vector.extract_strided_slice %1 {offsets = [0, 0], sizes = [16, 256], strides = [1, 1]} : vector<32x256xf32> to vector<16x256xf32>
    %cst_23 = arith.constant dense<0.000000e+00> : vector<64x256xf32>
    %65 = tpu.matmul %63, %64, %cst_23 {dimension_numbers = #tpu.dot_dimension_numbers<[1], [0], [0], [1], [0, 0, 1, 1], [], []>, precision = #tpu.contract_precision<fp32>} : vector<64x16xf32>, vector<16x256xf32>, vector<64x256xf32> -> vector<64x256xf32>
    %66 = vector.shape_cast %62 : vector<2x32x16xf32> to vector<64x16xf32>
    %67 = vector.extract_strided_slice %1 {offsets = [16, 0], sizes = [16, 256], strides = [1, 1]} : vector<32x256xf32> to vector<16x256xf32>
    %cst_24 = arith.constant dense<0.000000e+00> : vector<64x256xf32>
    %68 = tpu.matmul %66, %67, %cst_24 {dimension_numbers = #tpu.dot_dimension_numbers<[1], [0], [0], [1], [0, 0, 1, 1], [], []>, precision = #tpu.contract_precision<fp32>} : vector<64x16xf32>, vector<16x256xf32>, vector<64x256xf32> -> vector<64x256xf32>
    %69 = arith.mulf %65, %68 : vector<64x256xf32>
    %70 = arith.mulf %7, %69 : vector<64x256xf32>
    %71 = vector.shape_cast %70 : vector<64x256xf32> to vector<2x32x256xf32>
    %c0_25 = arith.constant 0 : index
    %c0_26 = arith.constant 0 : index
    %c0_27 = arith.constant 0 : index
    %72 = vector.load %arg8[%c0_25, %c0_26, %c0_27] : memref<2x32x256xf32, #tpu.memory_space<vmem>>, vector<2x32x256xf32>
    tpu.vector_store %arg8[%c0_25, %c0_26, %c0_27], %71 {strides = array<i32>} : memref<2x32x256xf32, #tpu.memory_space<vmem>>, vector<2x32x256xf32>,
    return
  }
  func.func @transform_0(%arg0: i32) -> (i32, i32, i32) {
    %c0_i32 = arith.constant 0 : i32
    %c0_i32_0 = arith.constant 0 : i32
    %c0_i32_1 = arith.constant 0 : i32
    return %arg0, %c0_i32, %c0_i32_0 : i32, i32, i32
  }
  func.func @transform_1(%arg0: i32) -> (i32, i32) {
    %c0_i32 = arith.constant 0 : i32
    %c0_i32_0 = arith.constant 0 : i32
    %c0_i32_1 = arith.constant 0 : i32
    return %c0_i32, %c0_i32_0 : i32, i32
  }
  func.func @transform_2(%arg0: i32) -> (i32, i32) {
    %c0_i32 = arith.constant 0 : i32
    %c0_i32_0 = arith.constant 0 : i32
    %c0_i32_1 = arith.constant 0 : i32
    return %c0_i32, %c0_i32_0 : i32, i32
  }
  func.func @transform_3(%arg0: i32) -> (i32, i32) {
    %c0_i32 = arith.constant 0 : i32
    %c0_i32_0 = arith.constant 0 : i32
    %c0_i32_1 = arith.constant 0 : i32
    return %c0_i32, %c0_i32_0 : i32, i32
  }
  func.func @transform_4(%arg0: i32) -> (i32, i32, i32) {
    %c0_i32 = arith.constant 0 : i32
    %c0_i32_0 = arith.constant 0 : i32
    %c0_i32_1 = arith.constant 0 : i32
    %c0_i32_2 = arith.constant 0 : i32
    return %c0_i32, %c0_i32_0, %c0_i32_1 : i32, i32, i32
  }
  func.func @transform_5(%arg0: i32) -> (i32, i32, i32) {
    %c0_i32 = arith.constant 0 : i32
    %c0_i32_0 = arith.constant 0 : i32
    %c0_i32_1 = arith.constant 0 : i32
    %c0_i32_2 = arith.constant 0 : i32
    return %c0_i32, %c0_i32_0, %c0_i32_1 : i32, i32, i32
  }
  func.func @transform_6(%arg0: i32) -> (i32, i32, i32) {
    %c0_i32 = arith.constant 0 : i32
    %c0_i32_0 = arith.constant 0 : i32
    %c0_i32_1 = arith.constant 0 : i32
    %c0_i32_2 = arith.constant 0 : i32
    return %c0_i32, %c0_i32_0, %c0_i32_1 : i32, i32, i32
  }
  func.func @transform_7(%arg0: i32) -> (i32, i32, i32) {
    %c0_i32 = arith.constant 0 : i32
    %c0_i32_0 = arith.constant 0 : i32
    %c0_i32_1 = arith.constant 0 : i32
    return %arg0, %c0_i32, %c0_i32_0 : i32, i32, i32
  }
}

</mosaic_0001>

<llo_original>
// kernel: tpu_custom_call.1
$region0: #{tpu_custom_call.1}
  #allocation0 [shape = 'u32[]', space=smem, size = 0x4, offset = 0x4, fixed_abs, tag = 'smem constant byte address 0x4 - core index']
  #allocation1 [shape = 'u32[144,128]{1,0:T(1,128)}', space=vmem, size = 0x12000, scoped, tag = 'internal scratch']
  %s0 = inlined_call_operand.vmem [shape: f32[2,32,256], index: 0, kind: input, shape index: {}]
  %s1 = inlined_call_operand.vmem [shape: f32[256,32], index: 1, kind: input, shape index: {}]
  %s2 = inlined_call_operand.vmem [shape: f32[32,256], index: 2, kind: input, shape index: {}]
  %s3 = inlined_call_operand.vmem [shape: bf16[8,32], index: 3, kind: input, shape index: {}]
  %s4 = inlined_call_operand.vmem [shape: f32[2,8,1], index: 4, kind: input, shape index: {}]
  %s5 = inlined_call_operand.vmem [shape: bf16[2,32,8], index: 5, kind: input, shape index: {}]
  %s6 = inlined_call_operand.vmem [shape: f32[2,32,1], index: 6, kind: input, shape index: {}]
  %s7 = inlined_call_operand.hbm [shape: f32[2,32,256], index: 7, kind: output, shape index: {}]
  %s8 = sld [smem:[#allocation0]]
  $region38: #{tpu_custom_call.1} parent=0
    _
  %s10 = ssub.s32 1, %s8
  %s11 = scalar_select 0, %s10, %s8
  $region1: #{tpu_custom_call.1} parent=0
    #allocation2 [shape = 'u8[65536]{0}', space=vmem, size = 0x10000, scoped, tag = 'output window, operand 0, single buffered']
    #allocation3 [shape = 's32[1]{0}', space=sflag, size = 0x4, scoped, tag = 'scoped memory for tpu_custom_call.1']
    %12 = vsyncpa [#allocation3], 0
    // Predicated region
    $region2: #{tpu_custom_call.1} parent=1 // pred_check
      _
    $region3: #{tpu_custom_call.1} parent=1 // pred_check_branch
      %14 = sbr.rel (0) target = $region5
    $region4: #{tpu_custom_call.1} parent=1 // pred_region
      _
    $region5: #{tpu_custom_call.1} parent=1 // pred_fallthru
      _
    // Predicated region
    $region6: #{tpu_custom_call.1} parent=1 // pred_check
      _
    $region7: #{tpu_custom_call.1} parent=1 // pred_check_branch
      %16 = sbr.rel (0) target = $region9
    $region8: #{tpu_custom_call.1} parent=1 // pred_region
      _
    $region9: #{tpu_custom_call.1} parent=1 // pred_fallthru
      _
    // Predicated region
    $region10: #{tpu_custom_call.1} parent=1 // pred_check
      _
    $region11: #{tpu_custom_call.1} parent=1 // pred_check_branch
      %18 = sbr.rel (0) target = $region13
    $region12: #{tpu_custom_call.1} parent=1 // pred_region
      _
    $region13: #{tpu_custom_call.1} parent=1 // pred_fallthru
      _
    // Predicated region
    $region14: #{tpu_custom_call.1} parent=1 // pred_check
      _
    $region15: #{tpu_custom_call.1} parent=1 // pred_check_branch
      %20 = sbr.rel (0) target = $region17
    $region16: #{tpu_custom_call.1} parent=1 // pred_region
      _
    $region17: #{tpu_custom_call.1} parent=1 // pred_fallthru
      _
    // Predicated region
    $region18: #{tpu_custom_call.1} parent=1 // pred_check
      _
    $region19: #{tpu_custom_call.1} parent=1 // pred_check_branch
      %22 = sbr.rel (0) target = $region21
    $region20: #{tpu_custom_call.1} parent=1 // pred_region
      _
    $region21: #{tpu_custom_call.1} parent=1 // pred_fallthru
      _
    // Predicated region
    $region22: #{tpu_custom_call.1} parent=1 // pred_check
      _
    $region23: #{tpu_custom_call.1} parent=1 // pred_check_branch
      %24 = sbr.rel (0) target = $region25
    $region24: #{tpu_custom_call.1} parent=1 // pred_region
      _
    $region25: #{tpu_custom_call.1} parent=1 // pred_fallthru
      _
    // Predicated region
    $region26: #{tpu_custom_call.1} parent=1 // pred_check
      _
    $region27: #{tpu_custom_call.1} parent=1 // pred_check_branch
      %26 = sbr.rel (0) target = $region29
    $region28: #{tpu_custom_call.1} parent=1 // pred_region
      _
    $region29: #{tpu_custom_call.1} parent=1 // pred_fallthru
      _
    %v28 = vld [vmem:[%s1] sm:$0xff]
    %v29 = vld [vmem:[%s1 + $0x8] sm:$0xff]
    %v30 = vld [vmem:[%s1 + $0x10] sm:$0xff]
    %v31 = vld [vmem:[%s1 + $0x18] sm:$0xff]
    %v32 = vld [vmem:[%s1 + $0x20] sm:$0xff]
    %v33 = vld [vmem:[%s1 + $0x28] sm:$0xff]
    %v34 = vld [vmem:[%s1 + $0x30] sm:$0xff]
    %v35 = vld [vmem:[%s1 + $0x38] sm:$0xff]
    %v36 = vld [vmem:[%s1 + $0x40] sm:$0xff]
    %v37 = vld [vmem:[%s1 + $0x48] sm:$0xff]
    %v38 = vld [vmem:[%s1 + $0x50] sm:$0xff]
    %v39 = vld [vmem:[%s1 + $0x58] sm:$0xff]
    %v40 = vld [vmem:[%s1 + $0x60] sm:$0xff]
    %v41 = vld [vmem:[%s1 + $0x68] sm:$0xff]
    %v42 = vld [vmem:[%s1 + $0x70] sm:$0xff]
    %v43 = vld [vmem:[%s1 + $0x78] sm:$0xff]
    %v44 = vld [vmem:[%s1 + $0x80] sm:$0xff]
    %v45 = vld [vmem:[%s1 + $0x88] sm:$0xff]
    %v46 = vld [vmem:[%s1 + $0x90] sm:$0xff]
    %v47 = vld [vmem:[%s1 + $0x98] sm:$0xff]
    %v48 = vld [vmem:[%s1 + $0xa0] sm:$0xff]
    %v49 = vld [vmem:[%s1 + $0xa8] sm:$0xff]
    %v50 = vld [vmem:[%s1 + $0xb0] sm:$0xff]
    %v51 = vld [vmem:[%s1 + $0xb8] sm:$0xff]
    %v52 = vld [vmem:[%s1 + $0xc0] sm:$0xff]
    %v53 = vld [vmem:[%s1 + $0xc8] sm:$0xff]
    %v54 = vld [vmem:[%s1 + $0xd0] sm:$0xff]
    %v55 = vld [vmem:[%s1 + $0xd8] sm:$0xff]
    %v56 = vld [vmem:[%s1 + $0xe0] sm:$0xff]
    %v57 = vld [vmem:[%s1 + $0xe8] sm:$0xff]
    %v58 = vld [vmem:[%s1 + $0xf0] sm:$0xff]
    %v59 = vld [vmem:[%s1 + $0xf8] sm:$0xff]
    %v60 = vld [vmem:[%s2] sm:$0xff]
    %v61 = vld [vmem:[%s2 + $0x8] sm:$0xff]
    %v62 = vld [vmem:[%s2 + $0x10] sm:$0xff]
    %v63 = vld [vmem:[%s2 + $0x18] sm:$0xff]
    %v64 = vld [vmem:[%s2 + $0x20] sm:$0xff]
    %v65 = vld [vmem:[%s2 + $0x28] sm:$0xff]
    %v66 = vld [vmem:[%s2 + $0x30] sm:$0xff]
    %v67 = vld [vmem:[%s2 + $0x38] sm:$0xff]
    %v68 = vld [vmem:[%s3] sm:$0xf]
    %v69 = vld [vmem:[%s4] sm:$0xff]
    %v70 = vld [vmem:[%s4 + $0x8] sm:$0xff]
    %v71 = vld [vmem:[%s5] sm:$0xf]
    %v72 = vld [vmem:[%s5 + $0x4] sm:$0xf]
    %v73 = vld [vmem:[%s5 + $0x8] sm:$0xf]
    %v74 = vld [vmem:[%s5 + $0xc] sm:$0xf]
    %v75 = vld [vmem:[%s5 + $0x10] sm:$0xf]
    %v76 = vld [vmem:[%s5 + $0x14] sm:$0xf]
    %v77 = vld [vmem:[%s5 + $0x18] sm:$0xf]
    %v78 = vld [vmem:[%s5 + $0x1c] sm:$0xf]
    %v79 = vld [vmem:[%s6] sm:$0xff]
    %v80 = vld [vmem:[%s6 + $0x8] sm:$0xff]
    %v81 = vld [vmem:[%s6 + $0x10] sm:$0xff]
    %v82 = vld [vmem:[%s6 + $0x18] sm:$0xff]
    %v83 = vld [vmem:[%s6 + $0x20] sm:$0xff]
    %v84 = vld [vmem:[%s6 + $0x28] sm:$0xff]
    %v85 = vld [vmem:[%s6 + $0x30] sm:$0xff]
    %v86 = vld [vmem:[%s6 + $0x38] sm:$0xff]
    %v87 = vld [vmem:[%s0] sm:$0xff]
    %v88 = vld [vmem:[%s0 + $0x8] sm:$0xff]
    %v89 = vld [vmem:[%s0 + $0x10] sm:$0xff]
    %v90 = vld [vmem:[%s0 + $0x18] sm:$0xff]
    %v91 = vld [vmem:[%s0 + $0x20] sm:$0xff]
    %v92 = vld [vmem:[%s0 + $0x28] sm:$0xff]
    %v93 = vld [vmem:[%s0 + $0x30] sm:$0xff]
    %v94 = vld [vmem:[%s0 + $0x38] sm:$0xff]
    %v95 = vld [vmem:[%s0 + $0x40] sm:$0xff]
    %v96 = vld [vmem:[%s0 + $0x48] sm:$0xff]
    %v97 = vld [vmem:[%s0 + $0x50] sm:$0xff]
    %v98 = vld [vmem:[%s0 + $0x58] sm:$0xff]
    %v99 = vld [vmem:[%s0 + $0x60] sm:$0xff]
    %v100 = vld [vmem:[%s0 + $0x68] sm:$0xff]
    %v101 = vld [vmem:[%s0 + $0x70] sm:$0xff]
    %v102 = vld [vmem:[%s0 + $0x78] sm:$0xff]
    %103 = vmatprep.subr.mxu0 0.0
    %v104 = vand.u32 %v28, 4294901760
    %105 = vmatpush1.msra.mxu0 %v104
    %106 = vmatprep.subr.mxu0 0.0
    %v107 = vand.u32 %v29, 4294901760
    %108 = vmatpush1.msra.mxu0 %v107
    %109 = vmatprep.subr.mxu0 0.0
    %v110 = vand.u32 %v30, 4294901760
    %111 = vmatpush1.msra.mxu0 %v110
    %112 = vmatprep.subr.mxu0 0.0
    %v113 = vand.u32 %v31, 4294901760
    %114 = vmatpush1.msra.mxu0 %v113
    %115 = vmatprep.subr.mxu0 0.0
    %v116 = vand.u32 %v32, 4294901760
    %117 = vmatpush1.msra.mxu0 %v116
    %118 = vmatprep.subr.mxu0 0.0
    %v119 = vand.u32 %v33, 4294901760
    %120 = vmatpush1.msra.mxu0 %v119
    %121 = vmatprep.subr.mxu0 0.0
    %v122 = vand.u32 %v34, 4294901760
    %123 = vmatpush1.msra.mxu0 %v122
    %124 = vmatprep.subr.mxu0 0.0
    %v125 = vand.u32 %v35, 4294901760
    %126 = vmatpush1.msra.mxu0 %v125
    %127 = vmatprep.subr.mxu0 0.0
    %v128 = vand.u32 %v36, 4294901760
    %129 = vmatpush1.msra.mxu0 %v128
    %130 = vmatprep.subr.mxu0 0.0
    %v131 = vand.u32 %v37, 4294901760
    %132 = vmatpush1.msra.mxu0 %v131
    %133 = vmatprep.subr.mxu0 0.0
    %v134 = vand.u32 %v38, 4294901760
    %135 = vmatpush1.msra.mxu0 %v134
    %136 = vmatprep.subr.mxu0 0.0
    %v137 = vand.u32 %v39, 4294901760
    %138 = vmatpush1.msra.mxu0 %v137
    %139 = vmatprep.subr.mxu0 0.0
    %v140 = vand.u32 %v40, 4294901760
    %141 = vmatpush1.msra.mxu0 %v140
    %142 = vmatprep.subr.mxu0 0.0
    %v143 = vand.u32 %v41, 4294901760
    %144 = vmatpush1.msra.mxu0 %v143
    %145 = vmatprep.subr.mxu0 0.0
    %v146 = vand.u32 %v42, 4294901760
    %147 = vmatpush1.msra.mxu0 %v146
    %148 = vmatprep.subr.mxu0 0.0
    %v149 = vand.u32 %v43, 4294901760
    %150 = vmatpush1.msra.mxu0 %v149
    %151 = vmatprep.subr.mxu0 0.0
    %v152 = vand.u32 %v44, 4294901760
    %153 = vmatpush1.msra.mxu0 %v152
    %154 = vmatprep.subr.mxu0 0.0
    %v155 = vand.u32 %v45, 4294901760
    %156 = vmatpush1.msra.mxu0 %v155
    %157 = vmatprep.subr.mxu0 0.0
    %v158 = vand.u32 %v46, 4294901760
    %159 = vmatpush1.msra.mxu0 %v158
    %160 = vmatprep.subr.mxu0 0.0
    %v161 = vand.u32 %v47, 4294901760
    %162 = vmatpush1.msra.mxu0 %v161
    %163 = vmatprep.subr.mxu0 0.0
    %v164 = vand.u32 %v48, 4294901760
    %165 = vmatpush1.msra.mxu0 %v164
    %166 = vmatprep.subr.mxu0 0.0
    %v167 = vand.u32 %v49, 4294901760
    %168 = vmatpush1.msra.mxu0 %v167
    %169 = vmatprep.subr.mxu0 0.0
    %v170 = vand.u32 %v50, 4294901760
    %171 = vmatpush1.msra.mxu0 %v170
    %172 = vmatprep.subr.mxu0 0.0
    %v173 = vand.u32 %v51, 4294901760
    %174 = vmatpush1.msra.mxu0 %v173
    %175 = vmatprep.subr.mxu0 0.0
    %v176 = vand.u32 %v52, 4294901760
    %177 = vmatpush1.msra.mxu0 %v176
    %178 = vmatprep.subr.mxu0 0.0
    %v179 = vand.u32 %v53, 4294901760
    %180 = vmatpush1.msra.mxu0 %v179
    %181 = vmatprep.subr.mxu0 0.0
    %v182 = vand.u32 %v54, 4294901760
    %183 = vmatpush1.msra.mxu0 %v182
    %184 = vmatprep.subr.mxu0 0.0
    %v185 = vand.u32 %v55, 4294901760
    %186 = vmatpush1.msra.mxu0 %v185
    %187 = vmatprep.subr.mxu0 0.0
    %v188 = vand.u32 %v56, 4294901760
    %189 = vmatpush1.msra.mxu0 %v188
    %190 = vmatprep.subr.mxu0 0.0
    %v191 = vand.u32 %v57, 4294901760
    %192 = vmatpush1.msra.mxu0 %v191
    %193 = vmatprep.subr.mxu0 0.0
    %v194 = vand.u32 %v58, 4294901760
    %195 = vmatpush1.msra.mxu0 %v194
    %196 = vmatprep.subr.mxu0 0.0
    %v197 = vand.u32 %v59, 4294901760
    %198 = vmatpush1.msra.mxu0 %v197
    %v199 = vand.u32 %v88, 4294901760
    %v200 = vsub.f32 %v88, %v199
    %v201 = vand.u32 %v200, 4294901760
    %v202 = vsub.f32 %v200, %v201
    %v203 = vand.u32 %v202, 4294901760
    %204 = vmatprep.mubr.f32.mxu0 %v203
    %v205 = vand.u32 %v87, 4294901760
    %v206 = vsub.f32 %v87, %v205
    %v207 = vand.u32 %v206, 4294901760
    %v208 = vsub.f32 %v206, %v207
    %v209 = vand.u32 %v208, 4294901760
    %210 = vmatmul.mubr.f32.gmra.mrb[0].mxu0 %v209
    %v211 = vpop.f32.mrb[0].mxu0
    %v212 = vadd.f32 0.0, %v211
    %v213 = vpop.f32.mrb[0].mxu0
    %v214 = vand.u32 %v90, 4294901760
    %v215 = vsub.f32 %v90, %v214
    %v216 = vand.u32 %v215, 4294901760
    %v217 = vsub.f32 %v215, %v216
    %v218 = vand.u32 %v217, 4294901760
    %219 = vmatprep.mubr.f32.mxu0 %v218
    %v220 = vand.u32 %v89, 4294901760
    %v221 = vsub.f32 %v89, %v220
    %v222 = vand.u32 %v221, 4294901760
    %v223 = vsub.f32 %v221, %v222
    %v224 = vand.u32 %v223, 4294901760
    %225 = vmatmul.mubr.f32.gmra.mrb[0].mxu0 %v224
    %v226 = vpop.f32.mrb[0].mxu0
    %v227 = vadd.f32 0.0, %v226
    %v228 = vpop.f32.mrb[0].mxu0
    %v229 = vand.u32 %v92, 4294901760
    %v230 = vsub.f32 %v92, %v229
    %v231 = vand.u32 %v230, 4294901760
    %v232 = vsub.f32 %v230, %v231
    %v233 = vand.u32 %v232, 4294901760
    %234 = vmatprep.mubr.f32.mxu0 %v233
    %v235 = vand.u32 %v91, 4294901760
    %v236 = vsub.f32 %v91, %v235
    %v237 = vand.u32 %v236, 4294901760
    %v238 = vsub.f32 %v236, %v237
    %v239 = vand.u32 %v238, 4294901760
    %240 = vmatmul.mubr.f32.gmra.mrb[0].mxu0 %v239
    %v241 = vpop.f32.mrb[0].mxu0
    %v242 = vadd.f32 0.0, %v241
    %v243 = vpop.f32.mrb[0].mxu0
    %v244 = vand.u32 %v94, 4294901760
    %v245 = vsub.f32 %v94, %v244
    %v246 = vand.u32 %v245, 4294901760
    %v247 = vsub.f32 %v245, %v246
    %v248 = vand.u32 %v247, 4294901760
    %249 = vmatprep.mubr.f32.mxu0 %v248
    %v250 = vand.u32 %v93, 4294901760
    %v251 = vsub.f32 %v93, %v250
    %v252 = vand.u32 %v251, 4294901760
    %v253 = vsub.f32 %v251, %v252
    %v254 = vand.u32 %v253, 4294901760
    %255 = vmatmul.mubr.f32.gmra.mrb[0].mxu0 %v254
    %v256 = vpop.f32.mrb[0].mxu0
    %v257 = vadd.f32 0.0, %v256
    %v258 = vpop.f32.mrb[0].mxu0
    %v259 = vand.u32 %v96, 4294901760
    %v260 = vsub.f32 %v96, %v259
    %v261 = vand.u32 %v260, 4294901760
    %v262 = vsub.f32 %v260, %v261
    %v263 = vand.u32 %v262, 4294901760
    %264 = vmatprep.mubr.f32.mxu0 %v263
    %v265 = vand.u32 %v95, 4294901760
    %v266 = vsub.f32 %v95, %v265
    %v267 = vand.u32 %v266, 4294901760
    %v268 = vsub.f32 %v266, %v267
    %v269 = vand.u32 %v268, 4294901760
    %270 = vmatmul.mubr.f32.gmra.mrb[0].mxu0 %v269
    %v271 = vpop.f32.mrb[0].mxu0
    %v272 = vadd.f32 0.0, %v271
    %v273 = vpop.f32.mrb[0].mxu0
    %v274 = vand.u32 %v98, 4294901760
    %v275 = vsub.f32 %v98, %v274
    %v276 = vand.u32 %v275, 4294901760
    %v277 = vsub.f32 %v275, %v276
    %v278 = vand.u32 %v277, 4294901760
    %279 = vmatprep.mubr.f32.mxu0 %v278
    %v280 = vand.u32 %v97, 4294901760
    %v281 = vsub.f32 %v97, %v280
    %v282 = vand.u32 %v281, 4294901760
    %v283 = vsub.f32 %v281, %v282
    %v284 = vand.u32 %v283, 4294901760
    %285 = vmatmul.mubr.f32.gmra.mrb[0].mxu0 %v284
    %v286 = vpop.f32.mrb[0].mxu0
    %v287 = vadd.f32 0.0, %v286
    %v288 = vpop.f32.mrb[0].mxu0
    %v289 = vand.u32 %v100, 4294901760
    %v290 = vsub.f32 %v100, %v289
    %v291 = vand.u32 %v290, 4294901760
    %v292 = vsub.f32 %v290, %v291
    %v293 = vand.u32 %v292, 4294901760
    %294 = vmatprep.mubr.f32.mxu0 %v293
    %v295 = vand.u32 %v99, 4294901760
    %v296 = vsub.f32 %v99, %v295
    %v297 = vand.u32 %v296, 4294901760
    %v298 = vsub.f32 %v296, %v297
    %v299 = vand.u32 %v298, 4294901760
    %300 = vmatmul.mubr.f32.gmra.mrb[0].mxu0 %v299
    %v301 = vpop.f32.mrb[0].mxu0
    %v302 = vadd.f32 0.0, %v301
    %v303 = vpop.f32.mrb[0].mxu0
    %v304 = vand.u32 %v102, 4294901760
    %v305 = vsub.f32 %v102, %v304
    %v306 = vand.u32 %v305, 4294901760
    %v307 = vsub.f32 %v305, %v306
    %v308 = vand.u32 %v307, 4294901760
    %309 = vmatprep.mubr.f32.mxu0 %v308
    %v310 = vand.u32 %v101, 4294901760
    %v311 = vsub.f32 %v101, %v310
    %v312 = vand.u32 %v311, 4294901760
    %v313 = vsub.f32 %v311, %v312
    %v314 = vand.u32 %v313, 4294901760
    %315 = vmatmul.mubr.f32.gmra.mrb[0].mxu0 %v314
    %v316 = vpop.f32.mrb[0].mxu0
    %v317 = vadd.f32 0.0, %v316
    %v318 = vpop.f32.mrb[0].mxu0
    %319 = vdwg.mxu0
    %320 = vmatprep.subr.mxu0 0.0
    %v321 = vand.u32 %v28, 4294901760
    %v322 = vsub.f32 %v28, %v321
    %v323 = vand.u32 %v322, 4294901760
    %v324 = vsub.f32 %v322, %v323
    %v325 = vand.u32 %v324, 4294901760
    %326 = vmatpush1.msra.mxu0 %v325
    %327 = vmatprep.subr.mxu0 0.0
    %v328 = vand.u32 %v29, 4294901760
    %v329 = vsub.f32 %v29, %v328
    %v330 = vand.u32 %v329, 4294901760
    %v331 = vsub.f32 %v329, %v330
    %v332 = vand.u32 %v331, 4294901760
    %333 = vmatpush1.msra.mxu0 %v332
    %334 = vmatprep.subr.mxu0 0.0
    %v335 = vand.u32 %v30, 4294901760
    %v336 = vsub.f32 %v30, %v335
    %v337 = vand.u32 %v336, 4294901760
    %v338 = vsub.f32 %v336, %v337
    %v339 = vand.u32 %v338, 4294901760
    %340 = vmatpush1.msra.mxu0 %v339
    %341 = vmatprep.subr.mxu0 0.0
    %v342 = vand.u32 %v31, 4294901760
    %v343 = vsub.f32 %v31, %v342
    %v344 = vand.u32 %v343, 4294901760
    %v345 = vsub.f32 %v343, %v344
    %v346 = vand.u32 %v345, 4294901760
    %347 = vmatpush1.msra.mxu0 %v346
    %348 = vmatprep.subr.mxu0 0.0
    %v349 = vand.u32 %v32, 4294901760
    %v350 = vsub.f32 %v32, %v349
    %v351 = vand.u32 %v350, 4294901760
    %v352 = vsub.f32 %v350, %v351
    %v353 = vand.u32 %v352, 4294901760
    %354 = vmatpush1.msra.mxu0 %v353
    %355 = vmatprep.subr.mxu0 0.0
    %v356 = vand.u32 %v33, 4294901760
    %v357 = vsub.f32 %v33, %v356
    %v358 = vand.u32 %v357, 4294901760
    %v359 = vsub.f32 %v357, %v358
    %v360 = vand.u32 %v359, 4294901760
    %361 = vmatpush1.msra.mxu0 %v360
    %362 = vmatprep.subr.mxu0 0.0
    %v363 = vand.u32 %v34, 4294901760
    %v364 = vsub.f32 %v34, %v363
    %v365 = vand.u32 %v364, 4294901760
    %v366 = vsub.f32 %v364, %v365
    %v367 = vand.u32 %v366, 4294901760
    %368 = vmatpush1.msra.mxu0 %v367
    %369 = vmatprep.subr.mxu0 0.0
    %v370 = vand.u32 %v35, 4294901760
    %v371 = vsub.f32 %v35, %v370
    %v372 = vand.u32 %v371, 4294901760
    %v373 = vsub.f32 %v371, %v372
    %v374 = vand.u32 %v373, 4294901760
    %375 = vmatpush1.msra.mxu0 %v374
    %376 = vmatprep.subr.mxu0 0.0
    %v377 = vand.u32 %v36, 4294901760
    %v378 = vsub.f32 %v36, %v377
    %v379 = vand.u32 %v378, 4294901760
    %v380 = vsub.f32 %v378, %v379
    %v381 = vand.u32 %v380, 4294901760
    %382 = vmatpush1.msra.mxu0 %v381
    %383 = vmatprep.subr.mxu0 0.0
    %v384 = vand.u32 %v37, 4294901760
    %v385 = vsub.f32 %v37, %v384
    %v386 = vand.u32 %v385, 4294901760
    %v387 = vsub.f32 %v385, %v386
    %v388 = vand.u32 %v387, 4294901760
    %389 = vmatpush1.msra.mxu0 %v388
    %390 = vmatprep.subr.mxu0 0.0
    %v391 = vand.u32 %v38, 4294901760
    %v392 = vsub.f32 %v38, %v391
    %v393 = vand.u32 %v392, 4294901760
    %v394 = vsub.f32 %v392, %v393
    %v395 = vand.u32 %v394, 4294901760
    %396 = vmatpush1.msra.mxu0 %v395
    %397 = vmatprep.subr.mxu0 0.0
    %v398 = vand.u32 %v39, 4294901760
    %v399 = vsub.f32 %v39, %v398
    %v400 = vand.u32 %v399, 4294901760
    %v401 = vsub.f32 %v399, %v400
    %v402 = vand.u32 %v401, 4294901760
    %403 = vmatpush1.msra.mxu0 %v402
    %404 = vmatprep.subr.mxu0 0.0
    %v405 = vand.u32 %v40, 4294901760
    %v406 = vsub.f32 %v40, %v405
    %v407 = vand.u32 %v406, 4294901760
    %v408 = vsub.f32 %v406, %v407
    %v409 = vand.u32 %v408, 4294901760
    %410 = vmatpush1.msra.mxu0 %v409
    %411 = vmatprep.subr.mxu0 0.0
    %v412 = vand.u32 %v41, 4294901760
    %v413 = vsub.f32 %v41, %v412
    %v414 = vand.u32 %v413, 4294901760
    %v415 = vsub.f32 %v413, %v414
    %v416 = vand.u32 %v415, 4294901760
    %417 = vmatpush1.msra.mxu0 %v416
    %418 = vmatprep.subr.mxu0 0.0
    %v419 = vand.u32 %v42, 4294901760
    %v420 = vsub.f32 %v42, %v419
    %v421 = vand.u32 %v420, 4294901760
    %v422 = vsub.f32 %v420, %v421
    %v423 = vand.u32 %v422, 4294901760
    %424 = vmatpush1.msra.mxu0 %v423
    %425 = vmatprep.subr.mxu0 0.0
    %v426 = vand.u32 %v43, 4294901760
    %v427 = vsub.f32 %v43, %v426
    %v428 = vand.u32 %v427, 4294901760
    %v429 = vsub.f32 %v427, %v428
    %v430 = vand.u32 %v429, 4294901760
    %431 = vmatpush1.msra.mxu0 %v430
    %432 = vmatprep.subr.mxu0 0.0
    %v433 = vand.u32 %v44, 4294901760
    %v434 = vsub.f32 %v44, %v433
    %v435 = vand.u32 %v434, 4294901760
    %v436 = vsub.f32 %v434, %v435
    %v437 = vand.u32 %v436, 4294901760
    %438 = vmatpush1.msra.mxu0 %v437
    %439 = vmatprep.subr.mxu0 0.0
    %v440 = vand.u32 %v45, 4294901760
    %v441 = vsub.f32 %v45, %v440
    %v442 = vand.u32 %v441, 4294901760
    %v443 = vsub.f32 %v441, %v442
    %v444 = vand.u32 %v443, 4294901760
    %445 = vmatpush1.msra.mxu0 %v444
    %446 = vmatprep.subr.mxu0 0.0
    %v447 = vand.u32 %v46, 4294901760
    %v448 = vsub.f32 %v46, %v447
    %v449 = vand.u32 %v448, 4294901760
    %v450 = vsub.f32 %v448, %v449
    %v451 = vand.u32 %v450, 4294901760
    %452 = vmatpush1.msra.mxu0 %v451
    %453 = vmatprep.subr.mxu0 0.0
    %v454 = vand.u32 %v47, 4294901760
    %v455 = vsub.f32 %v47, %v454
    %v456 = vand.u32 %v455, 4294901760
    %v457 = vsub.f32 %v455, %v456
    %v458 = vand.u32 %v457, 4294901760
    %459 = vmatpush1.msra.mxu0 %v458
    %460 = vmatprep.subr.mxu0 0.0
    %v461 = vand.u32 %v48, 4294901760
    %v462 = vsub.f32 %v48, %v461
    %v463 = vand.u32 %v462, 4294901760
    %v464 = vsub.f32 %v462, %v463
    %v465 = vand.u32 %v464, 4294901760
    %466 = vmatpush1.msra.mxu0 %v465
    %467 = vmatprep.subr.mxu0 0.0
    %v468 = vand.u32 %v49, 4294901760
    %v469 = vsub.f32 %v49, %v468
    %v470 = vand.u32 %v469, 4294901760
    %v471 = vsub.f32 %v469, %v470
    %v472 = vand.u32 %v471, 4294901760
    %473 = vmatpush1.msra.mxu0 %v472
    %474 = vmatprep.subr.mxu0 0.0
    %v475 = vand.u32 %v50, 4294901760
    %v476 = vsub.f32 %v50, %v475
    %v477 = vand.u32 %v476, 4294901760
    %v478 = vsub.f32 %v476, %v477
    %v479 = vand.u32 %v478, 4294901760
    %480 = vmatpush1.msra.mxu0 %v479
    %481 = vmatprep.subr.mxu0 0.0
    %v482 = vand.u32 %v51, 4294901760
    %v483 = vsub.f32 %v51, %v482
    %v484 = vand.u32 %v483, 4294901760
    %v485 = vsub.f32 %v483, %v484
    %v486 = vand.u32 %v485, 4294901760
    %487 = vmatpush1.msra.mxu0 %v486
    %488 = vmatprep.subr.mxu0 0.0
    %v489 = vand.u32 %v52, 4294901760
    %v490 = vsub.f32 %v52, %v489
    %v491 = vand.u32 %v490, 4294901760
    %v492 = vsub.f32 %v490, %v491
    %v493 = vand.u32 %v492, 4294901760
    %494 = vmatpush1.msra.mxu0 %v493
    %495 = vmatprep.subr.mxu0 0.0
    %v496 = vand.u32 %v53, 4294901760
    %v497 = vsub.f32 %v53, %v496
    %v498 = vand.u32 %v497, 4294901760
    %v499 = vsub.f32 %v497, %v498
    %v500 = vand.u32 %v499, 4294901760
    %501 = vmatpush1.msra.mxu0 %v500
    %502 = vmatprep.subr.mxu0 0.0
    %v503 = vand.u32 %v54, 4294901760
    %v504 = vsub.f32 %v54, %v503
    %v505 = vand.u32 %v504, 4294901760
    %v506 = vsub.f32 %v504, %v505
    %v507 = vand.u32 %v506, 4294901760
    %508 = vmatpush1.msra.mxu0 %v507
    %509 = vmatprep.subr.mxu0 0.0
    %v510 = vand.u32 %v55, 4294901760
    %v511 = vsub.f32 %v55, %v510
    %v512 = vand.u32 %v511, 4294901760
    %v513 = vsub.f32 %v511, %v512
    %v514 = vand.u32 %v513, 4294901760
    %515 = vmatpush1.msra.mxu0 %v514
    %516 = vmatprep.subr.mxu0 0.0
    %v517 = vand.u32 %v56, 4294901760
    %v518 = vsub.f32 %v56, %v517
    %v519 = vand.u32 %v518, 4294901760
    %v520 = vsub.f32 %v518, %v519
    %v521 = vand.u32 %v520, 4294901760
    %522 = vmatpush1.msra.mxu0 %v521
    %523 = vmatprep.subr.mxu0 0.0
    %v524 = vand.u32 %v57, 4294901760
    %v525 = vsub.f32 %v57, %v524
    %v526 = vand.u32 %v525, 4294901760
    %v527 = vsub.f32 %v525, %v526
    %v528 = vand.u32 %v527, 4294901760
    %529 = vmatpush1.msra.mxu0 %v528
    %530 = vmatprep.subr.mxu0 0.0
    %v531 = vand.u32 %v58, 4294901760
    %v532 = vsub.f32 %v58, %v531
    %v533 = vand.u32 %v532, 4294901760
    %v534 = vsub.f32 %v532, %v533
    %v535 = vand.u32 %v534, 4294901760
    %536 = vmatpush1.msra.mxu0 %v535
    %537 = vmatprep.subr.mxu0 0.0
    %v538 = vand.u32 %v59, 4294901760
    %v539 = vsub.f32 %v59, %v538
    %v540 = vand.u32 %v539, 4294901760
    %v541 = vsub.f32 %v539, %v540
    %v542 = vand.u32 %v541, 4294901760
    %543 = vmatpush1.msra.mxu0 %v542
    %v544 = vand.u32 %v88, 4294901760
    %545 = vmatprep.mubr.f32.mxu0 %v544
    %v546 = vand.u32 %v87, 4294901760
    %547 = vmatmul.mubr.f32.gmra.mrb[0].mxu0 %v546
    %v548 = vpop.f32.mrb[0].mxu0
    %v549 = vadd.f32 %v212, %v548
    %v550 = vpop.f32.mrb[0].mxu0
    %v551 = vand.u32 %v90, 4294901760
    %552 = vmatprep.mubr.f32.mxu0 %v551
    %v553 = vand.u32 %v89, 4294901760
    %554 = vmatmul.mubr.f32.gmra.mrb[0].mxu0 %v553
    %v555 = vpop.f32.mrb[0].mxu0
    %v556 = vadd.f32 %v227, %v555
    %v557 = vpop.f32.mrb[0].mxu0
    %v558 = vand.u32 %v92, 4294901760
    %559 = vmatprep.mubr.f32.mxu0 %v558
    %v560 = vand.u32 %v91, 4294901760
    %561 = vmatmul.mubr.f32.gmra.mrb[0].mxu0 %v560
    %v562 = vpop.f32.mrb[0].mxu0
    %v563 = vadd.f32 %v242, %v562
    %v564 = vpop.f32.mrb[0].mxu0
    %v565 = vand.u32 %v94, 4294901760
    %566 = vmatprep.mubr.f32.mxu0 %v565
    %v567 = vand.u32 %v93, 4294901760
    %568 = vmatmul.mubr.f32.gmra.mrb[0].mxu0 %v567
    %v569 = vpop.f32.mrb[0].mxu0
    %v570 = vadd.f32 %v257, %v569
    %v571 = vpop.f32.mrb[0].mxu0
    %v572 = vand.u32 %v96, 4294901760
    %573 = vmatprep.mubr.f32.mxu0 %v572
    %v574 = vand.u32 %v95, 4294901760
    %575 = vmatmul.mubr.f32.gmra.mrb[0].mxu0 %v574
    %v576 = vpop.f32.mrb[0].mxu0
    %v577 = vadd.f32 %v272, %v576
    %v578 = vpop.f32.mrb[0].mxu0
    %v579 = vand.u32 %v98, 4294901760
    %580 = vmatprep.mubr.f32.mxu0 %v579
    %v581 = vand.u32 %v97, 4294901760
    %582 = vmatmul.mubr.f32.gmra.mrb[0].mxu0 %v581
    %v583 = vpop.f32.mrb[0].mxu0
    %v584 = vadd.f32 %v287, %v583
    %v585 = vpop.f32.mrb[0].mxu0
    %v586 = vand.u32 %v100, 4294901760
    %587 = vmatprep.mubr.f32.mxu0 %v586
    %v588 = vand.u32 %v99, 4294901760
    %589 = vmatmul.mubr.f32.gmra.mrb[0].mxu0 %v588
    %v590 = vpop.f32.mrb[0].mxu0
    %v591 = vadd.f32 %v302, %v590
    %v592 = vpop.f32.mrb[0].mxu0
    %v593 = vand.u32 %v102, 4294901760
    %594 = vmatprep.mubr.f32.mxu0 %v593
    %v595 = vand.u32 %v101, 4294901760
    %596 = vmatmul.mubr.f32.gmra.mrb[0].mxu0 %v595
    %v597 = vpop.f32.mrb[0].mxu0
    %v598 = vadd.f32 %v317, %v597
    %v599 = vpop.f32.mrb[0].mxu0
    %600 = vdwg.mxu0
    %601 = vmatprep.subr.mxu0 0.0
    %v602 = vand.u32 %v28, 4294901760
    %v603 = vsub.f32 %v28, %v602
    %604 = vmatpush1.msra.mxu0 %v603
    %605 = vmatprep.subr.mxu0 0.0
    %v606 = vand.u32 %v29, 4294901760
    %v607 = vsub.f32 %v29, %v606
    %608 = vmatpush1.msra.mxu0 %v607
    %609 = vmatprep.subr.mxu0 0.0
    %v610 = vand.u32 %v30, 4294901760
    %v611 = vsub.f32 %v30, %v610
    %612 = vmatpush1.msra.mxu0 %v611
    %613 = vmatprep.subr.mxu0 0.0
    %v614 = vand.u32 %v31, 4294901760
    %v615 = vsub.f32 %v31, %v614
    %616 = vmatpush1.msra.mxu0 %v615
    %617 = vmatprep.subr.mxu0 0.0
    %v618 = vand.u32 %v32, 4294901760
    %v619 = vsub.f32 %v32, %v618
    %620 = vmatpush1.msra.mxu0 %v619
    %621 = vmatprep.subr.mxu0 0.0
    %v622 = vand.u32 %v33, 4294901760
    %v623 = vsub.f32 %v33, %v622
    %624 = vmatpush1.msra.mxu0 %v623
    %625 = vmatprep.subr.mxu0 0.0
    %v626 = vand.u32 %v34, 4294901760
    %v627 = vsub.f32 %v34, %v626
    %628 = vmatpush1.msra.mxu0 %v627
    %629 = vmatprep.subr.mxu0 0.0
    %v630 = vand.u32 %v35, 4294901760
    %v631 = vsub.f32 %v35, %v630
    %632 = vmatpush1.msra.mxu0 %v631
    %633 = vmatprep.subr.mxu0 0.0
    %v634 = vand.u32 %v36, 4294901760
    %v635 = vsub.f32 %v36, %v634
    %636 = vmatpush1.msra.mxu0 %v635
    %637 = vmatprep.subr.mxu0 0.0
    %v638 = vand.u32 %v37, 4294901760
    %v639 = vsub.f32 %v37, %v638
    %640 = vmatpush1.msra.mxu0 %v639
    %641 = vmatprep.subr.mxu0 0.0
    %v642 = vand.u32 %v38, 4294901760
    %v643 = vsub.f32 %v38, %v642
    %644 = vmatpush1.msra.mxu0 %v643
    %645 = vmatprep.subr.mxu0 0.0
    %v646 = vand.u32 %v39, 4294901760
    %v647 = vsub.f32 %v39, %v646
    %648 = vmatpush1.msra.mxu0 %v647
    %649 = vmatprep.subr.mxu0 0.0
    %v650 = vand.u32 %v40, 4294901760
    %v651 = vsub.f32 %v40, %v650
    %652 = vmatpush1.msra.mxu0 %v651
    %653 = vmatprep.subr.mxu0 0.0
    %v654 = vand.u32 %v41, 4294901760
    %v655 = vsub.f32 %v41, %v654
    %656 = vmatpush1.msra.mxu0 %v655
    %657 = vmatprep.subr.mxu0 0.0
    %v658 = vand.u32 %v42, 4294901760
    %v659 = vsub.f32 %v42, %v658
    %660 = vmatpush1.msra.mxu0 %v659
    %661 = vmatprep.subr.mxu0 0.0
    %v662 = vand.u32 %v43, 4294901760
    %v663 = vsub.f32 %v43, %v662
    %664 = vmatpush1.msra.mxu0 %v663
    %665 = vmatprep.subr.mxu0 0.0
    %v666 = vand.u32 %v44, 4294901760
    %v667 = vsub.f32 %v44, %v666
    %668 = vmatpush1.msra.mxu0 %v667
    %669 = vmatprep.subr.mxu0 0.0
    %v670 = vand.u32 %v45, 4294901760
    %v671 = vsub.f32 %v45, %v670
    %672 = vmatpush1.msra.mxu0 %v671
    %673 = vmatprep.subr.mxu0 0.0
    %v674 = vand.u32 %v46, 4294901760
    %v675 = vsub.f32 %v46, %v674
    %676 = vmatpush1.msra.mxu0 %v675
    %677 = vmatprep.subr.mxu0 0.0
    %v678 = vand.u32 %v47, 4294901760
    %v679 = vsub.f32 %v47, %v678
    %680 = vmatpush1.msra.mxu0 %v679
    %681 = vmatprep.subr.mxu0 0.0
    %v682 = vand.u32 %v48, 4294901760
    %v683 = vsub.f32 %v48, %v682
    %684 = vmatpush1.msra.mxu0 %v683
    %685 = vmatprep.subr.mxu0 0.0
    %v686 = vand.u32 %v49, 4294901760
    %v687 = vsub.f32 %v49, %v686
    %688 = vmatpush1.msra.mxu0 %v687
    %689 = vmatprep.subr.mxu0 0.0
    %v690 = vand.u32 %v50, 4294901760
    %v691 = vsub.f32 %v50, %v690
    %692 = vmatpush1.msra.mxu0 %v691
    %693 = vmatprep.subr.mxu0 0.0
    %v694 = vand.u32 %v51, 4294901760
    %v695 = vsub.f32 %v51, %v694
    %696 = vmatpush1.msra.mxu0 %v695
    %697 = vmatprep.subr.mxu0 0.0
    %v698 = vand.u32 %v52, 4294901760
    %v699 = vsub.f32 %v52, %v698
    %700 = vmatpush1.msra.mxu0 %v699
    %701 = vmatprep.subr.mxu0 0.0
    %v702 = vand.u32 %v53, 4294901760
    %v703 = vsub.f32 %v53, %v702
    %704 = vmatpush1.msra.mxu0 %v703
    %705 = vmatprep.subr.mxu0 0.0
    %v706 = vand.u32 %v54, 4294901760
    %v707 = vsub.f32 %v54, %v706
    %708 = vmatpush1.msra.mxu0 %v707
    %709 = vmatprep.subr.mxu0 0.0
    %v710 = vand.u32 %v55, 4294901760
    %v711 = vsub.f32 %v55, %v710
    %712 = vmatpush1.msra.mxu0 %v711
    %713 = vmatprep.subr.mxu0 0.0
    %v714 = vand.u32 %v56, 4294901760
    %v715 = vsub.f32 %v56, %v714
    %716 = vmatpush1.msra.mxu0 %v715
    %717 = vmatprep.subr.mxu0 0.0
    %v718 = vand.u32 %v57, 4294901760
    %v719 = vsub.f32 %v57, %v718
    %720 = vmatpush1.msra.mxu0 %v719
    %721 = vmatprep.subr.mxu0 0.0
    %v722 = vand.u32 %v58, 4294901760
    %v723 = vsub.f32 %v58, %v722
    %724 = vmatpush1.msra.mxu0 %v723
    %725 = vmatprep.subr.mxu0 0.0
    %v726 = vand.u32 %v59, 4294901760
    %v727 = vsub.f32 %v59, %v726
    %728 = vmatpush1.msra.mxu0 %v727
    %v729 = vand.u32 %v88, 4294901760
    %v730 = vsub.f32 %v88, %v729
    %731 = vmatprep.mubr.f32.mxu0 %v730
    %v732 = vand.u32 %v87, 4294901760
    %v733 = vsub.f32 %v87, %v732
    %734 = vmatmul.mubr.f32.gmra.mrb[0].mxu0 %v733
    %v735 = vpop.f32.mrb[0].mxu0
    %v736 = vadd.f32 %v549, %v735
    %v737 = vpop.f32.mrb[0].mxu0
    %v738 = vand.u32 %v90, 4294901760
    %v739 = vsub.f32 %v90, %v738
    %740 = vmatprep.mubr.f32.mxu0 %v739
    %v741 = vand.u32 %v89, 4294901760
    %v742 = vsub.f32 %v89, %v741
    %743 = vmatmul.mubr.f32.gmra.mrb[0].mxu0 %v742
    %v744 = vpop.f32.mrb[0].mxu0
    %v745 = vadd.f32 %v556, %v744
    %v746 = vpop.f32.mrb[0].mxu0
    %v747 = vand.u32 %v92, 4294901760
    %v748 = vsub.f32 %v92, %v747
    %749 = vmatprep.mubr.f32.mxu0 %v748
    %v750 = vand.u32 %v91, 4294901760
    %v751 = vsub.f32 %v91, %v750
    %752 = vmatmul.mubr.f32.gmra.mrb[0].mxu0 %v751
    %v753 = vpop.f32.mrb[0].mxu0
    %v754 = vadd.f32 %v563, %v753
    %v755 = vpop.f32.mrb[0].mxu0
    %v756 = vand.u32 %v94, 4294901760
    %v757 = vsub.f32 %v94, %v756
    %758 = vmatprep.mubr.f32.mxu0 %v757
    %v759 = vand.u32 %v93, 4294901760
    %v760 = vsub.f32 %v93, %v759
    %761 = vmatmul.mubr.f32.gmra.mrb[0].mxu0 %v760
    %v762 = vpop.f32.mrb[0].mxu0
    %v763 = vadd.f32 %v570, %v762
    %v764 = vpop.f32.mrb[0].mxu0
    %v765 = vand.u32 %v96, 4294901760
    %v766 = vsub.f32 %v96, %v765
    %767 = vmatprep.mubr.f32.mxu0 %v766
    %v768 = vand.u32 %v95, 4294901760
    %v769 = vsub.f32 %v95, %v768
    %770 = vmatmul.mubr.f32.gmra.mrb[0].mxu0 %v769
    %v771 = vpop.f32.mrb[0].mxu0
    %v772 = vadd.f32 %v577, %v771
    %v773 = vpop.f32.mrb[0].mxu0
    %v774 = vand.u32 %v98, 4294901760
    %v775 = vsub.f32 %v98, %v774
    %776 = vmatprep.mubr.f32.mxu0 %v775
    %v777 = vand.u32 %v97, 4294901760
    %v778 = vsub.f32 %v97, %v777
    %779 = vmatmul.mubr.f32.gmra.mrb[0].mxu0 %v778
    %v780 = vpop.f32.mrb[0].mxu0
    %v781 = vadd.f32 %v584, %v780
    %v782 = vpop.f32.mrb[0].mxu0
    %v783 = vand.u32 %v100, 4294901760
    %v784 = vsub.f32 %v100, %v783
    %785 = vmatprep.mubr.f32.mxu0 %v784
    %v786 = vand.u32 %v99, 4294901760
    %v787 = vsub.f32 %v99, %v786
    %788 = vmatmul.mubr.f32.gmra.mrb[0].mxu0 %v787
    %v789 = vpop.f32.mrb[0].mxu0
    %v790 = vadd.f32 %v591, %v789
    %v791 = vpop.f32.mrb[0].mxu0
    %v792 = vand.u32 %v102, 4294901760
    %v793 = vsub.f32 %v102, %v792
    %794 = vmatprep.mubr.f32.mxu0 %v793
    %v795 = vand.u32 %v101, 4294901760
    %v796 = vsub.f32 %v101, %v795
    %797 = vmatmul.mubr.f32.gmra.mrb[0].mxu0 %v796
    %v798 = vpop.f32.mrb[0].mxu0
    %v799 = vadd.f32 %v598, %v798
    %v800 = vpop.f32.mrb[0].mxu0
    %801 = vdwg.mxu0
    %802 = vmatprep.subr.mxu0 0.0
    %v803 = vand.u32 %v28, 4294901760
    %804 = vmatpush1.msra.mxu0 %v803
    %805 = vmatprep.subr.mxu0 0.0
    %v806 = vand.u32 %v29, 4294901760
    %807 = vmatpush1.msra.mxu0 %v806
    %808 = vmatprep.subr.mxu0 0.0
    %v809 = vand.u32 %v30, 4294901760
    %810 = vmatpush1.msra.mxu0 %v809
    %811 = vmatprep.subr.mxu0 0.0
    %v812 = vand.u32 %v31, 4294901760
    %813 = vmatpush1.msra.mxu0 %v812
    %814 = vmatprep.subr.mxu0 0.0
    %v815 = vand.u32 %v32, 4294901760
    %816 = vmatpush1.msra.mxu0 %v815
    %817 = vmatprep.subr.mxu0 0.0
    %v818 = vand.u32 %v33, 4294901760
    %819 = vmatpush1.msra.mxu0 %v818
    %820 = vmatprep.subr.mxu0 0.0
    %v821 = vand.u32 %v34, 4294901760
    %822 = vmatpush1.msra.mxu0 %v821
    %823 = vmatprep.subr.mxu0 0.0
    %v824 = vand.u32 %v35, 4294901760
    %825 = vmatpush1.msra.mxu0 %v824
    %826 = vmatprep.subr.mxu0 0.0
    %v827 = vand.u32 %v36, 4294901760
    %828 = vmatpush1.msra.mxu0 %v827
    %829 = vmatprep.subr.mxu0 0.0
    %v830 = vand.u32 %v37, 4294901760
    %831 = vmatpush1.msra.mxu0 %v830
    %832 = vmatprep.subr.mxu0 0.0
    %v833 = vand.u32 %v38, 4294901760
    %834 = vmatpush1.msra.mxu0 %v833
    %835 = vmatprep.subr.mxu0 0.0
    %v836 = vand.u32 %v39, 4294901760
    %837 = vmatpush1.msra.mxu0 %v836
    %838 = vmatprep.subr.mxu0 0.0
    %v839 = vand.u32 %v40, 4294901760
    %840 = vmatpush1.msra.mxu0 %v839
    %841 = vmatprep.subr.mxu0 0.0
    %v842 = vand.u32 %v41, 4294901760
    %843 = vmatpush1.msra.mxu0 %v842
    %844 = vmatprep.subr.mxu0 0.0
    %v845 = vand.u32 %v42, 4294901760
    %846 = vmatpush1.msra.mxu0 %v845
    %847 = vmatprep.subr.mxu0 0.0
    %v848 = vand.u32 %v43, 4294901760
    %849 = vmatpush1.msra.mxu0 %v848
    %850 = vmatprep.subr.mxu0 0.0
    %v851 = vand.u32 %v44, 4294901760
    %852 = vmatpush1.msra.mxu0 %v851
    %853 = vmatprep.subr.mxu0 0.0
    %v854 = vand.u32 %v45, 4294901760
    %855 = vmatpush1.msra.mxu0 %v854
    %856 = vmatprep.subr.mxu0 0.0
    %v857 = vand.u32 %v46, 4294901760
    %858 = vmatpush1.msra.mxu0 %v857
    %859 = vmatprep.subr.mxu0 0.0
    %v860 = vand.u32 %v47, 4294901760
    %861 = vmatpush1.msra.mxu0 %v860
    %862 = vmatprep.subr.mxu0 0.0
    %v863 = vand.u32 %v48, 4294901760
    %864 = vmatpush1.msra.mxu0 %v863
    %865 = vmatprep.subr.mxu0 0.0
    %v866 = vand.u32 %v49, 4294901760
    %867 = vmatpush1.msra.mxu0 %v866
    %868 = vmatprep.subr.mxu0 0.0
    %v869 = vand.u32 %v50, 4294901760
    %870 = vmatpush1.msra.mxu0 %v869
    %871 = vmatprep.subr.mxu0 0.0
    %v872 = vand.u32 %v51, 4294901760
    %873 = vmatpush1.msra.mxu0 %v872
    %874 = vmatprep.subr.mxu0 0.0
    %v875 = vand.u32 %v52, 4294901760
    %876 = vmatpush1.msra.mxu0 %v875
    %877 = vmatprep.subr.mxu0 0.0
    %v878 = vand.u32 %v53, 4294901760
    %879 = vmatpush1.msra.mxu0 %v878
    %880 = vmatprep.subr.mxu0 0.0
    %v881 = vand.u32 %v54, 4294901760
    %882 = vmatpush1.msra.mxu0 %v881
    %883 = vmatprep.subr.mxu0 0.0
    %v884 = vand.u32 %v55, 4294901760
    %885 = vmatpush1.msra.mxu0 %v884
    %886 = vmatprep.subr.mxu0 0.0
    %v887 = vand.u32 %v56, 4294901760
    %888 = vmatpush1.msra.mxu0 %v887
    %889 = vmatprep.subr.mxu0 0.0
    %v890 = vand.u32 %v57, 4294901760
    %891 = vmatpush1.msra.mxu0 %v890
    %892 = vmatprep.subr.mxu0 0.0
    %v893 = vand.u32 %v58, 4294901760
    %894 = vmatpush1.msra.mxu0 %v893
    %895 = vmatprep.subr.mxu0 0.0
    %v896 = vand.u32 %v59, 4294901760
    %897 = vmatpush1.msra.mxu0 %v896
    %v898 = vand.u32 %v88, 4294901760
    %v899 = vsub.f32 %v88, %v898
    %v900 = vand.u32 %v899, 4294901760
    %901 = vmatprep.mubr.f32.mxu0 %v900
    %v902 = vand.u32 %v87, 4294901760
    %v903 = vsub.f32 %v87, %v902
    %v904 = vand.u32 %v903, 4294901760
    %905 = vmatmul.mubr.f32.gmra.mrb[0].mxu0 %v904
    %v906 = vpop.f32.mrb[0].mxu0
    %v907 = vadd.f32 %v736, %v906
    %v908 = vpop.f32.mrb[0].mxu0
    %v909 = vand.u32 %v90, 4294901760
    %v910 = vsub.f32 %v90, %v909
    %v911 = vand.u32 %v910, 4294901760
    %912 = vmatprep.mubr.f32.mxu0 %v911
    %v913 = vand.u32 %v89, 4294901760
    %v914 = vsub.f32 %v89, %v913
    %v915 = vand.u32 %v914, 4294901760
    %916 = vmatmul.mubr.f32.gmra.mrb[0].mxu0 %v915
    %v917 = vpop.f32.mrb[0].mxu0
    %v918 = vadd.f32 %v745, %v917
    %v919 = vpop.f32.mrb[0].mxu0
    %v920 = vand.u32 %v92, 4294901760
    %v921 = vsub.f32 %v92, %v920
    %v922 = vand.u32 %v921, 4294901760
    %923 = vmatprep.mubr.f32.mxu0 %v922
    %v924 = vand.u32 %v91, 4294901760
    %v925 = vsub.f32 %v91, %v924
    %v926 = vand.u32 %v925, 4294901760
    %927 = vmatmul.mubr.f32.gmra.mrb[0].mxu0 %v926
    %v928 = vpop.f32.mrb[0].mxu0
    %v929 = vadd.f32 %v754, %v928
    %v930 = vpop.f32.mrb[0].mxu0
    %v931 = vand.u32 %v94, 4294901760
    %v932 = vsub.f32 %v94, %v931
    %v933 = vand.u32 %v932, 4294901760
    %934 = vmatprep.mubr.f32.mxu0 %v933
    %v935 = vand.u32 %v93, 4294901760
    %v936 = vsub.f32 %v93, %v935
    %v937 = vand.u32 %v936, 4294901760
    %938 = vmatmul.mubr.f32.gmra.mrb[0].mxu0 %v937
    %v939 = vpop.f32.mrb[0].mxu0
    %v940 = vadd.f32 %v763, %v939
    %v941 = vpop.f32.mrb[0].mxu0
    %v942 = vand.u32 %v96, 4294901760
    %v943 = vsub.f32 %v96, %v942
    %v944 = vand.u32 %v943, 4294901760
    %945 = vmatprep.mubr.f32.mxu0 %v944
    %v946 = vand.u32 %v95, 4294901760
    %v947 = vsub.f32 %v95, %v946
    %v948 = vand.u32 %v947, 4294901760
    %949 = vmatmul.mubr.f32.gmra.mrb[0].mxu0 %v948
    %v950 = vpop.f32.mrb[0].mxu0
    %v951 = vadd.f32 %v772, %v950
    %v952 = vpop.f32.mrb[0].mxu0
    %v953 = vand.u32 %v98, 4294901760
    %v954 = vsub.f32 %v98, %v953
    %v955 = vand.u32 %v954, 4294901760
    %956 = vmatprep.mubr.f32.mxu0 %v955
    %v957 = vand.u32 %v97, 4294901760
    %v958 = vsub.f32 %v97, %v957
    %v959 = vand.u32 %v958, 4294901760
    %960 = vmatmul.mubr.f32.gmra.mrb[0].mxu0 %v959
    %v961 = vpop.f32.mrb[0].mxu0
    %v962 = vadd.f32 %v781, %v961
    %v963 = vpop.f32.mrb[0].mxu0
    %v964 = vand.u32 %v100, 4294901760
    %v965 = vsub.f32 %v100, %v964
    %v966 = vand.u32 %v965, 4294901760
    %967 = vmatprep.mubr.f32.mxu0 %v966
    %v968 = vand.u32 %v99, 4294901760
    %v969 = vsub.f32 %v99, %v968
    %v970 = vand.u32 %v969, 4294901760
    %971 = vmatmul.mubr.f32.gmra.mrb[0].mxu0 %v970
    %v972 = vpop.f32.mrb[0].mxu0
    %v973 = vadd.f32 %v790, %v972
    %v974 = vpop.f32.mrb[0].mxu0
    %v975 = vand.u32 %v102, 4294901760
    %v976 = vsub.f32 %v102, %v975
    %v977 = vand.u32 %v976, 4294901760
    %978 = vmatprep.mubr.f32.mxu0 %v977
    %v979 = vand.u32 %v101, 4294901760
    %v980 = vsub.f32 %v101, %v979
    %v981 = vand.u32 %v980, 4294901760
    %982 = vmatmul.mubr.f32.gmra.mrb[0].mxu0 %v981
    %v983 = vpop.f32.mrb[0].mxu0
    %v984 = vadd.f32 %v799, %v983
    %v985 = vpop.f32.mrb[0].mxu0
    %986 = vdwg.mxu0
    %987 = vmatprep.subr.mxu0 0.0
    %v988 = vand.u32 %v28, 4294901760
    %v989 = vsub.f32 %v28, %v988
    %v990 = vand.u32 %v989, 4294901760
    %991 = vmatpush1.msra.mxu0 %v990
    %992 = vmatprep.subr.mxu0 0.0
    %v993 = vand.u32 %v29, 4294901760
    %v994 = vsub.f32 %v29, %v993
    %v995 = vand.u32 %v994, 4294901760
    %996 = vmatpush1.msra.mxu0 %v995
    %997 = vmatprep.subr.mxu0 0.0
    %v998 = vand.u32 %v30, 4294901760
    %v999 = vsub.f32 %v30, %v998
    %v1000 = vand.u32 %v999, 4294901760
    %1001 = vmatpush1.msra.mxu0 %v1000
    %1002 = vmatprep.subr.mxu0 0.0
    %v1003 = vand.u32 %v31, 4294901760
    %v1004 = vsub.f32 %v31, %v1003
    %v1005 = vand.u32 %v1004, 4294901760
    %1006 = vmatpush1.msra.mxu0 %v1005
    %1007 = vmatprep.subr.mxu0 0.0
    %v1008 = vand.u32 %v32, 4294901760
    %v1009 = vsub.f32 %v32, %v1008
    %v1010 = vand.u32 %v1009, 4294901760
    %1011 = vmatpush1.msra.mxu0 %v1010
    %1012 = vmatprep.subr.mxu0 0.0
    %v1013 = vand.u32 %v33, 4294901760
    %v1014 = vsub.f32 %v33, %v1013
    %v1015 = vand.u32 %v1014, 4294901760
    %1016 = vmatpush1.msra.mxu0 %v1015
    %1017 = vmatprep.subr.mxu0 0.0
    %v1018 = vand.u32 %v34, 4294901760
    %v1019 = vsub.f32 %v34, %v1018
    %v1020 = vand.u32 %v1019, 4294901760
    %1021 = vmatpush1.msra.mxu0 %v1020
    %1022 = vmatprep.subr.mxu0 0.0
    %v1023 = vand.u32 %v35, 4294901760
    %v1024 = vsub.f32 %v35, %v1023
    %v1025 = vand.u32 %v1024, 4294901760
    %1026 = vmatpush1.msra.mxu0 %v1025
    %1027 = vmatprep.subr.mxu0 0.0
    %v1028 = vand.u32 %v36, 4294901760
    %v1029 = vsub.f32 %v36, %v1028
    %v1030 = vand.u32 %v1029, 4294901760
    %1031 = vmatpush1.msra.mxu0 %v1030
    %1032 = vmatprep.subr.mxu0 0.0
    %v1033 = vand.u32 %v37, 4294901760
    %v1034 = vsub.f32 %v37, %v1033
    %v1035 = vand.u32 %v1034, 4294901760
    %1036 = vmatpush1.msra.mxu0 %v1035
    %1037 = vmatprep.subr.mxu0 0.0
    %v1038 = vand.u32 %v38, 4294901760
    %v1039 = vsub.f32 %v38, %v1038
    %v1040 = vand.u32 %v1039, 4294901760
    %1041 = vmatpush1.msra.mxu0 %v1040
    %1042 = vmatprep.subr.mxu0 0.0
    %v1043 = vand.u32 %v39, 4294901760
    %v1044 = vsub.f32 %v39, %v1043
    %v1045 = vand.u32 %v1044, 4294901760
    %1046 = vmatpush1.msra.mxu0 %v1045
    %1047 = vmatprep.subr.mxu0 0.0
    %v1048 = vand.u32 %v40, 4294901760
    %v1049 = vsub.f32 %v40, %v1048
    %v1050 = vand.u32 %v1049, 4294901760
    %1051 = vmatpush1.msra.mxu0 %v1050
    %1052 = vmatprep.subr.mxu0 0.0
    %v1053 = vand.u32 %v41, 4294901760
    %v1054 = vsub.f32 %v41, %v1053
    %v1055 = vand.u32 %v1054, 4294901760
    %1056 = vmatpush1.msra.mxu0 %v1055
    %1057 = vmatprep.subr.mxu0 0.0
    %v1058 = vand.u32 %v42, 4294901760
    %v1059 = vsub.f32 %v42, %v1058
    %v1060 = vand.u32 %v1059, 4294901760
    %1061 = vmatpush1.msra.mxu0 %v1060
    %1062 = vmatprep.subr.mxu0 0.0
    %v1063 = vand.u32 %v43, 4294901760
    %v1064 = vsub.f32 %v43, %v1063
    %v1065 = vand.u32 %v1064, 4294901760
    %1066 = vmatpush1.msra.mxu0 %v1065
    %1067 = vmatprep.subr.mxu0 0.0
    %v1068 = vand.u32 %v44, 4294901760
    %v1069 = vsub.f32 %v44, %v1068
    %v1070 = vand.u32 %v1069, 4294901760
    %1071 = vmatpush1.msra.mxu0 %v1070
    %1072 = vmatprep.subr.mxu0 0.0
    %v1073 = vand.u32 %v45, 4294901760
    %v1074 = vsub.f32 %v45, %v1073
    %v1075 = vand.u32 %v1074, 4294901760
    %1076 = vmatpush1.msra.mxu0 %v1075
    %1077 = vmatprep.subr.mxu0 0.0
    %v1078 = vand.u32 %v46, 4294901760
    %v1079 = vsub.f32 %v46, %v1078
    %v1080 = vand.u32 %v1079, 4294901760
    %1081 = vmatpush1.msra.mxu0 %v1080
    %1082 = vmatprep.subr.mxu0 0.0
    %v1083 = vand.u32 %v47, 4294901760
    %v1084 = vsub.f32 %v47, %v1083
    %v1085 = vand.u32 %v1084, 4294901760
    %1086 = vmatpush1.msra.mxu0 %v1085
    %1087 = vmatprep.subr.mxu0 0.0
    %v1088 = vand.u32 %v48, 4294901760
    %v1089 = vsub.f32 %v48, %v1088
    %v1090 = vand.u32 %v1089, 4294901760
    %1091 = vmatpush1.msra.mxu0 %v1090
    %1092 = vmatprep.subr.mxu0 0.0
    %v1093 = vand.u32 %v49, 4294901760
    %v1094 = vsub.f32 %v49, %v1093
    %v1095 = vand.u32 %v1094, 4294901760
    %1096 = vmatpush1.msra.mxu0 %v1095
    %1097 = vmatprep.subr.mxu0 0.0
    %v1098 = vand.u32 %v50, 4294901760
    %v1099 = vsub.f32 %v50, %v1098
    %v1100 = vand.u32 %v1099, 4294901760
    %1101 = vmatpush1.msra.mxu0 %v1100
    %1102 = vmatprep.subr.mxu0 0.0
    %v1103 = vand.u32 %v51, 4294901760
    %v1104 = vsub.f32 %v51, %v1103
    %v1105 = vand.u32 %v1104, 4294901760
    %1106 = vmatpush1.msra.mxu0 %v1105
    %1107 = vmatprep.subr.mxu0 0.0
    %v1108 = vand.u32 %v52, 4294901760
    %v1109 = vsub.f32 %v52, %v1108
    %v1110 = vand.u32 %v1109, 4294901760
    %1111 = vmatpush1.msra.mxu0 %v1110
    %1112 = vmatprep.subr.mxu0 0.0
    %v1113 = vand.u32 %v53, 4294901760
    %v1114 = vsub.f32 %v53, %v1113
    %v1115 = vand.u32 %v1114, 4294901760
    %1116 = vmatpush1.msra.mxu0 %v1115
    %1117 = vmatprep.subr.mxu0 0.0
    %v1118 = vand.u32 %v54, 4294901760
    %v1119 = vsub.f32 %v54, %v1118
    %v1120 = vand.u32 %v1119, 4294901760
    %1121 = vmatpush1.msra.mxu0 %v1120
    %1122 = vmatprep.subr.mxu0 0.0
    %v1123 = vand.u32 %v55, 4294901760
    %v1124 = vsub.f32 %v55, %v1123
    %v1125 = vand.u32 %v1124, 4294901760
    %1126 = vmatpush1.msra.mxu0 %v1125
    %1127 = vmatprep.subr.mxu0 0.0
    %v1128 = vand.u32 %v56, 4294901760
    %v1129 = vsub.f32 %v56, %v1128
    %v1130 = vand.u32 %v1129, 4294901760
    %1131 = vmatpush1.msra.mxu0 %v1130
    %1132 = vmatprep.subr.mxu0 0.0
    %v1133 = vand.u32 %v57, 4294901760
    %v1134 = vsub.f32 %v57, %v1133
    %v1135 = vand.u32 %v1134, 4294901760
    %1136 = vmatpush1.msra.mxu0 %v1135
    %1137 = vmatprep.subr.mxu0 0.0
    %v1138 = vand.u32 %v58, 4294901760
    %v1139 = vsub.f32 %v58, %v1138
    %v1140 = vand.u32 %v1139, 4294901760
    %1141 = vmatpush1.msra.mxu0 %v1140
    %1142 = vmatprep.subr.mxu0 0.0
    %v1143 = vand.u32 %v59, 4294901760
    %v1144 = vsub.f32 %v59, %v1143
    %v1145 = vand.u32 %v1144, 4294901760
    %1146 = vmatpush1.msra.mxu0 %v1145
    %v1147 = vand.u32 %v88, 4294901760
    %1148 = vmatprep.mubr.f32.mxu0 %v1147
    %v1149 = vand.u32 %v87, 4294901760
    %1150 = vmatmul.mubr.f32.gmra.mrb[0].mxu0 %v1149
    %v1151 = vpop.f32.mrb[0].mxu0
    %v1152 = vadd.f32 %v907, %v1151
    %v1153 = vpop.f32.mrb[0].mxu0
    %v1154 = vand.u32 %v90, 4294901760
    %1155 = vmatprep.mubr.f32.mxu0 %v1154
    %v1156 = vand.u32 %v89, 4294901760
    %1157 = vmatmul.mubr.f32.gmra.mrb[0].mxu0 %v1156
    %v1158 = vpop.f32.mrb[0].mxu0
    %v1159 = vadd.f32 %v918, %v1158
    %v1160 = vpop.f32.mrb[0].mxu0
    %v1161 = vand.u32 %v92, 4294901760
    %1162 = vmatprep.mubr.f32.mxu0 %v1161
    %v1163 = vand.u32 %v91, 4294901760
    %1164 = vmatmul.mubr.f32.gmra.mrb[0].mxu0 %v1163
    %v1165 = vpop.f32.mrb[0].mxu0
    %v1166 = vadd.f32 %v929, %v1165
    %v1167 = vpop.f32.mrb[0].mxu0
    %v1168 = vand.u32 %v94, 4294901760
    %1169 = vmatprep.mubr.f32.mxu0 %v1168
    %v1170 = vand.u32 %v93, 4294901760
    %1171 = vmatmul.mubr.f32.gmra.mrb[0].mxu0 %v1170
    %v1172 = vpop.f32.mrb[0].mxu0
    %v1173 = vadd.f32 %v940, %v1172
    %v1174 = vpop.f32.mrb[0].mxu0
    %v1175 = vand.u32 %v96, 4294901760
    %1176 = vmatprep.mubr.f32.mxu0 %v1175
    %v1177 = vand.u32 %v95, 4294901760
    %1178 = vmatmul.mubr.f32.gmra.mrb[0].mxu0 %v1177
    %v1179 = vpop.f32.mrb[0].mxu0
    %v1180 = vadd.f32 %v951, %v1179
    %v1181 = vpop.f32.mrb[0].mxu0
    %v1182 = vand.u32 %v98, 4294901760
    %1183 = vmatprep.mubr.f32.mxu0 %v1182
    %v1184 = vand.u32 %v97, 4294901760
    %1185 = vmatmul.mubr.f32.gmra.mrb[0].mxu0 %v1184
    %v1186 = vpop.f32.mrb[0].mxu0
    %v1187 = vadd.f32 %v962, %v1186
    %v1188 = vpop.f32.mrb[0].mxu0
    %v1189 = vand.u32 %v100, 4294901760
    %1190 = vmatprep.mubr.f32.mxu0 %v1189
    %v1191 = vand.u32 %v99, 4294901760
    %1192 = vmatmul.mubr.f32.gmra.mrb[0].mxu0 %v1191
    %v1193 = vpop.f32.mrb[0].mxu0
    %v1194 = vadd.f32 %v973, %v1193
    %v1195 = vpop.f32.mrb[0].mxu0
    %v1196 = vand.u32 %v102, 4294901760
    %1197 = vmatprep.mubr.f32.mxu0 %v1196
    %v1198 = vand.u32 %v101, 4294901760
    %1199 = vmatmul.mubr.f32.gmra.mrb[0].mxu0 %v1198
    %v1200 = vpop.f32.mrb[0].mxu0
    %v1201 = vadd.f32 %v984, %v1200
    %v1202 = vpop.f32.mrb[0].mxu0
    %1203 = vdwg.mxu0
    %1204 = vmatprep.subr.mxu0 0.0
    %v1205 = vand.u32 %v28, 4294901760
    %1206 = vmatpush1.msra.mxu0 %v1205
    %1207 = vmatprep.subr.mxu0 0.0
    %v1208 = vand.u32 %v29, 4294901760
    %1209 = vmatpush1.msra.mxu0 %v1208
    %1210 = vmatprep.subr.mxu0 0.0
    %v1211 = vand.u32 %v30, 4294901760
    %1212 = vmatpush1.msra.mxu0 %v1211
    %1213 = vmatprep.subr.mxu0 0.0
    %v1214 = vand.u32 %v31, 4294901760
    %1215 = vmatpush1.msra.mxu0 %v1214
    %1216 = vmatprep.subr.mxu0 0.0
    %v1217 = vand.u32 %v32, 4294901760
    %1218 = vmatpush1.msra.mxu0 %v1217
    %1219 = vmatprep.subr.mxu0 0.0
    %v1220 = vand.u32 %v33, 4294901760
    %1221 = vmatpush1.msra.mxu0 %v1220
    %1222 = vmatprep.subr.mxu0 0.0
    %v1223 = vand.u32 %v34, 4294901760
    %1224 = vmatpush1.msra.mxu0 %v1223
    %1225 = vmatprep.subr.mxu0 0.0
    %v1226 = vand.u32 %v35, 4294901760
    %1227 = vmatpush1.msra.mxu0 %v1226
    %1228 = vmatprep.subr.mxu0 0.0
    %v1229 = vand.u32 %v36, 4294901760
    %1230 = vmatpush1.msra.mxu0 %v1229
    %1231 = vmatprep.subr.mxu0 0.0
    %v1232 = vand.u32 %v37, 4294901760
    %1233 = vmatpush1.msra.mxu0 %v1232
    %1234 = vmatprep.subr.mxu0 0.0
    %v1235 = vand.u32 %v38, 4294901760
    %1236 = vmatpush1.msra.mxu0 %v1235
    %1237 = vmatprep.subr.mxu0 0.0
    %v1238 = vand.u32 %v39, 4294901760
    %1239 = vmatpush1.msra.mxu0 %v1238
    %1240 = vmatprep.subr.mxu0 0.0
    %v1241 = vand.u32 %v40, 4294901760
    %1242 = vmatpush1.msra.mxu0 %v1241
    %1243 = vmatprep.subr.mxu0 0.0
    %v1244 = vand.u32 %v41, 4294901760
    %1245 = vmatpush1.msra.mxu0 %v1244
    %1246 = vmatprep.subr.mxu0 0.0
    %v1247 = vand.u32 %v42, 4294901760
    %1248 = vmatpush1.msra.mxu0 %v1247
    %1249 = vmatprep.subr.mxu0 0.0
    %v1250 = vand.u32 %v43, 4294901760
    %1251 = vmatpush1.msra.mxu0 %v1250
    %1252 = vmatprep.subr.mxu0 0.0
    %v1253 = vand.u32 %v44, 4294901760
    %1254 = vmatpush1.msra.mxu0 %v1253
    %1255 = vmatprep.subr.mxu0 0.0
    %v1256 = vand.u32 %v45, 4294901760
    %1257 = vmatpush1.msra.mxu0 %v1256
    %1258 = vmatprep.subr.mxu0 0.0
    %v1259 = vand.u32 %v46, 4294901760
    %1260 = vmatpush1.msra.mxu0 %v1259
    %1261 = vmatprep.subr.mxu0 0.0
    %v1262 = vand.u32 %v47, 4294901760
    %1263 = vmatpush1.msra.mxu0 %v1262
    %1264 = vmatprep.subr.mxu0 0.0
    %v1265 = vand.u32 %v48, 4294901760
    %1266 = vmatpush1.msra.mxu0 %v1265
    %1267 = vmatprep.subr.mxu0 0.0
    %v1268 = vand.u32 %v49, 4294901760
    %1269 = vmatpush1.msra.mxu0 %v1268
    %1270 = vmatprep.subr.mxu0 0.0
    %v1271 = vand.u32 %v50, 4294901760
    %1272 = vmatpush1.msra.mxu0 %v1271
    %1273 = vmatprep.subr.mxu0 0.0
    %v1274 = vand.u32 %v51, 4294901760
    %1275 = vmatpush1.msra.mxu0 %v1274
    %1276 = vmatprep.subr.mxu0 0.0
    %v1277 = vand.u32 %v52, 4294901760
    %1278 = vmatpush1.msra.mxu0 %v1277
    %1279 = vmatprep.subr.mxu0 0.0
    %v1280 = vand.u32 %v53, 4294901760
    %1281 = vmatpush1.msra.mxu0 %v1280
    %1282 = vmatprep.subr.mxu0 0.0
    %v1283 = vand.u32 %v54, 4294901760
    %1284 = vmatpush1.msra.mxu0 %v1283
    %1285 = vmatprep.subr.mxu0 0.0
    %v1286 = vand.u32 %v55, 4294901760
    %1287 = vmatpush1.msra.mxu0 %v1286
    %1288 = vmatprep.subr.mxu0 0.0
    %v1289 = vand.u32 %v56, 4294901760
    %1290 = vmatpush1.msra.mxu0 %v1289
    %1291 = vmatprep.subr.mxu0 0.0
    %v1292 = vand.u32 %v57, 4294901760
    %1293 = vmatpush1.msra.mxu0 %v1292
    %1294 = vmatprep.subr.mxu0 0.0
    %v1295 = vand.u32 %v58, 4294901760
    %1296 = vmatpush1.msra.mxu0 %v1295
    %1297 = vmatprep.subr.mxu0 0.0
    %v1298 = vand.u32 %v59, 4294901760
    %1299 = vmatpush1.msra.mxu0 %v1298
    %v1300 = vand.u32 %v88, 4294901760
    %1301 = vmatprep.mubr.f32.mxu0 %v1300
    %v1302 = vand.u32 %v87, 4294901760
    %1303 = vmatmul.mubr.f32.gmra.mrb[0].mxu0 %v1302
    %v1304 = vpop.f32.mrb[0].mxu0
    %v1305 = vadd.f32 %v1152, %v1304
    %v1306 = vpop.f32.mrb[0].mxu0
    %v1307 = vand.u32 %v90, 4294901760
    %1308 = vmatprep.mubr.f32.mxu0 %v1307
    %v1309 = vand.u32 %v89, 4294901760
    %1310 = vmatmul.mubr.f32.gmra.mrb[0].mxu0 %v1309
    %v1311 = vpop.f32.mrb[0].mxu0
    %v1312 = vadd.f32 %v1159, %v1311
    %v1313 = vpop.f32.mrb[0].mxu0
    %v1314 = vand.u32 %v92, 4294901760
    %1315 = vmatprep.mubr.f32.mxu0 %v1314
    %v1316 = vand.u32 %v91, 4294901760
    %1317 = vmatmul.mubr.f32.gmra.mrb[0].mxu0 %v1316
    %v1318 = vpop.f32.mrb[0].mxu0
    %v1319 = vadd.f32 %v1166, %v1318
    %v1320 = vpop.f32.mrb[0].mxu0
    %v1321 = vand.u32 %v94, 4294901760
    %1322 = vmatprep.mubr.f32.mxu0 %v1321
    %v1323 = vand.u32 %v93, 4294901760
    %1324 = vmatmul.mubr.f32.gmra.mrb[0].mxu0 %v1323
    %v1325 = vpop.f32.mrb[0].mxu0
    %v1326 = vadd.f32 %v1173, %v1325
    %v1327 = vpop.f32.mrb[0].mxu0
    %v1328 = vand.u32 %v96, 4294901760
    %1329 = vmatprep.mubr.f32.mxu0 %v1328
    %v1330 = vand.u32 %v95, 4294901760
    %1331 = vmatmul.mubr.f32.gmra.mrb[0].mxu0 %v1330
    %v1332 = vpop.f32.mrb[0].mxu0
    %v1333 = vadd.f32 %v1180, %v1332
    %v1334 = vpop.f32.mrb[0].mxu0
    %v1335 = vand.u32 %v98, 4294901760
    %1336 = vmatprep.mubr.f32.mxu0 %v1335
    %v1337 = vand.u32 %v97, 4294901760
    %1338 = vmatmul.mubr.f32.gmra.mrb[0].mxu0 %v1337
    %v1339 = vpop.f32.mrb[0].mxu0
    %v1340 = vadd.f32 %v1187, %v1339
    %v1341 = vpop.f32.mrb[0].mxu0
    %v1342 = vand.u32 %v100, 4294901760
    %1343 = vmatprep.mubr.f32.mxu0 %v1342
    %v1344 = vand.u32 %v99, 4294901760
    %1345 = vmatmul.mubr.f32.gmra.mrb[0].mxu0 %v1344
    %v1346 = vpop.f32.mrb[0].mxu0
    %v1347 = vadd.f32 %v1194, %v1346
    %v1348 = vpop.f32.mrb[0].mxu0
    %v1349 = vand.u32 %v102, 4294901760
    %1350 = vmatprep.mubr.f32.mxu0 %v1349
    %v1351 = vand.u32 %v101, 4294901760
    %1352 = vmatmul.mubr.f32.gmra.mrb[0].mxu0 %v1351
    %v1353 = vpop.f32.mrb[0].mxu0
    %v1354 = vadd.f32 %v1201, %v1353
    %v1355 = vpop.f32.mrb[0].mxu0
    %1356 = vdwg.mxu0
    %v1357 = vpack.c.bf16 %v1312, %v1305
    %v1358 = vpack.c.bf16 %v1326, %v1319
    %v1359 = vpack.c.bf16 %v1340, %v1333
    %v1360 = vpack.c.bf16 %v1354, %v1347
    %vm1361 = vcmask 261120
    %v1363 = vsel %vm1361, %v68, 0
    %1365 = vmatprep.subr.bf16.mxu0 0
    %1366 = vmatpush1.bf16.msra.mxu0 %v1357
    %1367 = vmatprep.subr.bf16.mxu0 0
    %1368 = vmatpush1.bf16.msra.mxu0 %v1358
    %1369 = vmatprep.subr.bf16.mxu0 0
    %1370 = vmatpush1.bf16.msra.mxu0 0
    %1371 = vmatprep.subr.bf16.mxu0 0
    %1372 = vmatpush1.bf16.msra.mxu0 0
    %1373 = vmatprep.subr.bf16.mxu0 0
    %1374 = vmatpush1.bf16.msra.mxu0 0
    %1375 = vmatprep.subr.bf16.mxu0 0
    %1376 = vmatpush1.bf16.msra.mxu0 0
    %1377 = vmatprep.subr.bf16.mxu0 0
    %1378 = vmatpush1.bf16.msra.mxu0 0
    %1379 = vmatprep.subr.bf16.mxu0 0
    %1380 = vmatpush1.bf16.msra.mxu0 0
    %1381 = vmatprep.subr.bf16.mxu0 0
    %1382 = vmatpush1.bf16.msra.mxu0 0
    %1383 = vmatprep.subr.bf16.mxu0 0
    %1384 = vmatpush1.bf16.msra.mxu0 0
    %1385 = vmatprep.subr.bf16.mxu0 0
    %1386 = vmatpush1.bf16.msra.mxu0 0
    %1387 = vmatprep.subr.bf16.mxu0 0
    %1388 = vmatpush1.bf16.msra.mxu0 0
    %1389 = vmatprep.subr.bf16.mxu0 0
    %1390 = vmatpush1.bf16.msra.mxu0 0
    %1391 = vmatprep.subr.bf16.mxu0 0
    %1392 = vmatpush1.bf16.msra.mxu0 0
    %1393 = vmatprep.subr.bf16.mxu0 0
    %1394 = vmatpush1.bf16.msra.mxu0 0
    %1395 = vmatprep.subr.bf16.mxu0 0
    %1396 = vmatpush1.bf16.msra.mxu0 0
    %1397 = vmatprep.mubr.bf16.mxu0 0
    %1398 = vmatmul.mubr.bf16.gmra.mrb[0].mxu0 %v1363
    %v1399 = vpop.f32.mrb[0].mxu0
    %v1400 = vadd.f32 0.0, %v1399
    %v1401 = vpop.f32.mrb[0].mxu0
    %v1402 = vpop.f32.mrb[0].mxu0
    %v1403 = vpop.f32.mrb[0].mxu0
    %1404 = vdwg.mxu0
    %1405 = vmatprep.subr.bf16.mxu0 0
    %1406 = vmatpush1.bf16.msra.mxu0 %v1359
    %1407 = vmatprep.subr.bf16.mxu0 0
    %1408 = vmatpush1.bf16.msra.mxu0 %v1360
    %1409 = vmatprep.subr.bf16.mxu0 0
    %1410 = vmatpush1.bf16.msra.mxu0 0
    %1411 = vmatprep.subr.bf16.mxu0 0
    %1412 = vmatpush1.bf16.msra.mxu0 0
    %1413 = vmatprep.subr.bf16.mxu0 0
    %1414 = vmatpush1.bf16.msra.mxu0 0
    %1415 = vmatprep.subr.bf16.mxu0 0
    %1416 = vmatpush1.bf16.msra.mxu0 0
    %1417 = vmatprep.subr.bf16.mxu0 0
    %1418 = vmatpush1.bf16.msra.mxu0 0
    %1419 = vmatprep.subr.bf16.mxu0 0
    %1420 = vmatpush1.bf16.msra.mxu0 0
    %1421 = vmatprep.subr.bf16.mxu0 0
    %1422 = vmatpush1.bf16.msra.mxu0 0
    %1423 = vmatprep.subr.bf16.mxu0 0
    %1424 = vmatpush1.bf16.msra.mxu0 0
    %1425 = vmatprep.subr.bf16.mxu0 0
    %1426 = vmatpush1.bf16.msra.mxu0 0
    %1427 = vmatprep.subr.bf16.mxu0 0
    %1428 = vmatpush1.bf16.msra.mxu0 0
    %1429 = vmatprep.subr.bf16.mxu0 0
    %1430 = vmatpush1.bf16.msra.mxu0 0
    %1431 = vmatprep.subr.bf16.mxu0 0
    %1432 = vmatpush1.bf16.msra.mxu0 0
    %1433 = vmatprep.subr.bf16.mxu0 0
    %1434 = vmatpush1.bf16.msra.mxu0 0
    %1435 = vmatprep.subr.bf16.mxu0 0
    %1436 = vmatpush1.bf16.msra.mxu0 0
    %1437 = vmatprep.mubr.bf16.mxu0 0
    %1438 = vmatmul.mubr.bf16.gmra.mrb[0].mxu0 %v1363
    %v1439 = vpop.f32.mrb[0].mxu0
    %v1440 = vadd.f32 0.0, %v1439
    %v1441 = vpop.f32.mrb[0].mxu0
    %v1442 = vpop.f32.mrb[0].mxu0
    %v1443 = vpop.f32.mrb[0].mxu0
    %1444 = vdwg.mxu0
    %1446 = vset.pattern.permute.xlu0 0
    %1447 = vperm.xlu0 %1446, %v69
    %v1448 = vpop.permute.xlu0 %1447
    %v1450 = vmul.f32 %v1400, %v1448
    %v1451 = vmul.f32 %v1440, %v1448
    %1453 = vset.pattern.permute.xlu0 0
    %1454 = vperm.xlu0 %1453, %v70
    %v1455 = vpop.permute.xlu0 %1454
    %v1457 = vadd.f32 %v1450, %v1455
    %v1458 = vadd.f32 %v1451, %v1455
    %v1459 = vmax.f32 %v1457, 0.0
    %v1460 = vmax.f32 %v1458, 0.0
    %v1461 = vpack.c.bf16 %v1459, %v1459
    %v1462 = vpack.c.bf16 %v1460, %v1460
    %1464 = vset.pattern.permute.xlu0 0
    %1465 = vperm.xlu0 %1464, %v79
    %v1466 = vpop.permute.xlu0 %1465
    %1469 = vset.pattern.permute.xlu0 0
    %1470 = vperm.xlu0 %1469, %v80
    %v1471 = vpop.permute.xlu0 %1470
    %1474 = vset.pattern.permute.xlu0 0
    %1475 = vperm.xlu0 %1474, %v81
    %v1476 = vpop.permute.xlu0 %1475
    %1479 = vset.pattern.permute.xlu0 0
    %1480 = vperm.xlu0 %1479, %v82
    %v1481 = vpop.permute.xlu0 %1480
    %v1487 = vunpack.c.l.b16 %v71
    %v1488 = vunpack.c.l.b16 %v72
    %v1489 = vunpack.c.l.b16 %v73
    %v1490 = vunpack.c.l.b16 %v74
    %v1491 = vpack.c.b16 %v1488, %v1487
    %v1492 = vpack.c.b16 %v1490, %v1489
    %vm1493 = vcmask 64512
    %v1495 = vsel %vm1493, %v1491, 0
    %v1498 = vsel %vm1493, %v1492, 0
    %vm1500 = vcmask 1043456
    %v1502 = vsel %vm1500, %v1461, 0
    %1504 = vmatprep.subr.bf16.mxu0 0
    %1505 = vmatpush1.bf16.msra.mxu0 %v1502
    %1506 = vmatprep.subr.bf16.mxu0 0
    %1507 = vmatpush1.bf16.msra.mxu0 0
    %1508 = vmatprep.subr.bf16.mxu0 0
    %1509 = vmatpush1.bf16.msra.mxu0 0
    %1510 = vmatprep.subr.bf16.mxu0 0
    %1511 = vmatpush1.bf16.msra.mxu0 0
    %1512 = vmatprep.subr.bf16.mxu0 0
    %1513 = vmatpush1.bf16.msra.mxu0 0
    %1514 = vmatprep.subr.bf16.mxu0 0
    %1515 = vmatpush1.bf16.msra.mxu0 0
    %1516 = vmatprep.subr.bf16.mxu0 0
    %1517 = vmatpush1.bf16.msra.mxu0 0
    %1518 = vmatprep.subr.bf16.mxu0 0
    %1519 = vmatpush1.bf16.msra.mxu0 0
    %1520 = vmatprep.subr.bf16.mxu0 0
    %1521 = vmatpush1.bf16.msra.mxu0 0
    %1522 = vmatprep.subr.bf16.mxu0 0
    %1523 = vmatpush1.bf16.msra.mxu0 0
    %1524 = vmatprep.subr.bf16.mxu0 0
    %1525 = vmatpush1.bf16.msra.mxu0 0
    %1526 = vmatprep.subr.bf16.mxu0 0
    %1527 = vmatpush1.bf16.msra.mxu0 0
    %1528 = vmatprep.subr.bf16.mxu0 0
    %1529 = vmatpush1.bf16.msra.mxu0 0
    %1530 = vmatprep.subr.bf16.mxu0 0
    %1531 = vmatpush1.bf16.msra.mxu0 0
    %1532 = vmatprep.subr.bf16.mxu0 0
    %1533 = vmatpush1.bf16.msra.mxu0 0
    %1534 = vmatprep.subr.bf16.mxu0 0
    %1535 = vmatpush1.bf16.msra.mxu0 0
    %1536 = vmatprep.mubr.bf16.mxu0 0
    %1537 = vmatmul.mubr.bf16.gmra.mrb[0].mxu0 %v1495
    %v1538 = vpop.f32.mrb[0].mxu0
    %v1539 = vadd.f32 %v1466, %v1538
    %v1540 = vpop.f32.mrb[0].mxu0
    %v1541 = vpop.f32.mrb[0].mxu0
    %v1542 = vadd.f32 %v1471, %v1541
    %v1543 = vpop.f32.mrb[0].mxu0
    %1544 = vmatprep.mubr.bf16.mxu0 0
    %1545 = vmatmul.mubr.bf16.gmra.mrb[0].mxu0 %v1498
    %v1546 = vpop.f32.mrb[0].mxu0
    %v1547 = vadd.f32 %v1476, %v1546
    %v1548 = vpop.f32.mrb[0].mxu0
    %v1549 = vpop.f32.mrb[0].mxu0
    %v1550 = vadd.f32 %v1481, %v1549
    %v1551 = vpop.f32.mrb[0].mxu0
    %1552 = vdwg.mxu0
    %v1554 = vsel %vm1500, %v1462, 0
    %1556 = vmatprep.subr.bf16.mxu0 0
    %1557 = vmatpush1.bf16.msra.mxu0 %v1554
    %1558 = vmatprep.subr.bf16.mxu0 0
    %1559 = vmatpush1.bf16.msra.mxu0 0
    %1560 = vmatprep.subr.bf16.mxu0 0
    %1561 = vmatpush1.bf16.msra.mxu0 0
    %1562 = vmatprep.subr.bf16.mxu0 0
    %1563 = vmatpush1.bf16.msra.mxu0 0
    %1564 = vmatprep.subr.bf16.mxu0 0
    %1565 = vmatpush1.bf16.msra.mxu0 0
    %1566 = vmatprep.subr.bf16.mxu0 0
    %1567 = vmatpush1.bf16.msra.mxu0 0
    %1568 = vmatprep.subr.bf16.mxu0 0
    %1569 = vmatpush1.bf16.msra.mxu0 0
    %1570 = vmatprep.subr.bf16.mxu0 0
    %1571 = vmatpush1.bf16.msra.mxu0 0
    %1572 = vmatprep.subr.bf16.mxu0 0
    %1573 = vmatpush1.bf16.msra.mxu0 0
    %1574 = vmatprep.subr.bf16.mxu0 0
    %1575 = vmatpush1.bf16.msra.mxu0 0
    %1576 = vmatprep.subr.bf16.mxu0 0
    %1577 = vmatpush1.bf16.msra.mxu0 0
    %1578 = vmatprep.subr.bf16.mxu0 0
    %1579 = vmatpush1.bf16.msra.mxu0 0
    %1580 = vmatprep.subr.bf16.mxu0 0
    %1581 = vmatpush1.bf16.msra.mxu0 0
    %1582 = vmatprep.subr.bf16.mxu0 0
    %1583 = vmatpush1.bf16.msra.mxu0 0
    %1584 = vmatprep.subr.bf16.mxu0 0
    %1585 = vmatpush1.bf16.msra.mxu0 0
    %1586 = vmatprep.subr.bf16.mxu0 0
    %1587 = vmatpush1.bf16.msra.mxu0 0
    %1588 = vmatprep.mubr.bf16.mxu0 0
    %1589 = vmatmul.mubr.bf16.gmra.mrb[0].mxu0 %v1495
    %v1590 = vpop.f32.mrb[0].mxu0
    %v1591 = vadd.f32 %v1466, %v1590
    %v1592 = vpop.f32.mrb[0].mxu0
    %v1593 = vpop.f32.mrb[0].mxu0
    %v1594 = vadd.f32 %v1471, %v1593
    %v1595 = vpop.f32.mrb[0].mxu0
    %1596 = vmatprep.mubr.bf16.mxu0 0
    %1597 = vmatmul.mubr.bf16.gmra.mrb[0].mxu0 %v1498
    %v1598 = vpop.f32.mrb[0].mxu0
    %v1599 = vadd.f32 %v1476, %v1598
    %v1600 = vpop.f32.mrb[0].mxu0
    %v1601 = vpop.f32.mrb[0].mxu0
    %v1602 = vadd.f32 %v1481, %v1601
    %v1603 = vpop.f32.mrb[0].mxu0
    %1604 = vdwg.mxu0
    %v1605 = vxor.u32 %v1539, 2147483648
    %v1606 = vxor.u32 %v1542, 2147483648
    %v1607 = vxor.u32 %v1547, 2147483648
    %v1608 = vxor.u32 %v1550, 2147483648
    %v1609 = vxor.u32 %v1591, 2147483648
    %v1610 = vxor.u32 %v1594, 2147483648
    %v1611 = vxor.u32 %v1599, 2147483648
    %v1612 = vxor.u32 %v1602, 2147483648
    %v1613 = vmul.f32 %v1605, 1.442695
    %v1614 = vpow.pop %v1613
    %v1615 = vmul.f32 %v1606, 1.442695
    %v1616 = vpow.pop %v1615
    %v1617 = vmul.f32 %v1607, 1.442695
    %v1618 = vpow.pop %v1617
    %v1619 = vmul.f32 %v1608, 1.442695
    %v1620 = vpow.pop %v1619
    %v1621 = vmul.f32 %v1609, 1.442695
    %v1622 = vpow.pop %v1621
    %v1623 = vmul.f32 %v1610, 1.442695
    %v1624 = vpow.pop %v1623
    %v1625 = vmul.f32 %v1611, 1.442695
    %v1626 = vpow.pop %v1625
    %v1627 = vmul.f32 %v1612, 1.442695
    %v1628 = vpow.pop %v1627
    %v1629 = vadd.f32 %v1614, 1.0
    %v1630 = vadd.f32 %v1616, 1.0
    %v1631 = vadd.f32 %v1618, 1.0
    %v1632 = vadd.f32 %v1620, 1.0
    %v1633 = vadd.f32 %v1622, 1.0
    %v1634 = vadd.f32 %v1624, 1.0
    %v1635 = vadd.f32 %v1626, 1.0
    %v1636 = vadd.f32 %v1628, 1.0
    %v1637 = vrcp.pop %v1629
    %v1638 = vmul.f32 1.0, %v1637
    %v1639 = vrcp.pop %v1630
    %v1640 = vmul.f32 1.0, %v1639
    %v1641 = vrcp.pop %v1631
    %v1642 = vmul.f32 1.0, %v1641
    %v1643 = vrcp.pop %v1632
    %v1644 = vmul.f32 1.0, %v1643
    %v1645 = vrcp.pop %v1633
    %v1646 = vmul.f32 1.0, %v1645
    %v1647 = vrcp.pop %v1634
    %v1648 = vmul.f32 1.0, %v1647
    %v1649 = vrcp.pop %v1635
    %v1650 = vmul.f32 1.0, %v1649
    %v1651 = vrcp.pop %v1636
    %v1652 = vmul.f32 1.0, %v1651
    %1654 = vset.pattern.permute.xlu0 0
    %1655 = vperm.xlu0 %1654, %v83
    %v1656 = vpop.permute.xlu0 %1655
    %1659 = vset.pattern.permute.xlu0 0
    %1660 = vperm.xlu0 %1659, %v84
    %v1661 = vpop.permute.xlu0 %1660
    %1664 = vset.pattern.permute.xlu0 0
    %1665 = vperm.xlu0 %1664, %v85
    %v1666 = vpop.permute.xlu0 %1665
    %1669 = vset.pattern.permute.xlu0 0
    %1670 = vperm.xlu0 %1669, %v86
    %v1671 = vpop.permute.xlu0 %1670
    %v1677 = vunpack.c.l.b16 %v75
    %v1678 = vunpack.c.l.b16 %v76
    %v1679 = vunpack.c.l.b16 %v77
    %v1680 = vunpack.c.l.b16 %v78
    %v1681 = vpack.c.b16 %v1678, %v1677
    %v1682 = vpack.c.b16 %v1680, %v1679
    %1684 = vrot.lane.b32.xlu0 %v1461, 112
    %v1685 = vpop.permute.xlu0 %1684
    %v1687 = vsel %vm1493, %v1681, 0
    %v1690 = vsel %vm1493, %v1682, 0
    %v1693 = vsel %vm1500, %v1685, 0
    %1695 = vmatprep.subr.bf16.mxu0 0
    %1696 = vmatpush1.bf16.msra.mxu0 %v1693
    %1697 = vmatprep.subr.bf16.mxu0 0
    %1698 = vmatpush1.bf16.msra.mxu0 0
    %1699 = vmatprep.subr.bf16.mxu0 0
    %1700 = vmatpush1.bf16.msra.mxu0 0
    %1701 = vmatprep.subr.bf16.mxu0 0
    %1702 = vmatpush1.bf16.msra.mxu0 0
    %1703 = vmatprep.subr.bf16.mxu0 0
    %1704 = vmatpush1.bf16.msra.mxu0 0
    %1705 = vmatprep.subr.bf16.mxu0 0
    %1706 = vmatpush1.bf16.msra.mxu0 0
    %1707 = vmatprep.subr.bf16.mxu0 0
    %1708 = vmatpush1.bf16.msra.mxu0 0
    %1709 = vmatprep.subr.bf16.mxu0 0
    %1710 = vmatpush1.bf16.msra.mxu0 0
    %1711 = vmatprep.subr.bf16.mxu0 0
    %1712 = vmatpush1.bf16.msra.mxu0 0
    %1713 = vmatprep.subr.bf16.mxu0 0
    %1714 = vmatpush1.bf16.msra.mxu0 0
    %1715 = vmatprep.subr.bf16.mxu0 0
    %1716 = vmatpush1.bf16.msra.mxu0 0
    %1717 = vmatprep.subr.bf16.mxu0 0
    %1718 = vmatpush1.bf16.msra.mxu0 0
    %1719 = vmatprep.subr.bf16.mxu0 0
    %1720 = vmatpush1.bf16.msra.mxu0 0
    %1721 = vmatprep.subr.bf16.mxu0 0
    %1722 = vmatpush1.bf16.msra.mxu0 0
    %1723 = vmatprep.subr.bf16.mxu0 0
    %1724 = vmatpush1.bf16.msra.mxu0 0
    %1725 = vmatprep.subr.bf16.mxu0 0
    %1726 = vmatpush1.bf16.msra.mxu0 0
    %1727 = vmatprep.mubr.bf16.mxu0 0
    %1728 = vmatmul.mubr.bf16.gmra.mrb[0].mxu0 %v1687
    %v1729 = vpop.f32.mrb[0].mxu0
    %v1730 = vadd.f32 %v1656, %v1729
    %v1731 = vpop.f32.mrb[0].mxu0
    %v1732 = vpop.f32.mrb[0].mxu0
    %v1733 = vadd.f32 %v1661, %v1732
    %v1734 = vpop.f32.mrb[0].mxu0
    %1735 = vmatprep.mubr.bf16.mxu0 0
    %1736 = vmatmul.mubr.bf16.gmra.mrb[0].mxu0 %v1690
    %v1737 = vpop.f32.mrb[0].mxu0
    %v1738 = vadd.f32 %v1666, %v1737
    %v1739 = vpop.f32.mrb[0].mxu0
    %v1740 = vpop.f32.mrb[0].mxu0
    %v1741 = vadd.f32 %v1671, %v1740
    %v1742 = vpop.f32.mrb[0].mxu0
    %1743 = vdwg.mxu0
    %1745 = vrot.lane.b32.xlu0 %v1462, 112
    %v1746 = vpop.permute.xlu0 %1745
    %v1748 = vsel %vm1500, %v1746, 0
    %1750 = vmatprep.subr.bf16.mxu0 0
    %1751 = vmatpush1.bf16.msra.mxu0 %v1748
    %1752 = vmatprep.subr.bf16.mxu0 0
    %1753 = vmatpush1.bf16.msra.mxu0 0
    %1754 = vmatprep.subr.bf16.mxu0 0
    %1755 = vmatpush1.bf16.msra.mxu0 0
    %1756 = vmatprep.subr.bf16.mxu0 0
    %1757 = vmatpush1.bf16.msra.mxu0 0
    %1758 = vmatprep.subr.bf16.mxu0 0
    %1759 = vmatpush1.bf16.msra.mxu0 0
    %1760 = vmatprep.subr.bf16.mxu0 0
    %1761 = vmatpush1.bf16.msra.mxu0 0
    %1762 = vmatprep.subr.bf16.mxu0 0
    %1763 = vmatpush1.bf16.msra.mxu0 0
    %1764 = vmatprep.subr.bf16.mxu0 0
    %1765 = vmatpush1.bf16.msra.mxu0 0
    %1766 = vmatprep.subr.bf16.mxu0 0
    %1767 = vmatpush1.bf16.msra.mxu0 0
    %1768 = vmatprep.subr.bf16.mxu0 0
    %1769 = vmatpush1.bf16.msra.mxu0 0
    %1770 = vmatprep.subr.bf16.mxu0 0
    %1771 = vmatpush1.bf16.msra.mxu0 0
    %1772 = vmatprep.subr.bf16.mxu0 0
    %1773 = vmatpush1.bf16.msra.mxu0 0
    %1774 = vmatprep.subr.bf16.mxu0 0
    %1775 = vmatpush1.bf16.msra.mxu0 0
    %1776 = vmatprep.subr.bf16.mxu0 0
    %1777 = vmatpush1.bf16.msra.mxu0 0
    %1778 = vmatprep.subr.bf16.mxu0 0
    %1779 = vmatpush1.bf16.msra.mxu0 0
    %1780 = vmatprep.subr.bf16.mxu0 0
    %1781 = vmatpush1.bf16.msra.mxu0 0
    %1782 = vmatprep.mubr.bf16.mxu0 0
    %1783 = vmatmul.mubr.bf16.gmra.mrb[0].mxu0 %v1687
    %v1784 = vpop.f32.mrb[0].mxu0
    %v1785 = vadd.f32 %v1656, %v1784
    %v1786 = vpop.f32.mrb[0].mxu0
    %v1787 = vpop.f32.mrb[0].mxu0
    %v1788 = vadd.f32 %v1661, %v1787
    %v1789 = vpop.f32.mrb[0].mxu0
    %1790 = vmatprep.mubr.bf16.mxu0 0
    %1791 = vmatmul.mubr.bf16.gmra.mrb[0].mxu0 %v1690
    %v1792 = vpop.f32.mrb[0].mxu0
    %v1793 = vadd.f32 %v1666, %v1792
    %v1794 = vpop.f32.mrb[0].mxu0
    %v1795 = vpop.f32.mrb[0].mxu0
    %v1796 = vadd.f32 %v1671, %v1795
    %v1797 = vpop.f32.mrb[0].mxu0
    %1798 = vdwg.mxu0
    %v1799 = vxor.u32 %v1730, 2147483648
    %v1800 = vxor.u32 %v1733, 2147483648
    %v1801 = vxor.u32 %v1738, 2147483648
    %v1802 = vxor.u32 %v1741, 2147483648
    %v1803 = vxor.u32 %v1785, 2147483648
    %v1804 = vxor.u32 %v1788, 2147483648
    %v1805 = vxor.u32 %v1793, 2147483648
    %v1806 = vxor.u32 %v1796, 2147483648
    %v1807 = vmul.f32 %v1799, 1.442695
    %v1808 = vpow.pop %v1807
    %v1809 = vmul.f32 %v1800, 1.442695
    %v1810 = vpow.pop %v1809
    %v1811 = vmul.f32 %v1801, 1.442695
    %v1812 = vpow.pop %v1811
    %v1813 = vmul.f32 %v1802, 1.442695
    %v1814 = vpow.pop %v1813
    %v1815 = vmul.f32 %v1803, 1.442695
    %v1816 = vpow.pop %v1815
    %v1817 = vmul.f32 %v1804, 1.442695
    %v1818 = vpow.pop %v1817
    %v1819 = vmul.f32 %v1805, 1.442695
    %v1820 = vpow.pop %v1819
    %v1821 = vmul.f32 %v1806, 1.442695
    %v1822 = vpow.pop %v1821
    %v1823 = vadd.f32 %v1808, 1.0
    %v1824 = vadd.f32 %v1810, 1.0
    %v1825 = vadd.f32 %v1812, 1.0
    %v1826 = vadd.f32 %v1814, 1.0
    %v1827 = vadd.f32 %v1816, 1.0
    %v1828 = vadd.f32 %v1818, 1.0
    %v1829 = vadd.f32 %v1820, 1.0
    %v1830 = vadd.f32 %v1822, 1.0
    %v1831 = vrcp.pop %v1823
    %v1832 = vmul.f32 1.0, %v1831
    %v1833 = vrcp.pop %v1824
    %v1834 = vmul.f32 1.0, %v1833
    %v1835 = vrcp.pop %v1825
    %v1836 = vmul.f32 1.0, %v1835
    %v1837 = vrcp.pop %v1826
    %v1838 = vmul.f32 1.0, %v1837
    %v1839 = vrcp.pop %v1827
    %v1840 = vmul.f32 1.0, %v1839
    %v1841 = vrcp.pop %v1828
    %v1842 = vmul.f32 1.0, %v1841
    %v1843 = vrcp.pop %v1829
    %v1844 = vmul.f32 1.0, %v1843
    %v1845 = vrcp.pop %v1830
    %v1846 = vmul.f32 1.0, %v1845
    %vm1847 = vcmask 130048
    %v1849 = vsel %vm1847, %v1638, 0
    %v1852 = vsel %vm1847, %v1640, 0
    %v1855 = vsel %vm1847, %v1642, 0
    %v1858 = vsel %vm1847, %v1644, 0
    %v1861 = vsel %vm1847, %v1646, 0
    %v1864 = vsel %vm1847, %v1648, 0
    %v1867 = vsel %vm1847, %v1650, 0
    %v1870 = vsel %vm1847, %v1652, 0
    %v1872 = vand.u32 %v61, 4294901760
    %1873 = vmatprep.subr.mxu0 %v1872
    %v1874 = vand.u32 %v60, 4294901760
    %1875 = vmatpush1.msra.mxu0 %v1874
    %v1876 = vand.u32 %v63, 4294901760
    %1877 = vmatprep.subr.mxu0 %v1876
    %v1878 = vand.u32 %v62, 4294901760
    %1879 = vmatpush1.msra.mxu0 %v1878
    %1880 = vmatprep.subr.mxu0 0.0
    %1881 = vmatpush1.msra.mxu0 0.0
    %1882 = vmatprep.subr.mxu0 0.0
    %1883 = vmatpush1.msra.mxu0 0.0
    %1884 = vmatprep.subr.mxu0 0.0
    %1885 = vmatpush1.msra.mxu0 0.0
    %1886 = vmatprep.subr.mxu0 0.0
    %1887 = vmatpush1.msra.mxu0 0.0
    %1888 = vmatprep.subr.mxu0 0.0
    %1889 = vmatpush1.msra.mxu0 0.0
    %1890 = vmatprep.subr.mxu0 0.0
    %1891 = vmatpush1.msra.mxu0 0.0
    %1892 = vmatprep.subr.mxu0 0.0
    %1893 = vmatpush1.msra.mxu0 0.0
    %1894 = vmatprep.subr.mxu0 0.0
    %1895 = vmatpush1.msra.mxu0 0.0
    %1896 = vmatprep.subr.mxu0 0.0
    %1897 = vmatpush1.msra.mxu0 0.0
    %1898 = vmatprep.subr.mxu0 0.0
    %1899 = vmatpush1.msra.mxu0 0.0
    %1900 = vmatprep.subr.mxu0 0.0
    %1901 = vmatpush1.msra.mxu0 0.0
    %1902 = vmatprep.subr.mxu0 0.0
    %1903 = vmatpush1.msra.mxu0 0.0
    %1904 = vmatprep.subr.mxu0 0.0
    %1905 = vmatpush1.msra.mxu0 0.0
    %1906 = vmatprep.subr.mxu0 0.0
    %1907 = vmatpush1.msra.mxu0 0.0
    %1908 = vmatprep.subr.mxu0 0.0
    %1909 = vmatpush1.msra.mxu0 0.0
    %1910 = vmatprep.subr.mxu0 0.0
    %1911 = vmatpush1.msra.mxu0 0.0
    %1912 = vmatprep.subr.mxu0 0.0
    %1913 = vmatpush1.msra.mxu0 0.0
    %1914 = vmatprep.subr.mxu0 0.0
    %1915 = vmatpush1.msra.mxu0 0.0
    %1916 = vmatprep.subr.mxu0 0.0
    %1917 = vmatpush1.msra.mxu0 0.0
    %1918 = vmatprep.subr.mxu0 0.0
    %1919 = vmatpush1.msra.mxu0 0.0
    %1920 = vmatprep.subr.mxu0 0.0
    %1921 = vmatpush1.msra.mxu0 0.0
    %1922 = vmatprep.subr.mxu0 0.0
    %1923 = vmatpush1.msra.mxu0 0.0
    %1924 = vmatprep.subr.mxu0 0.0
    %1925 = vmatpush1.msra.mxu0 0.0
    %1926 = vmatprep.subr.mxu0 0.0
    %1927 = vmatpush1.msra.mxu0 0.0
    %1928 = vmatprep.subr.mxu0 0.0
    %1929 = vmatpush1.msra.mxu0 0.0
    %1930 = vmatprep.subr.mxu0 0.0
    %1931 = vmatpush1.msra.mxu0 0.0
    %1932 = vmatprep.subr.mxu0 0.0
    %1933 = vmatpush1.msra.mxu0 0.0
    %1934 = vmatprep.subr.mxu0 0.0
    %1935 = vmatpush1.msra.mxu0 0.0
    %1936 = vmatprep.subr.mxu0 0.0
    %1937 = vmatpush1.msra.mxu0 0.0
    %1938 = vmatprep.subr.mxu0 0.0
    %1939 = vmatpush1.msra.mxu0 0.0
    %1940 = vmatprep.mubr.f32.mxu0 0.0
    %v1941 = vand.u32 %v1849, 4294901760
    %v1942 = vsub.f32 %v1849, %v1941
    %v1943 = vand.u32 %v1942, 4294901760
    %v1944 = vsub.f32 %v1942, %v1943
    %v1945 = vand.u32 %v1944, 4294901760
    %1946 = vmatmul.mubr.f32.gmra.mrb[0].mxu0 %v1945
    %v1947 = vpop.f32.mrb[0].mxu0
    %v1948 = vadd.f32 0.0, %v1947
    %v1949 = vpop.f32.mrb[0].mxu0
    %v1950 = vadd.f32 0.0, %v1949
    %1951 = vmatprep.mubr.f32.mxu0 0.0
    %v1952 = vand.u32 %v1852, 4294901760
    %v1953 = vsub.f32 %v1852, %v1952
    %v1954 = vand.u32 %v1953, 4294901760
    %v1955 = vsub.f32 %v1953, %v1954
    %v1956 = vand.u32 %v1955, 4294901760
    %1957 = vmatmul.mubr.f32.gmra.mrb[0].mxu0 %v1956
    %v1958 = vpop.f32.mrb[0].mxu0
    %v1959 = vadd.f32 0.0, %v1958
    %v1960 = vpop.f32.mrb[0].mxu0
    %v1961 = vadd.f32 0.0, %v1960
    %1962 = vmatprep.mubr.f32.mxu0 0.0
    %v1963 = vand.u32 %v1855, 4294901760
    %v1964 = vsub.f32 %v1855, %v1963
    %v1965 = vand.u32 %v1964, 4294901760
    %v1966 = vsub.f32 %v1964, %v1965
    %v1967 = vand.u32 %v1966, 4294901760
    %1968 = vmatmul.mubr.f32.gmra.mrb[0].mxu0 %v1967
    %v1969 = vpop.f32.mrb[0].mxu0
    %v1970 = vadd.f32 0.0, %v1969
    %v1971 = vpop.f32.mrb[0].mxu0
    %v1972 = vadd.f32 0.0, %v1971
    %1973 = vmatprep.mubr.f32.mxu0 0.0
    %v1974 = vand.u32 %v1858, 4294901760
    %v1975 = vsub.f32 %v1858, %v1974
    %v1976 = vand.u32 %v1975, 4294901760
    %v1977 = vsub.f32 %v1975, %v1976
    %v1978 = vand.u32 %v1977, 4294901760
    %1979 = vmatmul.mubr.f32.gmra.mrb[0].mxu0 %v1978
    %v1980 = vpop.f32.mrb[0].mxu0
    %v1981 = vadd.f32 0.0, %v1980
    %v1982 = vpop.f32.mrb[0].mxu0
    %v1983 = vadd.f32 0.0, %v1982
    %1984 = vmatprep.mubr.f32.mxu0 0.0
    %v1985 = vand.u32 %v1861, 4294901760
    %v1986 = vsub.f32 %v1861, %v1985
    %v1987 = vand.u32 %v1986, 4294901760
    %v1988 = vsub.f32 %v1986, %v1987
    %v1989 = vand.u32 %v1988, 4294901760
    %1990 = vmatmul.mubr.f32.gmra.mrb[0].mxu0 %v1989
    %v1991 = vpop.f32.mrb[0].mxu0
    %v1992 = vadd.f32 0.0, %v1991
    %v1993 = vpop.f32.mrb[0].mxu0
    %v1994 = vadd.f32 0.0, %v1993
    %1995 = vmatprep.mubr.f32.mxu0 0.0
    %v1996 = vand.u32 %v1864, 4294901760
    %v1997 = vsub.f32 %v1864, %v1996
    %v1998 = vand.u32 %v1997, 4294901760
    %v1999 = vsub.f32 %v1997, %v1998
    %v2000 = vand.u32 %v1999, 4294901760
    %2001 = vmatmul.mubr.f32.gmra.mrb[0].mxu0 %v2000
    %v2002 = vpop.f32.mrb[0].mxu0
    %v2003 = vadd.f32 0.0, %v2002
    %v2004 = vpop.f32.mrb[0].mxu0
    %v2005 = vadd.f32 0.0, %v2004
    %2006 = vmatprep.mubr.f32.mxu0 0.0
    %v2007 = vand.u32 %v1867, 4294901760
    %v2008 = vsub.f32 %v1867, %v2007
    %v2009 = vand.u32 %v2008, 4294901760
    %v2010 = vsub.f32 %v2008, %v2009
    %v2011 = vand.u32 %v2010, 4294901760
    %2012 = vmatmul.mubr.f32.gmra.mrb[0].mxu0 %v2011
    %v2013 = vpop.f32.mrb[0].mxu0
    %v2014 = vadd.f32 0.0, %v2013
    %v2015 = vpop.f32.mrb[0].mxu0
    %v2016 = vadd.f32 0.0, %v2015
    %2017 = vmatprep.mubr.f32.mxu0 0.0
    %v2018 = vand.u32 %v1870, 4294901760
    %v2019 = vsub.f32 %v1870, %v2018
    %v2020 = vand.u32 %v2019, 4294901760
    %v2021 = vsub.f32 %v2019, %v2020
    %v2022 = vand.u32 %v2021, 4294901760
    %2023 = vmatmul.mubr.f32.gmra.mrb[0].mxu0 %v2022
    %v2024 = vpop.f32.mrb[0].mxu0
    %v2025 = vadd.f32 0.0, %v2024
    %v2026 = vpop.f32.mrb[0].mxu0
    %v2027 = vadd.f32 0.0, %v2026
    %2028 = vdwg.mxu0
    %v2029 = vand.u32 %v61, 4294901760
    %v2030 = vsub.f32 %v61, %v2029
    %v2031 = vand.u32 %v2030, 4294901760
    %v2032 = vsub.f32 %v2030, %v2031
    %v2033 = vand.u32 %v2032, 4294901760
    %2034 = vmatprep.subr.mxu0 %v2033
    %v2035 = vand.u32 %v60, 4294901760
    %v2036 = vsub.f32 %v60, %v2035
    %v2037 = vand.u32 %v2036, 4294901760
    %v2038 = vsub.f32 %v2036, %v2037
    %v2039 = vand.u32 %v2038, 4294901760
    %2040 = vmatpush1.msra.mxu0 %v2039
    %v2041 = vand.u32 %v63, 4294901760
    %v2042 = vsub.f32 %v63, %v2041
    %v2043 = vand.u32 %v2042, 4294901760
    %v2044 = vsub.f32 %v2042, %v2043
    %v2045 = vand.u32 %v2044, 4294901760
    %2046 = vmatprep.subr.mxu0 %v2045
    %v2047 = vand.u32 %v62, 4294901760
    %v2048 = vsub.f32 %v62, %v2047
    %v2049 = vand.u32 %v2048, 4294901760
    %v2050 = vsub.f32 %v2048, %v2049
    %v2051 = vand.u32 %v2050, 4294901760
    %2052 = vmatpush1.msra.mxu0 %v2051
    %2053 = vmatprep.subr.mxu0 0.0
    %2054 = vmatpush1.msra.mxu0 0.0
    %2055 = vmatprep.subr.mxu0 0.0
    %2056 = vmatpush1.msra.mxu0 0.0
    %2057 = vmatprep.subr.mxu0 0.0
    %2058 = vmatpush1.msra.mxu0 0.0
    %2059 = vmatprep.subr.mxu0 0.0
    %2060 = vmatpush1.msra.mxu0 0.0
    %2061 = vmatprep.subr.mxu0 0.0
    %2062 = vmatpush1.msra.mxu0 0.0
    %2063 = vmatprep.subr.mxu0 0.0
    %2064 = vmatpush1.msra.mxu0 0.0
    %2065 = vmatprep.subr.mxu0 0.0
    %2066 = vmatpush1.msra.mxu0 0.0
    %2067 = vmatprep.subr.mxu0 0.0
    %2068 = vmatpush1.msra.mxu0 0.0
    %2069 = vmatprep.subr.mxu0 0.0
    %2070 = vmatpush1.msra.mxu0 0.0
    %2071 = vmatprep.subr.mxu0 0.0
    %2072 = vmatpush1.msra.mxu0 0.0
    %2073 = vmatprep.subr.mxu0 0.0
    %2074 = vmatpush1.msra.mxu0 0.0
    %2075 = vmatprep.subr.mxu0 0.0
    %2076 = vmatpush1.msra.mxu0 0.0
    %2077 = vmatprep.subr.mxu0 0.0
    %2078 = vmatpush1.msra.mxu0 0.0
    %2079 = vmatprep.subr.mxu0 0.0
    %2080 = vmatpush1.msra.mxu0 0.0
    %2081 = vmatprep.subr.mxu0 0.0
    %2082 = vmatpush1.msra.mxu0 0.0
    %2083 = vmatprep.subr.mxu0 0.0
    %2084 = vmatpush1.msra.mxu0 0.0
    %2085 = vmatprep.subr.mxu0 0.0
    %2086 = vmatpush1.msra.mxu0 0.0
    %2087 = vmatprep.subr.mxu0 0.0
    %2088 = vmatpush1.msra.mxu0 0.0
    %2089 = vmatprep.subr.mxu0 0.0
    %2090 = vmatpush1.msra.mxu0 0.0
    %2091 = vmatprep.subr.mxu0 0.0
    %2092 = vmatpush1.msra.mxu0 0.0
    %2093 = vmatprep.subr.mxu0 0.0
    %2094 = vmatpush1.msra.mxu0 0.0
    %2095 = vmatprep.subr.mxu0 0.0
    %2096 = vmatpush1.msra.mxu0 0.0
    %2097 = vmatprep.subr.mxu0 0.0
    %2098 = vmatpush1.msra.mxu0 0.0
    %2099 = vmatprep.subr.mxu0 0.0
    %2100 = vmatpush1.msra.mxu0 0.0
    %2101 = vmatprep.subr.mxu0 0.0
    %2102 = vmatpush1.msra.mxu0 0.0
    %2103 = vmatprep.subr.mxu0 0.0
    %2104 = vmatpush1.msra.mxu0 0.0
    %2105 = vmatprep.subr.mxu0 0.0
    %2106 = vmatpush1.msra.mxu0 0.0
    %2107 = vmatprep.subr.mxu0 0.0
    %2108 = vmatpush1.msra.mxu0 0.0
    %2109 = vmatprep.subr.mxu0 0.0
    %2110 = vmatpush1.msra.mxu0 0.0
    %2111 = vmatprep.subr.mxu0 0.0
    %2112 = vmatpush1.msra.mxu0 0.0
    %2113 = vmatprep.mubr.f32.mxu0 0.0
    %v2114 = vand.u32 %v1849, 4294901760
    %2115 = vmatmul.mubr.f32.gmra.mrb[0].mxu0 %v2114
    %v2116 = vpop.f32.mrb[0].mxu0
    %v2117 = vadd.f32 %v1948, %v2116
    %v2118 = vpop.f32.mrb[0].mxu0
    %v2119 = vadd.f32 %v1950, %v2118
    %2120 = vmatprep.mubr.f32.mxu0 0.0
    %v2121 = vand.u32 %v1852, 4294901760
    %2122 = vmatmul.mubr.f32.gmra.mrb[0].mxu0 %v2121
    %v2123 = vpop.f32.mrb[0].mxu0
    %v2124 = vadd.f32 %v1959, %v2123
    %v2125 = vpop.f32.mrb[0].mxu0
    %v2126 = vadd.f32 %v1961, %v2125
    %2127 = vmatprep.mubr.f32.mxu0 0.0
    %v2128 = vand.u32 %v1855, 4294901760
    %2129 = vmatmul.mubr.f32.gmra.mrb[0].mxu0 %v2128
    %v2130 = vpop.f32.mrb[0].mxu0
    %v2131 = vadd.f32 %v1970, %v2130
    %v2132 = vpop.f32.mrb[0].mxu0
    %v2133 = vadd.f32 %v1972, %v2132
    %2134 = vmatprep.mubr.f32.mxu0 0.0
    %v2135 = vand.u32 %v1858, 4294901760
    %2136 = vmatmul.mubr.f32.gmra.mrb[0].mxu0 %v2135
    %v2137 = vpop.f32.mrb[0].mxu0
    %v2138 = vadd.f32 %v1981, %v2137
    %v2139 = vpop.f32.mrb[0].mxu0
    %v2140 = vadd.f32 %v1983, %v2139
    %2141 = vmatprep.mubr.f32.mxu0 0.0
    %v2142 = vand.u32 %v1861, 4294901760
    %2143 = vmatmul.mubr.f32.gmra.mrb[0].mxu0 %v2142
    %v2144 = vpop.f32.mrb[0].mxu0
    %v2145 = vadd.f32 %v1992, %v2144
    %v2146 = vpop.f32.mrb[0].mxu0
    %v2147 = vadd.f32 %v1994, %v2146
    %2148 = vmatprep.mubr.f32.mxu0 0.0
    %v2149 = vand.u32 %v1864, 4294901760
    %2150 = vmatmul.mubr.f32.gmra.mrb[0].mxu0 %v2149
    %v2151 = vpop.f32.mrb[0].mxu0
    %v2152 = vadd.f32 %v2003, %v2151
    %v2153 = vpop.f32.mrb[0].mxu0
    %v2154 = vadd.f32 %v2005, %v2153
    %2155 = vmatprep.mubr.f32.mxu0 0.0
    %v2156 = vand.u32 %v1867, 4294901760
    %2157 = vmatmul.mubr.f32.gmra.mrb[0].mxu0 %v2156
    %v2158 = vpop.f32.mrb[0].mxu0
    %v2159 = vadd.f32 %v2014, %v2158
    %v2160 = vpop.f32.mrb[0].mxu0
    %v2161 = vadd.f32 %v2016, %v2160
    %2162 = vmatprep.mubr.f32.mxu0 0.0
    %v2163 = vand.u32 %v1870, 4294901760
    %2164 = vmatmul.mubr.f32.gmra.mrb[0].mxu0 %v2163
    %v2165 = vpop.f32.mrb[0].mxu0
    %v2166 = vadd.f32 %v2025, %v2165
    %v2167 = vpop.f32.mrb[0].mxu0
    %v2168 = vadd.f32 %v2027, %v2167
    %2169 = vdwg.mxu0
    %v2170 = vand.u32 %v61, 4294901760
    %v2171 = vsub.f32 %v61, %v2170
    %2172 = vmatprep.subr.mxu0 %v2171
    %v2173 = vand.u32 %v60, 4294901760
    %v2174 = vsub.f32 %v60, %v2173
    %2175 = vmatpush1.msra.mxu0 %v2174
    %v2176 = vand.u32 %v63, 4294901760
    %v2177 = vsub.f32 %v63, %v2176
    %2178 = vmatprep.subr.mxu0 %v2177
    %v2179 = vand.u32 %v62, 4294901760
    %v2180 = vsub.f32 %v62, %v2179
    %2181 = vmatpush1.msra.mxu0 %v2180
    %2182 = vmatprep.subr.mxu0 0.0
    %2183 = vmatpush1.msra.mxu0 0.0
    %2184 = vmatprep.subr.mxu0 0.0
    %2185 = vmatpush1.msra.mxu0 0.0
    %2186 = vmatprep.subr.mxu0 0.0
    %2187 = vmatpush1.msra.mxu0 0.0
    %2188 = vmatprep.subr.mxu0 0.0
    %2189 = vmatpush1.msra.mxu0 0.0
    %2190 = vmatprep.subr.mxu0 0.0
    %2191 = vmatpush1.msra.mxu0 0.0
    %2192 = vmatprep.subr.mxu0 0.0
    %2193 = vmatpush1.msra.mxu0 0.0
    %2194 = vmatprep.subr.mxu0 0.0
    %2195 = vmatpush1.msra.mxu0 0.0
    %2196 = vmatprep.subr.mxu0 0.0
    %2197 = vmatpush1.msra.mxu0 0.0
    %2198 = vmatprep.subr.mxu0 0.0
    %2199 = vmatpush1.msra.mxu0 0.0
    %2200 = vmatprep.subr.mxu0 0.0
    %2201 = vmatpush1.msra.mxu0 0.0
    %2202 = vmatprep.subr.mxu0 0.0
    %2203 = vmatpush1.msra.mxu0 0.0
    %2204 = vmatprep.subr.mxu0 0.0
    %2205 = vmatpush1.msra.mxu0 0.0
    %2206 = vmatprep.subr.mxu0 0.0
    %2207 = vmatpush1.msra.mxu0 0.0
    %2208 = vmatprep.subr.mxu0 0.0
    %2209 = vmatpush1.msra.mxu0 0.0
    %2210 = vmatprep.subr.mxu0 0.0
    %2211 = vmatpush1.msra.mxu0 0.0
    %2212 = vmatprep.subr.mxu0 0.0
    %2213 = vmatpush1.msra.mxu0 0.0
    %2214 = vmatprep.subr.mxu0 0.0
    %2215 = vmatpush1.msra.mxu0 0.0
    %2216 = vmatprep.subr.mxu0 0.0
    %2217 = vmatpush1.msra.mxu0 0.0
    %2218 = vmatprep.subr.mxu0 0.0
    %2219 = vmatpush1.msra.mxu0 0.0
    %2220 = vmatprep.subr.mxu0 0.0
    %2221 = vmatpush1.msra.mxu0 0.0
    %2222 = vmatprep.subr.mxu0 0.0
    %2223 = vmatpush1.msra.mxu0 0.0
    %2224 = vmatprep.subr.mxu0 0.0
    %2225 = vmatpush1.msra.mxu0 0.0
    %2226 = vmatprep.subr.mxu0 0.0
    %2227 = vmatpush1.msra.mxu0 0.0
    %2228 = vmatprep.subr.mxu0 0.0
    %2229 = vmatpush1.msra.mxu0 0.0
    %2230 = vmatprep.subr.mxu0 0.0
    %2231 = vmatpush1.msra.mxu0 0.0
    %2232 = vmatprep.subr.mxu0 0.0
    %2233 = vmatpush1.msra.mxu0 0.0
    %2234 = vmatprep.subr.mxu0 0.0
    %2235 = vmatpush1.msra.mxu0 0.0
    %2236 = vmatprep.subr.mxu0 0.0
    %2237 = vmatpush1.msra.mxu0 0.0
    %2238 = vmatprep.subr.mxu0 0.0
    %2239 = vmatpush1.msra.mxu0 0.0
    %2240 = vmatprep.subr.mxu0 0.0
    %2241 = vmatpush1.msra.mxu0 0.0
    %2242 = vmatprep.mubr.f32.mxu0 0.0
    %v2243 = vand.u32 %v1849, 4294901760
    %v2244 = vsub.f32 %v1849, %v2243
    %2245 = vmatmul.mubr.f32.gmra.mrb[0].mxu0 %v2244
    %v2246 = vpop.f32.mrb[0].mxu0
    %v2247 = vadd.f32 %v2117, %v2246
    %v2248 = vpop.f32.mrb[0].mxu0
    %v2249 = vadd.f32 %v2119, %v2248
    %2250 = vmatprep.mubr.f32.mxu0 0.0
    %v2251 = vand.u32 %v1852, 4294901760
    %v2252 = vsub.f32 %v1852, %v2251
    %2253 = vmatmul.mubr.f32.gmra.mrb[0].mxu0 %v2252
    %v2254 = vpop.f32.mrb[0].mxu0
    %v2255 = vadd.f32 %v2124, %v2254
    %v2256 = vpop.f32.mrb[0].mxu0
    %v2257 = vadd.f32 %v2126, %v2256
    %2258 = vmatprep.mubr.f32.mxu0 0.0
    %v2259 = vand.u32 %v1855, 4294901760
    %v2260 = vsub.f32 %v1855, %v2259
    %2261 = vmatmul.mubr.f32.gmra.mrb[0].mxu0 %v2260
    %v2262 = vpop.f32.mrb[0].mxu0
    %v2263 = vadd.f32 %v2131, %v2262
    %v2264 = vpop.f32.mrb[0].mxu0
    %v2265 = vadd.f32 %v2133, %v2264
    %2266 = vmatprep.mubr.f32.mxu0 0.0
    %v2267 = vand.u32 %v1858, 4294901760
    %v2268 = vsub.f32 %v1858, %v2267
    %2269 = vmatmul.mubr.f32.gmra.mrb[0].mxu0 %v2268
    %v2270 = vpop.f32.mrb[0].mxu0
    %v2271 = vadd.f32 %v2138, %v2270
    %v2272 = vpop.f32.mrb[0].mxu0
    %v2273 = vadd.f32 %v2140, %v2272
    %2274 = vmatprep.mubr.f32.mxu0 0.0
    %v2275 = vand.u32 %v1861, 4294901760
    %v2276 = vsub.f32 %v1861, %v2275
    %2277 = vmatmul.mubr.f32.gmra.mrb[0].mxu0 %v2276
    %v2278 = vpop.f32.mrb[0].mxu0
    %v2279 = vadd.f32 %v2145, %v2278
    %v2280 = vpop.f32.mrb[0].mxu0
    %v2281 = vadd.f32 %v2147, %v2280
    %2282 = vmatprep.mubr.f32.mxu0 0.0
    %v2283 = vand.u32 %v1864, 4294901760
    %v2284 = vsub.f32 %v1864, %v2283
    %2285 = vmatmul.mubr.f32.gmra.mrb[0].mxu0 %v2284
    %v2286 = vpop.f32.mrb[0].mxu0
    %v2287 = vadd.f32 %v2152, %v2286
    %v2288 = vpop.f32.mrb[0].mxu0
    %v2289 = vadd.f32 %v2154, %v2288
    %2290 = vmatprep.mubr.f32.mxu0 0.0
    %v2291 = vand.u32 %v1867, 4294901760
    %v2292 = vsub.f32 %v1867, %v2291
    %2293 = vmatmul.mubr.f32.gmra.mrb[0].mxu0 %v2292
    %v2294 = vpop.f32.mrb[0].mxu0
    %v2295 = vadd.f32 %v2159, %v2294
    %v2296 = vpop.f32.mrb[0].mxu0
    %v2297 = vadd.f32 %v2161, %v2296
    %2298 = vmatprep.mubr.f32.mxu0 0.0
    %v2299 = vand.u32 %v1870, 4294901760
    %v2300 = vsub.f32 %v1870, %v2299
    %2301 = vmatmul.mubr.f32.gmra.mrb[0].mxu0 %v2300
    %v2302 = vpop.f32.mrb[0].mxu0
    %v2303 = vadd.f32 %v2166, %v2302
    %v2304 = vpop.f32.mrb[0].mxu0
    %v2305 = vadd.f32 %v2168, %v2304
    %2306 = vdwg.mxu0
    %v2307 = vand.u32 %v61, 4294901760
    %2308 = vmatprep.subr.mxu0 %v2307
    %v2309 = vand.u32 %v60, 4294901760
    %2310 = vmatpush1.msra.mxu0 %v2309
    %v2311 = vand.u32 %v63, 4294901760
    %2312 = vmatprep.subr.mxu0 %v2311
    %v2313 = vand.u32 %v62, 4294901760
    %2314 = vmatpush1.msra.mxu0 %v2313
    %2315 = vmatprep.subr.mxu0 0.0
    %2316 = vmatpush1.msra.mxu0 0.0
    %2317 = vmatprep.subr.mxu0 0.0
    %2318 = vmatpush1.msra.mxu0 0.0
    %2319 = vmatprep.subr.mxu0 0.0
    %2320 = vmatpush1.msra.mxu0 0.0
    %2321 = vmatprep.subr.mxu0 0.0
    %2322 = vmatpush1.msra.mxu0 0.0
    %2323 = vmatprep.subr.mxu0 0.0
    %2324 = vmatpush1.msra.mxu0 0.0
    %2325 = vmatprep.subr.mxu0 0.0
    %2326 = vmatpush1.msra.mxu0 0.0
    %2327 = vmatprep.subr.mxu0 0.0
    %2328 = vmatpush1.msra.mxu0 0.0
    %2329 = vmatprep.subr.mxu0 0.0
    %2330 = vmatpush1.msra.mxu0 0.0
    %2331 = vmatprep.subr.mxu0 0.0
    %2332 = vmatpush1.msra.mxu0 0.0
    %2333 = vmatprep.subr.mxu0 0.0
    %2334 = vmatpush1.msra.mxu0 0.0
    %2335 = vmatprep.subr.mxu0 0.0
    %2336 = vmatpush1.msra.mxu0 0.0
    %2337 = vmatprep.subr.mxu0 0.0
    %2338 = vmatpush1.msra.mxu0 0.0
    %2339 = vmatprep.subr.mxu0 0.0
    %2340 = vmatpush1.msra.mxu0 0.0
    %2341 = vmatprep.subr.mxu0 0.0
    %2342 = vmatpush1.msra.mxu0 0.0
    %2343 = vmatprep.subr.mxu0 0.0
    %2344 = vmatpush1.msra.mxu0 0.0
    %2345 = vmatprep.subr.mxu0 0.0
    %2346 = vmatpush1.msra.mxu0 0.0
    %2347 = vmatprep.subr.mxu0 0.0
    %2348 = vmatpush1.msra.mxu0 0.0
    %2349 = vmatprep.subr.mxu0 0.0
    %2350 = vmatpush1.msra.mxu0 0.0
    %2351 = vmatprep.subr.mxu0 0.0
    %2352 = vmatpush1.msra.mxu0 0.0
    %2353 = vmatprep.subr.mxu0 0.0
    %2354 = vmatpush1.msra.mxu0 0.0
    %2355 = vmatprep.subr.mxu0 0.0
    %2356 = vmatpush1.msra.mxu0 0.0
    %2357 = vmatprep.subr.mxu0 0.0
    %2358 = vmatpush1.msra.mxu0 0.0
    %2359 = vmatprep.subr.mxu0 0.0
    %2360 = vmatpush1.msra.mxu0 0.0
    %2361 = vmatprep.subr.mxu0 0.0
    %2362 = vmatpush1.msra.mxu0 0.0
    %2363 = vmatprep.subr.mxu0 0.0
    %2364 = vmatpush1.msra.mxu0 0.0
    %2365 = vmatprep.subr.mxu0 0.0
    %2366 = vmatpush1.msra.mxu0 0.0
    %2367 = vmatprep.subr.mxu0 0.0
    %2368 = vmatpush1.msra.mxu0 0.0
    %2369 = vmatprep.subr.mxu0 0.0
    %2370 = vmatpush1.msra.mxu0 0.0
    %2371 = vmatprep.subr.mxu0 0.0
    %2372 = vmatpush1.msra.mxu0 0.0
    %2373 = vmatprep.subr.mxu0 0.0
    %2374 = vmatpush1.msra.mxu0 0.0
    %2375 = vmatprep.mubr.f32.mxu0 0.0
    %v2376 = vand.u32 %v1849, 4294901760
    %v2377 = vsub.f32 %v1849, %v2376
    %v2378 = vand.u32 %v2377, 4294901760
    %2379 = vmatmul.mubr.f32.gmra.mrb[0].mxu0 %v2378
    %v2380 = vpop.f32.mrb[0].mxu0
    %v2381 = vadd.f32 %v2247, %v2380
    %v2382 = vpop.f32.mrb[0].mxu0
    %v2383 = vadd.f32 %v2249, %v2382
    %2384 = vmatprep.mubr.f32.mxu0 0.0
    %v2385 = vand.u32 %v1852, 4294901760
    %v2386 = vsub.f32 %v1852, %v2385
    %v2387 = vand.u32 %v2386, 4294901760
    %2388 = vmatmul.mubr.f32.gmra.mrb[0].mxu0 %v2387
    %v2389 = vpop.f32.mrb[0].mxu0
    %v2390 = vadd.f32 %v2255, %v2389
    %v2391 = vpop.f32.mrb[0].mxu0
    %v2392 = vadd.f32 %v2257, %v2391
    %2393 = vmatprep.mubr.f32.mxu0 0.0
    %v2394 = vand.u32 %v1855, 4294901760
    %v2395 = vsub.f32 %v1855, %v2394
    %v2396 = vand.u32 %v2395, 4294901760
    %2397 = vmatmul.mubr.f32.gmra.mrb[0].mxu0 %v2396
    %v2398 = vpop.f32.mrb[0].mxu0
    %v2399 = vadd.f32 %v2263, %v2398
    %v2400 = vpop.f32.mrb[0].mxu0
    %v2401 = vadd.f32 %v2265, %v2400
    %2402 = vmatprep.mubr.f32.mxu0 0.0
    %v2403 = vand.u32 %v1858, 4294901760
    %v2404 = vsub.f32 %v1858, %v2403
    %v2405 = vand.u32 %v2404, 4294901760
    %2406 = vmatmul.mubr.f32.gmra.mrb[0].mxu0 %v2405
    %v2407 = vpop.f32.mrb[0].mxu0
    %v2408 = vadd.f32 %v2271, %v2407
    %v2409 = vpop.f32.mrb[0].mxu0
    %v2410 = vadd.f32 %v2273, %v2409
    %2411 = vmatprep.mubr.f32.mxu0 0.0
    %v2412 = vand.u32 %v1861, 4294901760
    %v2413 = vsub.f32 %v1861, %v2412
    %v2414 = vand.u32 %v2413, 4294901760
    %2415 = vmatmul.mubr.f32.gmra.mrb[0].mxu0 %v2414
    %v2416 = vpop.f32.mrb[0].mxu0
    %v2417 = vadd.f32 %v2279, %v2416
    %v2418 = vpop.f32.mrb[0].mxu0
    %v2419 = vadd.f32 %v2281, %v2418
    %2420 = vmatprep.mubr.f32.mxu0 0.0
    %v2421 = vand.u32 %v1864, 4294901760
    %v2422 = vsub.f32 %v1864, %v2421
    %v2423 = vand.u32 %v2422, 4294901760
    %2424 = vmatmul.mubr.f32.gmra.mrb[0].mxu0 %v2423
    %v2425 = vpop.f32.mrb[0].mxu0
    %v2426 = vadd.f32 %v2287, %v2425
    %v2427 = vpop.f32.mrb[0].mxu0
    %v2428 = vadd.f32 %v2289, %v2427
    %2429 = vmatprep.mubr.f32.mxu0 0.0
    %v2430 = vand.u32 %v1867, 4294901760
    %v2431 = vsub.f32 %v1867, %v2430
    %v2432 = vand.u32 %v2431, 4294901760
    %2433 = vmatmul.mubr.f32.gmra.mrb[0].mxu0 %v2432
    %v2434 = vpop.f32.mrb[0].mxu0
    %v2435 = vadd.f32 %v2295, %v2434
    %v2436 = vpop.f32.mrb[0].mxu0
    %v2437 = vadd.f32 %v2297, %v2436
    %2438 = vmatprep.mubr.f32.mxu0 0.0
    %v2439 = vand.u32 %v1870, 4294901760
    %v2440 = vsub.f32 %v1870, %v2439
    %v2441 = vand.u32 %v2440, 4294901760
    %2442 = vmatmul.mubr.f32.gmra.mrb[0].mxu0 %v2441
    %v2443 = vpop.f32.mrb[0].mxu0
    %v2444 = vadd.f32 %v2303, %v2443
    %v2445 = vpop.f32.mrb[0].mxu0
    %v2446 = vadd.f32 %v2305, %v2445
    %2447 = vdwg.mxu0
    %v2448 = vand.u32 %v61, 4294901760
    %v2449 = vsub.f32 %v61, %v2448
    %v2450 = vand.u32 %v2449, 4294901760
    %2451 = vmatprep.subr.mxu0 %v2450
    %v2452 = vand.u32 %v60, 4294901760
    %v2453 = vsub.f32 %v60, %v2452
    %v2454 = vand.u32 %v2453, 4294901760
    %2455 = vmatpush1.msra.mxu0 %v2454
    %v2456 = vand.u32 %v63, 4294901760
    %v2457 = vsub.f32 %v63, %v2456
    %v2458 = vand.u32 %v2457, 4294901760
    %2459 = vmatprep.subr.mxu0 %v2458
    %v2460 = vand.u32 %v62, 4294901760
    %v2461 = vsub.f32 %v62, %v2460
    %v2462 = vand.u32 %v2461, 4294901760
    %2463 = vmatpush1.msra.mxu0 %v2462
    %2464 = vmatprep.subr.mxu0 0.0
    %2465 = vmatpush1.msra.mxu0 0.0
    %2466 = vmatprep.subr.mxu0 0.0
    %2467 = vmatpush1.msra.mxu0 0.0
    %2468 = vmatprep.subr.mxu0 0.0
    %2469 = vmatpush1.msra.mxu0 0.0
    %2470 = vmatprep.subr.mxu0 0.0
    %2471 = vmatpush1.msra.mxu0 0.0
    %2472 = vmatprep.subr.mxu0 0.0
    %2473 = vmatpush1.msra.mxu0 0.0
    %2474 = vmatprep.subr.mxu0 0.0
    %2475 = vmatpush1.msra.mxu0 0.0
    %2476 = vmatprep.subr.mxu0 0.0
    %2477 = vmatpush1.msra.mxu0 0.0
    %2478 = vmatprep.subr.mxu0 0.0
    %2479 = vmatpush1.msra.mxu0 0.0
    %2480 = vmatprep.subr.mxu0 0.0
    %2481 = vmatpush1.msra.mxu0 0.0
    %2482 = vmatprep.subr.mxu0 0.0
    %2483 = vmatpush1.msra.mxu0 0.0
    %2484 = vmatprep.subr.mxu0 0.0
    %2485 = vmatpush1.msra.mxu0 0.0
    %2486 = vmatprep.subr.mxu0 0.0
    %2487 = vmatpush1.msra.mxu0 0.0
    %2488 = vmatprep.subr.mxu0 0.0
    %2489 = vmatpush1.msra.mxu0 0.0
    %2490 = vmatprep.subr.mxu0 0.0
    %2491 = vmatpush1.msra.mxu0 0.0
    %2492 = vmatprep.subr.mxu0 0.0
    %2493 = vmatpush1.msra.mxu0 0.0
    %2494 = vmatprep.subr.mxu0 0.0
    %2495 = vmatpush1.msra.mxu0 0.0
    %2496 = vmatprep.subr.mxu0 0.0
    %2497 = vmatpush1.msra.mxu0 0.0
    %2498 = vmatprep.subr.mxu0 0.0
    %2499 = vmatpush1.msra.mxu0 0.0
    %2500 = vmatprep.subr.mxu0 0.0
    %2501 = vmatpush1.msra.mxu0 0.0
    %2502 = vmatprep.subr.mxu0 0.0
    %2503 = vmatpush1.msra.mxu0 0.0
    %2504 = vmatprep.subr.mxu0 0.0
    %2505 = vmatpush1.msra.mxu0 0.0
    %2506 = vmatprep.subr.mxu0 0.0
    %2507 = vmatpush1.msra.mxu0 0.0
    %2508 = vmatprep.subr.mxu0 0.0
    %2509 = vmatpush1.msra.mxu0 0.0
    %2510 = vmatprep.subr.mxu0 0.0
    %2511 = vmatpush1.msra.mxu0 0.0
    %2512 = vmatprep.subr.mxu0 0.0
    %2513 = vmatpush1.msra.mxu0 0.0
    %2514 = vmatprep.subr.mxu0 0.0
    %2515 = vmatpush1.msra.mxu0 0.0
    %2516 = vmatprep.subr.mxu0 0.0
    %2517 = vmatpush1.msra.mxu0 0.0
    %2518 = vmatprep.subr.mxu0 0.0
    %2519 = vmatpush1.msra.mxu0 0.0
    %2520 = vmatprep.subr.mxu0 0.0
    %2521 = vmatpush1.msra.mxu0 0.0
    %2522 = vmatprep.subr.mxu0 0.0
    %2523 = vmatpush1.msra.mxu0 0.0
    %2524 = vmatprep.mubr.f32.mxu0 0.0
    %v2525 = vand.u32 %v1849, 4294901760
    %2526 = vmatmul.mubr.f32.gmra.mrb[0].mxu0 %v2525
    %v2527 = vpop.f32.mrb[0].mxu0
    %v2528 = vadd.f32 %v2381, %v2527
    %v2529 = vpop.f32.mrb[0].mxu0
    %v2530 = vadd.f32 %v2383, %v2529
    %2531 = vmatprep.mubr.f32.mxu0 0.0
    %v2532 = vand.u32 %v1852, 4294901760
    %2533 = vmatmul.mubr.f32.gmra.mrb[0].mxu0 %v2532
    %v2534 = vpop.f32.mrb[0].mxu0
    %v2535 = vadd.f32 %v2390, %v2534
    %v2536 = vpop.f32.mrb[0].mxu0
    %v2537 = vadd.f32 %v2392, %v2536
    %2538 = vmatprep.mubr.f32.mxu0 0.0
    %v2539 = vand.u32 %v1855, 4294901760
    %2540 = vmatmul.mubr.f32.gmra.mrb[0].mxu0 %v2539
    %v2541 = vpop.f32.mrb[0].mxu0
    %v2542 = vadd.f32 %v2399, %v2541
    %v2543 = vpop.f32.mrb[0].mxu0
    %v2544 = vadd.f32 %v2401, %v2543
    %2545 = vmatprep.mubr.f32.mxu0 0.0
    %v2546 = vand.u32 %v1858, 4294901760
    %2547 = vmatmul.mubr.f32.gmra.mrb[0].mxu0 %v2546
    %v2548 = vpop.f32.mrb[0].mxu0
    %v2549 = vadd.f32 %v2408, %v2548
    %v2550 = vpop.f32.mrb[0].mxu0
    %v2551 = vadd.f32 %v2410, %v2550
    %2552 = vmatprep.mubr.f32.mxu0 0.0
    %v2553 = vand.u32 %v1861, 4294901760
    %2554 = vmatmul.mubr.f32.gmra.mrb[0].mxu0 %v2553
    %v2555 = vpop.f32.mrb[0].mxu0
    %v2556 = vadd.f32 %v2417, %v2555
    %v2557 = vpop.f32.mrb[0].mxu0
    %v2558 = vadd.f32 %v2419, %v2557
    %2559 = vmatprep.mubr.f32.mxu0 0.0
    %v2560 = vand.u32 %v1864, 4294901760
    %2561 = vmatmul.mubr.f32.gmra.mrb[0].mxu0 %v2560
    %v2562 = vpop.f32.mrb[0].mxu0
    %v2563 = vadd.f32 %v2426, %v2562
    %v2564 = vpop.f32.mrb[0].mxu0
    %v2565 = vadd.f32 %v2428, %v2564
    %2566 = vmatprep.mubr.f32.mxu0 0.0
    %v2567 = vand.u32 %v1867, 4294901760
    %2568 = vmatmul.mubr.f32.gmra.mrb[0].mxu0 %v2567
    %v2569 = vpop.f32.mrb[0].mxu0
    %v2570 = vadd.f32 %v2435, %v2569
    %v2571 = vpop.f32.mrb[0].mxu0
    %v2572 = vadd.f32 %v2437, %v2571
    %2573 = vmatprep.mubr.f32.mxu0 0.0
    %v2574 = vand.u32 %v1870, 4294901760
    %2575 = vmatmul.mubr.f32.gmra.mrb[0].mxu0 %v2574
    %v2576 = vpop.f32.mrb[0].mxu0
    %v2577 = vadd.f32 %v2444, %v2576
    %v2578 = vpop.f32.mrb[0].mxu0
    %v2579 = vadd.f32 %v2446, %v2578
    %2580 = vdwg.mxu0
    %v2581 = vand.u32 %v61, 4294901760
    %2582 = vmatprep.subr.mxu0 %v2581
    %v2583 = vand.u32 %v60, 4294901760
    %2584 = vmatpush1.msra.mxu0 %v2583
    %v2585 = vand.u32 %v63, 4294901760
    %2586 = vmatprep.subr.mxu0 %v2585
    %v2587 = vand.u32 %v62, 4294901760
    %2588 = vmatpush1.msra.mxu0 %v2587
    %2589 = vmatprep.subr.mxu0 0.0
    %2590 = vmatpush1.msra.mxu0 0.0
    %2591 = vmatprep.subr.mxu0 0.0
    %2592 = vmatpush1.msra.mxu0 0.0
    %2593 = vmatprep.subr.mxu0 0.0
    %2594 = vmatpush1.msra.mxu0 0.0
    %2595 = vmatprep.subr.mxu0 0.0
    %2596 = vmatpush1.msra.mxu0 0.0
    %2597 = vmatprep.subr.mxu0 0.0
    %2598 = vmatpush1.msra.mxu0 0.0
    %2599 = vmatprep.subr.mxu0 0.0
    %2600 = vmatpush1.msra.mxu0 0.0
    %2601 = vmatprep.subr.mxu0 0.0
    %2602 = vmatpush1.msra.mxu0 0.0
    %2603 = vmatprep.subr.mxu0 0.0
    %2604 = vmatpush1.msra.mxu0 0.0
    %2605 = vmatprep.subr.mxu0 0.0
    %2606 = vmatpush1.msra.mxu0 0.0
    %2607 = vmatprep.subr.mxu0 0.0
    %2608 = vmatpush1.msra.mxu0 0.0
    %2609 = vmatprep.subr.mxu0 0.0
    %2610 = vmatpush1.msra.mxu0 0.0
    %2611 = vmatprep.subr.mxu0 0.0
    %2612 = vmatpush1.msra.mxu0 0.0
    %2613 = vmatprep.subr.mxu0 0.0
    %2614 = vmatpush1.msra.mxu0 0.0
    %2615 = vmatprep.subr.mxu0 0.0
    %2616 = vmatpush1.msra.mxu0 0.0
    %2617 = vmatprep.subr.mxu0 0.0
    %2618 = vmatpush1.msra.mxu0 0.0
    %2619 = vmatprep.subr.mxu0 0.0
    %2620 = vmatpush1.msra.mxu0 0.0
    %2621 = vmatprep.subr.mxu0 0.0
    %2622 = vmatpush1.msra.mxu0 0.0
    %2623 = vmatprep.subr.mxu0 0.0
    %2624 = vmatpush1.msra.mxu0 0.0
    %2625 = vmatprep.subr.mxu0 0.0
    %2626 = vmatpush1.msra.mxu0 0.0
    %2627 = vmatprep.subr.mxu0 0.0
    %2628 = vmatpush1.msra.mxu0 0.0
    %2629 = vmatprep.subr.mxu0 0.0
    %2630 = vmatpush1.msra.mxu0 0.0
    %2631 = vmatprep.subr.mxu0 0.0
    %2632 = vmatpush1.msra.mxu0 0.0
    %2633 = vmatprep.subr.mxu0 0.0
    %2634 = vmatpush1.msra.mxu0 0.0
    %2635 = vmatprep.subr.mxu0 0.0
    %2636 = vmatpush1.msra.mxu0 0.0
    %2637 = vmatprep.subr.mxu0 0.0
    %2638 = vmatpush1.msra.mxu0 0.0
    %2639 = vmatprep.subr.mxu0 0.0
    %2640 = vmatpush1.msra.mxu0 0.0
    %2641 = vmatprep.subr.mxu0 0.0
    %2642 = vmatpush1.msra.mxu0 0.0
    %2643 = vmatprep.subr.mxu0 0.0
    %2644 = vmatpush1.msra.mxu0 0.0
    %2645 = vmatprep.subr.mxu0 0.0
    %2646 = vmatpush1.msra.mxu0 0.0
    %2647 = vmatprep.subr.mxu0 0.0
    %2648 = vmatpush1.msra.mxu0 0.0
    %2649 = vmatprep.mubr.f32.mxu0 0.0
    %v2650 = vand.u32 %v1849, 4294901760
    %2651 = vmatmul.mubr.f32.gmra.mrb[0].mxu0 %v2650
    %v2652 = vpop.f32.mrb[0].mxu0
    %v2653 = vadd.f32 %v2528, %v2652
    %v2654 = vpop.f32.mrb[0].mxu0
    %v2655 = vadd.f32 %v2530, %v2654
    %2656 = vmatprep.mubr.f32.mxu0 0.0
    %v2657 = vand.u32 %v1852, 4294901760
    %2658 = vmatmul.mubr.f32.gmra.mrb[0].mxu0 %v2657
    %v2659 = vpop.f32.mrb[0].mxu0
    %v2660 = vadd.f32 %v2535, %v2659
    %v2661 = vpop.f32.mrb[0].mxu0
    %v2662 = vadd.f32 %v2537, %v2661
    %2663 = vmatprep.mubr.f32.mxu0 0.0
    %v2664 = vand.u32 %v1855, 4294901760
    %2665 = vmatmul.mubr.f32.gmra.mrb[0].mxu0 %v2664
    %v2666 = vpop.f32.mrb[0].mxu0
    %v2667 = vadd.f32 %v2542, %v2666
    %v2668 = vpop.f32.mrb[0].mxu0
    %v2669 = vadd.f32 %v2544, %v2668
    %2670 = vmatprep.mubr.f32.mxu0 0.0
    %v2671 = vand.u32 %v1858, 4294901760
    %2672 = vmatmul.mubr.f32.gmra.mrb[0].mxu0 %v2671
    %v2673 = vpop.f32.mrb[0].mxu0
    %v2674 = vadd.f32 %v2549, %v2673
    %v2675 = vpop.f32.mrb[0].mxu0
    %v2676 = vadd.f32 %v2551, %v2675
    %2677 = vmatprep.mubr.f32.mxu0 0.0
    %v2678 = vand.u32 %v1861, 4294901760
    %2679 = vmatmul.mubr.f32.gmra.mrb[0].mxu0 %v2678
    %v2680 = vpop.f32.mrb[0].mxu0
    %v2681 = vadd.f32 %v2556, %v2680
    %v2682 = vpop.f32.mrb[0].mxu0
    %v2683 = vadd.f32 %v2558, %v2682
    %2684 = vmatprep.mubr.f32.mxu0 0.0
    %v2685 = vand.u32 %v1864, 4294901760
    %2686 = vmatmul.mubr.f32.gmra.mrb[0].mxu0 %v2685
    %v2687 = vpop.f32.mrb[0].mxu0
    %v2688 = vadd.f32 %v2563, %v2687
    %v2689 = vpop.f32.mrb[0].mxu0
    %v2690 = vadd.f32 %v2565, %v2689
    %2691 = vmatprep.mubr.f32.mxu0 0.0
    %v2692 = vand.u32 %v1867, 4294901760
    %2693 = vmatmul.mubr.f32.gmra.mrb[0].mxu0 %v2692
    %v2694 = vpop.f32.mrb[0].mxu0
    %v2695 = vadd.f32 %v2570, %v2694
    %v2696 = vpop.f32.mrb[0].mxu0
    %v2697 = vadd.f32 %v2572, %v2696
    %2698 = vmatprep.mubr.f32.mxu0 0.0
    %v2699 = vand.u32 %v1870, 4294901760
    %2700 = vmatmul.mubr.f32.gmra.mrb[0].mxu0 %v2699
    %v2701 = vpop.f32.mrb[0].mxu0
    %v2702 = vadd.f32 %v2577, %v2701
    %v2703 = vpop.f32.mrb[0].mxu0
    %v2704 = vadd.f32 %v2579, %v2703
    %2705 = vdwg.mxu0
    %v2707 = vsel %vm1847, %v1832, 0
    %v2710 = vsel %vm1847, %v1834, 0
    %v2713 = vsel %vm1847, %v1836, 0
    %v2716 = vsel %vm1847, %v1838, 0
    %v2719 = vsel %vm1847, %v1840, 0
    %v2722 = vsel %vm1847, %v1842, 0
    %v2725 = vsel %vm1847, %v1844, 0
    %v2728 = vsel %vm1847, %v1846, 0
    %v2730 = vand.u32 %v65, 4294901760
    %2731 = vmatprep.subr.mxu0 %v2730
    %v2732 = vand.u32 %v64, 4294901760
    %2733 = vmatpush1.msra.mxu0 %v2732
    %v2734 = vand.u32 %v67, 4294901760
    %2735 = vmatprep.subr.mxu0 %v2734
    %v2736 = vand.u32 %v66, 4294901760
    %2737 = vmatpush1.msra.mxu0 %v2736
    %2738 = vmatprep.subr.mxu0 0.0
    %2739 = vmatpush1.msra.mxu0 0.0
    %2740 = vmatprep.subr.mxu0 0.0
    %2741 = vmatpush1.msra.mxu0 0.0
    %2742 = vmatprep.subr.mxu0 0.0
    %2743 = vmatpush1.msra.mxu0 0.0
    %2744 = vmatprep.subr.mxu0 0.0
    %2745 = vmatpush1.msra.mxu0 0.0
    %2746 = vmatprep.subr.mxu0 0.0
    %2747 = vmatpush1.msra.mxu0 0.0
    %2748 = vmatprep.subr.mxu0 0.0
    %2749 = vmatpush1.msra.mxu0 0.0
    %2750 = vmatprep.subr.mxu0 0.0
    %2751 = vmatpush1.msra.mxu0 0.0
    %2752 = vmatprep.subr.mxu0 0.0
    %2753 = vmatpush1.msra.mxu0 0.0
    %2754 = vmatprep.subr.mxu0 0.0
    %2755 = vmatpush1.msra.mxu0 0.0
    %2756 = vmatprep.subr.mxu0 0.0
    %2757 = vmatpush1.msra.mxu0 0.0
    %2758 = vmatprep.subr.mxu0 0.0
    %2759 = vmatpush1.msra.mxu0 0.0
    %2760 = vmatprep.subr.mxu0 0.0
    %2761 = vmatpush1.msra.mxu0 0.0
    %2762 = vmatprep.subr.mxu0 0.0
    %2763 = vmatpush1.msra.mxu0 0.0
    %2764 = vmatprep.subr.mxu0 0.0
    %2765 = vmatpush1.msra.mxu0 0.0
    %2766 = vmatprep.subr.mxu0 0.0
    %2767 = vmatpush1.msra.mxu0 0.0
    %2768 = vmatprep.subr.mxu0 0.0
    %2769 = vmatpush1.msra.mxu0 0.0
    %2770 = vmatprep.subr.mxu0 0.0
    %2771 = vmatpush1.msra.mxu0 0.0
    %2772 = vmatprep.subr.mxu0 0.0
    %2773 = vmatpush1.msra.mxu0 0.0
    %2774 = vmatprep.subr.mxu0 0.0
    %2775 = vmatpush1.msra.mxu0 0.0
    %2776 = vmatprep.subr.mxu0 0.0
    %2777 = vmatpush1.msra.mxu0 0.0
    %2778 = vmatprep.subr.mxu0 0.0
    %2779 = vmatpush1.msra.mxu0 0.0
    %2780 = vmatprep.subr.mxu0 0.0
    %2781 = vmatpush1.msra.mxu0 0.0
    %2782 = vmatprep.subr.mxu0 0.0
    %2783 = vmatpush1.msra.mxu0 0.0
    %2784 = vmatprep.subr.mxu0 0.0
    %2785 = vmatpush1.msra.mxu0 0.0
    %2786 = vmatprep.subr.mxu0 0.0
    %2787 = vmatpush1.msra.mxu0 0.0
    %2788 = vmatprep.subr.mxu0 0.0
    %2789 = vmatpush1.msra.mxu0 0.0
    %2790 = vmatprep.subr.mxu0 0.0
    %2791 = vmatpush1.msra.mxu0 0.0
    %2792 = vmatprep.subr.mxu0 0.0
    %2793 = vmatpush1.msra.mxu0 0.0
    %2794 = vmatprep.subr.mxu0 0.0
    %2795 = vmatpush1.msra.mxu0 0.0
    %2796 = vmatprep.subr.mxu0 0.0
    %2797 = vmatpush1.msra.mxu0 0.0
    %2798 = vmatprep.mubr.f32.mxu0 0.0
    %v2799 = vand.u32 %v2707, 4294901760
    %v2800 = vsub.f32 %v2707, %v2799
    %v2801 = vand.u32 %v2800, 4294901760
    %v2802 = vsub.f32 %v2800, %v2801
    %v2803 = vand.u32 %v2802, 4294901760
    %2804 = vmatmul.mubr.f32.gmra.mrb[0].mxu0 %v2803
    %v2805 = vpop.f32.mrb[0].mxu0
    %v2806 = vadd.f32 0.0, %v2805
    %v2807 = vpop.f32.mrb[0].mxu0
    %v2808 = vadd.f32 0.0, %v2807
    %2809 = vmatprep.mubr.f32.mxu0 0.0
    %v2810 = vand.u32 %v2710, 4294901760
    %v2811 = vsub.f32 %v2710, %v2810
    %v2812 = vand.u32 %v2811, 4294901760
    %v2813 = vsub.f32 %v2811, %v2812
    %v2814 = vand.u32 %v2813, 4294901760
    %2815 = vmatmul.mubr.f32.gmra.mrb[0].mxu0 %v2814
    %v2816 = vpop.f32.mrb[0].mxu0
    %v2817 = vadd.f32 0.0, %v2816
    %v2818 = vpop.f32.mrb[0].mxu0
    %v2819 = vadd.f32 0.0, %v2818
    %2820 = vmatprep.mubr.f32.mxu0 0.0
    %v2821 = vand.u32 %v2713, 4294901760
    %v2822 = vsub.f32 %v2713, %v2821
    %v2823 = vand.u32 %v2822, 4294901760
    %v2824 = vsub.f32 %v2822, %v2823
    %v2825 = vand.u32 %v2824, 4294901760
    %2826 = vmatmul.mubr.f32.gmra.mrb[0].mxu0 %v2825
    %v2827 = vpop.f32.mrb[0].mxu0
    %v2828 = vadd.f32 0.0, %v2827
    %v2829 = vpop.f32.mrb[0].mxu0
    %v2830 = vadd.f32 0.0, %v2829
    %2831 = vmatprep.mubr.f32.mxu0 0.0
    %v2832 = vand.u32 %v2716, 4294901760
    %v2833 = vsub.f32 %v2716, %v2832
    %v2834 = vand.u32 %v2833, 4294901760
    %v2835 = vsub.f32 %v2833, %v2834
    %v2836 = vand.u32 %v2835, 4294901760
    %2837 = vmatmul.mubr.f32.gmra.mrb[0].mxu0 %v2836
    %v2838 = vpop.f32.mrb[0].mxu0
    %v2839 = vadd.f32 0.0, %v2838
    %v2840 = vpop.f32.mrb[0].mxu0
    %v2841 = vadd.f32 0.0, %v2840
    %2842 = vmatprep.mubr.f32.mxu0 0.0
    %v2843 = vand.u32 %v2719, 4294901760
    %v2844 = vsub.f32 %v2719, %v2843
    %v2845 = vand.u32 %v2844, 4294901760
    %v2846 = vsub.f32 %v2844, %v2845
    %v2847 = vand.u32 %v2846, 4294901760
    %2848 = vmatmul.mubr.f32.gmra.mrb[0].mxu0 %v2847
    %v2849 = vpop.f32.mrb[0].mxu0
    %v2850 = vadd.f32 0.0, %v2849
    %v2851 = vpop.f32.mrb[0].mxu0
    %v2852 = vadd.f32 0.0, %v2851
    %2853 = vmatprep.mubr.f32.mxu0 0.0
    %v2854 = vand.u32 %v2722, 4294901760
    %v2855 = vsub.f32 %v2722, %v2854
    %v2856 = vand.u32 %v2855, 4294901760
    %v2857 = vsub.f32 %v2855, %v2856
    %v2858 = vand.u32 %v2857, 4294901760
    %2859 = vmatmul.mubr.f32.gmra.mrb[0].mxu0 %v2858
    %v2860 = vpop.f32.mrb[0].mxu0
    %v2861 = vadd.f32 0.0, %v2860
    %v2862 = vpop.f32.mrb[0].mxu0
    %v2863 = vadd.f32 0.0, %v2862
    %2864 = vmatprep.mubr.f32.mxu0 0.0
    %v2865 = vand.u32 %v2725, 4294901760
    %v2866 = vsub.f32 %v2725, %v2865
    %v2867 = vand.u32 %v2866, 4294901760
    %v2868 = vsub.f32 %v2866, %v2867
    %v2869 = vand.u32 %v2868, 4294901760
    %2870 = vmatmul.mubr.f32.gmra.mrb[0].mxu0 %v2869
    %v2871 = vpop.f32.mrb[0].mxu0
    %v2872 = vadd.f32 0.0, %v2871
    %v2873 = vpop.f32.mrb[0].mxu0
    %v2874 = vadd.f32 0.0, %v2873
    %2875 = vmatprep.mubr.f32.mxu0 0.0
    %v2876 = vand.u32 %v2728, 4294901760
    %v2877 = vsub.f32 %v2728, %v2876
    %v2878 = vand.u32 %v2877, 4294901760
    %v2879 = vsub.f32 %v2877, %v2878
    %v2880 = vand.u32 %v2879, 4294901760
    %2881 = vmatmul.mubr.f32.gmra.mrb[0].mxu0 %v2880
    %v2882 = vpop.f32.mrb[0].mxu0
    %v2883 = vadd.f32 0.0, %v2882
    %v2884 = vpop.f32.mrb[0].mxu0
    %v2885 = vadd.f32 0.0, %v2884
    %2886 = vdwg.mxu0
    %v2887 = vand.u32 %v65, 4294901760
    %v2888 = vsub.f32 %v65, %v2887
    %v2889 = vand.u32 %v2888, 4294901760
    %v2890 = vsub.f32 %v2888, %v2889
    %v2891 = vand.u32 %v2890, 4294901760
    %2892 = vmatprep.subr.mxu0 %v2891
    %v2893 = vand.u32 %v64, 4294901760
    %v2894 = vsub.f32 %v64, %v2893
    %v2895 = vand.u32 %v2894, 4294901760
    %v2896 = vsub.f32 %v2894, %v2895
    %v2897 = vand.u32 %v2896, 4294901760
    %2898 = vmatpush1.msra.mxu0 %v2897
    %v2899 = vand.u32 %v67, 4294901760
    %v2900 = vsub.f32 %v67, %v2899
    %v2901 = vand.u32 %v2900, 4294901760
    %v2902 = vsub.f32 %v2900, %v2901
    %v2903 = vand.u32 %v2902, 4294901760
    %2904 = vmatprep.subr.mxu0 %v2903
    %v2905 = vand.u32 %v66, 4294901760
    %v2906 = vsub.f32 %v66, %v2905
    %v2907 = vand.u32 %v2906, 4294901760
    %v2908 = vsub.f32 %v2906, %v2907
    %v2909 = vand.u32 %v2908, 4294901760
    %2910 = vmatpush1.msra.mxu0 %v2909
    %2911 = vmatprep.subr.mxu0 0.0
    %2912 = vmatpush1.msra.mxu0 0.0
    %2913 = vmatprep.subr.mxu0 0.0
    %2914 = vmatpush1.msra.mxu0 0.0
    %2915 = vmatprep.subr.mxu0 0.0
    %2916 = vmatpush1.msra.mxu0 0.0
    %2917 = vmatprep.subr.mxu0 0.0
    %2918 = vmatpush1.msra.mxu0 0.0
    %2919 = vmatprep.subr.mxu0 0.0
    %2920 = vmatpush1.msra.mxu0 0.0
    %2921 = vmatprep.subr.mxu0 0.0
    %2922 = vmatpush1.msra.mxu0 0.0
    %2923 = vmatprep.subr.mxu0 0.0
    %2924 = vmatpush1.msra.mxu0 0.0
    %2925 = vmatprep.subr.mxu0 0.0
    %2926 = vmatpush1.msra.mxu0 0.0
    %2927 = vmatprep.subr.mxu0 0.0
    %2928 = vmatpush1.msra.mxu0 0.0
    %2929 = vmatprep.subr.mxu0 0.0
    %2930 = vmatpush1.msra.mxu0 0.0
    %2931 = vmatprep.subr.mxu0 0.0
    %2932 = vmatpush1.msra.mxu0 0.0
    %2933 = vmatprep.subr.mxu0 0.0
    %2934 = vmatpush1.msra.mxu0 0.0
    %2935 = vmatprep.subr.mxu0 0.0
    %2936 = vmatpush1.msra.mxu0 0.0
    %2937 = vmatprep.subr.mxu0 0.0
    %2938 = vmatpush1.msra.mxu0 0.0
    %2939 = vmatprep.subr.mxu0 0.0
    %2940 = vmatpush1.msra.mxu0 0.0
    %2941 = vmatprep.subr.mxu0 0.0
    %2942 = vmatpush1.msra.mxu0 0.0
    %2943 = vmatprep.subr.mxu0 0.0
    %2944 = vmatpush1.msra.mxu0 0.0
    %2945 = vmatprep.subr.mxu0 0.0
    %2946 = vmatpush1.msra.mxu0 0.0
    %2947 = vmatprep.subr.mxu0 0.0
    %2948 = vmatpush1.msra.mxu0 0.0
    %2949 = vmatprep.subr.mxu0 0.0
    %2950 = vmatpush1.msra.mxu0 0.0
    %2951 = vmatprep.subr.mxu0 0.0
    %2952 = vmatpush1.msra.mxu0 0.0
    %2953 = vmatprep.subr.mxu0 0.0
    %2954 = vmatpush1.msra.mxu0 0.0
    %2955 = vmatprep.subr.mxu0 0.0
    %2956 = vmatpush1.msra.mxu0 0.0
    %2957 = vmatprep.subr.mxu0 0.0
    %2958 = vmatpush1.msra.mxu0 0.0
    %2959 = vmatprep.subr.mxu0 0.0
    %2960 = vmatpush1.msra.mxu0 0.0
    %2961 = vmatprep.subr.mxu0 0.0
    %2962 = vmatpush1.msra.mxu0 0.0
    %2963 = vmatprep.subr.mxu0 0.0
    %2964 = vmatpush1.msra.mxu0 0.0
    %2965 = vmatprep.subr.mxu0 0.0
    %2966 = vmatpush1.msra.mxu0 0.0
    %2967 = vmatprep.subr.mxu0 0.0
    %2968 = vmatpush1.msra.mxu0 0.0
    %2969 = vmatprep.subr.mxu0 0.0
    %2970 = vmatpush1.msra.mxu0 0.0
    %2971 = vmatprep.mubr.f32.mxu0 0.0
    %v2972 = vand.u32 %v2707, 4294901760
    %2973 = vmatmul.mubr.f32.gmra.mrb[0].mxu0 %v2972
    %v2974 = vpop.f32.mrb[0].mxu0
    %v2975 = vadd.f32 %v2806, %v2974
    %v2976 = vpop.f32.mrb[0].mxu0
    %v2977 = vadd.f32 %v2808, %v2976
    %2978 = vmatprep.mubr.f32.mxu0 0.0
    %v2979 = vand.u32 %v2710, 4294901760
    %2980 = vmatmul.mubr.f32.gmra.mrb[0].mxu0 %v2979
    %v2981 = vpop.f32.mrb[0].mxu0
    %v2982 = vadd.f32 %v2817, %v2981
    %v2983 = vpop.f32.mrb[0].mxu0
    %v2984 = vadd.f32 %v2819, %v2983
    %2985 = vmatprep.mubr.f32.mxu0 0.0
    %v2986 = vand.u32 %v2713, 4294901760
    %2987 = vmatmul.mubr.f32.gmra.mrb[0].mxu0 %v2986
    %v2988 = vpop.f32.mrb[0].mxu0
    %v2989 = vadd.f32 %v2828, %v2988
    %v2990 = vpop.f32.mrb[0].mxu0
    %v2991 = vadd.f32 %v2830, %v2990
    %2992 = vmatprep.mubr.f32.mxu0 0.0
    %v2993 = vand.u32 %v2716, 4294901760
    %2994 = vmatmul.mubr.f32.gmra.mrb[0].mxu0 %v2993
    %v2995 = vpop.f32.mrb[0].mxu0
    %v2996 = vadd.f32 %v2839, %v2995
    %v2997 = vpop.f32.mrb[0].mxu0
    %v2998 = vadd.f32 %v2841, %v2997
    %2999 = vmatprep.mubr.f32.mxu0 0.0
    %v3000 = vand.u32 %v2719, 4294901760
    %3001 = vmatmul.mubr.f32.gmra.mrb[0].mxu0 %v3000
    %v3002 = vpop.f32.mrb[0].mxu0
    %v3003 = vadd.f32 %v2850, %v3002
    %v3004 = vpop.f32.mrb[0].mxu0
    %v3005 = vadd.f32 %v2852, %v3004
    %3006 = vmatprep.mubr.f32.mxu0 0.0
    %v3007 = vand.u32 %v2722, 4294901760
    %3008 = vmatmul.mubr.f32.gmra.mrb[0].mxu0 %v3007
    %v3009 = vpop.f32.mrb[0].mxu0
    %v3010 = vadd.f32 %v2861, %v3009
    %v3011 = vpop.f32.mrb[0].mxu0
    %v3012 = vadd.f32 %v2863, %v3011
    %3013 = vmatprep.mubr.f32.mxu0 0.0
    %v3014 = vand.u32 %v2725, 4294901760
    %3015 = vmatmul.mubr.f32.gmra.mrb[0].mxu0 %v3014
    %v3016 = vpop.f32.mrb[0].mxu0
    %v3017 = vadd.f32 %v2872, %v3016
    %v3018 = vpop.f32.mrb[0].mxu0
    %v3019 = vadd.f32 %v2874, %v3018
    %3020 = vmatprep.mubr.f32.mxu0 0.0
    %v3021 = vand.u32 %v2728, 4294901760
    %3022 = vmatmul.mubr.f32.gmra.mrb[0].mxu0 %v3021
    %v3023 = vpop.f32.mrb[0].mxu0
    %v3024 = vadd.f32 %v2883, %v3023
    %v3025 = vpop.f32.mrb[0].mxu0
    %v3026 = vadd.f32 %v2885, %v3025
    %3027 = vdwg.mxu0
    %v3028 = vand.u32 %v65, 4294901760
    %v3029 = vsub.f32 %v65, %v3028
    %3030 = vmatprep.subr.mxu0 %v3029
    %v3031 = vand.u32 %v64, 4294901760
    %v3032 = vsub.f32 %v64, %v3031
    %3033 = vmatpush1.msra.mxu0 %v3032
    %v3034 = vand.u32 %v67, 4294901760
    %v3035 = vsub.f32 %v67, %v3034
    %3036 = vmatprep.subr.mxu0 %v3035
    %v3037 = vand.u32 %v66, 4294901760
    %v3038 = vsub.f32 %v66, %v3037
    %3039 = vmatpush1.msra.mxu0 %v3038
    %3040 = vmatprep.subr.mxu0 0.0
    %3041 = vmatpush1.msra.mxu0 0.0
    %3042 = vmatprep.subr.mxu0 0.0
    %3043 = vmatpush1.msra.mxu0 0.0
    %3044 = vmatprep.subr.mxu0 0.0
    %3045 = vmatpush1.msra.mxu0 0.0
    %3046 = vmatprep.subr.mxu0 0.0
    %3047 = vmatpush1.msra.mxu0 0.0
    %3048 = vmatprep.subr.mxu0 0.0
    %3049 = vmatpush1.msra.mxu0 0.0
    %3050 = vmatprep.subr.mxu0 0.0
    %3051 = vmatpush1.msra.mxu0 0.0
    %3052 = vmatprep.subr.mxu0 0.0
    %3053 = vmatpush1.msra.mxu0 0.0
    %3054 = vmatprep.subr.mxu0 0.0
    %3055 = vmatpush1.msra.mxu0 0.0
    %3056 = vmatprep.subr.mxu0 0.0
    %3057 = vmatpush1.msra.mxu0 0.0
    %3058 = vmatprep.subr.mxu0 0.0
    %3059 = vmatpush1.msra.mxu0 0.0
    %3060 = vmatprep.subr.mxu0 0.0
    %3061 = vmatpush1.msra.mxu0 0.0
    %3062 = vmatprep.subr.mxu0 0.0
    %3063 = vmatpush1.msra.mxu0 0.0
    %3064 = vmatprep.subr.mxu0 0.0
    %3065 = vmatpush1.msra.mxu0 0.0
    %3066 = vmatprep.subr.mxu0 0.0
    %3067 = vmatpush1.msra.mxu0 0.0
    %3068 = vmatprep.subr.mxu0 0.0
    %3069 = vmatpush1.msra.mxu0 0.0
    %3070 = vmatprep.subr.mxu0 0.0
    %3071 = vmatpush1.msra.mxu0 0.0
    %3072 = vmatprep.subr.mxu0 0.0
    %3073 = vmatpush1.msra.mxu0 0.0
    %3074 = vmatprep.subr.mxu0 0.0
    %3075 = vmatpush1.msra.mxu0 0.0
    %3076 = vmatprep.subr.mxu0 0.0
    %3077 = vmatpush1.msra.mxu0 0.0
    %3078 = vmatprep.subr.mxu0 0.0
    %3079 = vmatpush1.msra.mxu0 0.0
    %3080 = vmatprep.subr.mxu0 0.0
    %3081 = vmatpush1.msra.mxu0 0.0
    %3082 = vmatprep.subr.mxu0 0.0
    %3083 = vmatpush1.msra.mxu0 0.0
    %3084 = vmatprep.subr.mxu0 0.0
    %3085 = vmatpush1.msra.mxu0 0.0
    %3086 = vmatprep.subr.mxu0 0.0
    %3087 = vmatpush1.msra.mxu0 0.0
    %3088 = vmatprep.subr.mxu0 0.0
    %3089 = vmatpush1.msra.mxu0 0.0
    %3090 = vmatprep.subr.mxu0 0.0
    %3091 = vmatpush1.msra.mxu0 0.0
    %3092 = vmatprep.subr.mxu0 0.0
    %3093 = vmatpush1.msra.mxu0 0.0
    %3094 = vmatprep.subr.mxu0 0.0
    %3095 = vmatpush1.msra.mxu0 0.0
    %3096 = vmatprep.subr.mxu0 0.0
    %3097 = vmatpush1.msra.mxu0 0.0
    %3098 = vmatprep.subr.mxu0 0.0
    %3099 = vmatpush1.msra.mxu0 0.0
    %3100 = vmatprep.mubr.f32.mxu0 0.0
    %v3101 = vand.u32 %v2707, 4294901760
    %v3102 = vsub.f32 %v2707, %v3101
    %3103 = vmatmul.mubr.f32.gmra.mrb[0].mxu0 %v3102
    %v3104 = vpop.f32.mrb[0].mxu0
    %v3105 = vadd.f32 %v2975, %v3104
    %v3106 = vpop.f32.mrb[0].mxu0
    %v3107 = vadd.f32 %v2977, %v3106
    %3108 = vmatprep.mubr.f32.mxu0 0.0
    %v3109 = vand.u32 %v2710, 4294901760
    %v3110 = vsub.f32 %v2710, %v3109
    %3111 = vmatmul.mubr.f32.gmra.mrb[0].mxu0 %v3110
    %v3112 = vpop.f32.mrb[0].mxu0
    %v3113 = vadd.f32 %v2982, %v3112
    %v3114 = vpop.f32.mrb[0].mxu0
    %v3115 = vadd.f32 %v2984, %v3114
    %3116 = vmatprep.mubr.f32.mxu0 0.0
    %v3117 = vand.u32 %v2713, 4294901760
    %v3118 = vsub.f32 %v2713, %v3117
    %3119 = vmatmul.mubr.f32.gmra.mrb[0].mxu0 %v3118
    %v3120 = vpop.f32.mrb[0].mxu0
    %v3121 = vadd.f32 %v2989, %v3120
    %v3122 = vpop.f32.mrb[0].mxu0
    %v3123 = vadd.f32 %v2991, %v3122
    %3124 = vmatprep.mubr.f32.mxu0 0.0
    %v3125 = vand.u32 %v2716, 4294901760
    %v3126 = vsub.f32 %v2716, %v3125
    %3127 = vmatmul.mubr.f32.gmra.mrb[0].mxu0 %v3126
    %v3128 = vpop.f32.mrb[0].mxu0
    %v3129 = vadd.f32 %v2996, %v3128
    %v3130 = vpop.f32.mrb[0].mxu0
    %v3131 = vadd.f32 %v2998, %v3130
    %3132 = vmatprep.mubr.f32.mxu0 0.0
    %v3133 = vand.u32 %v2719, 4294901760
    %v3134 = vsub.f32 %v2719, %v3133
    %3135 = vmatmul.mubr.f32.gmra.mrb[0].mxu0 %v3134
    %v3136 = vpop.f32.mrb[0].mxu0
    %v3137 = vadd.f32 %v3003, %v3136
    %v3138 = vpop.f32.mrb[0].mxu0
    %v3139 = vadd.f32 %v3005, %v3138
    %3140 = vmatprep.mubr.f32.mxu0 0.0
    %v3141 = vand.u32 %v2722, 4294901760
    %v3142 = vsub.f32 %v2722, %v3141
    %3143 = vmatmul.mubr.f32.gmra.mrb[0].mxu0 %v3142
    %v3144 = vpop.f32.mrb[0].mxu0
    %v3145 = vadd.f32 %v3010, %v3144
    %v3146 = vpop.f32.mrb[0].mxu0
    %v3147 = vadd.f32 %v3012, %v3146
    %3148 = vmatprep.mubr.f32.mxu0 0.0
    %v3149 = vand.u32 %v2725, 4294901760
    %v3150 = vsub.f32 %v2725, %v3149
    %3151 = vmatmul.mubr.f32.gmra.mrb[0].mxu0 %v3150
    %v3152 = vpop.f32.mrb[0].mxu0
    %v3153 = vadd.f32 %v3017, %v3152
    %v3154 = vpop.f32.mrb[0].mxu0
    %v3155 = vadd.f32 %v3019, %v3154
    %3156 = vmatprep.mubr.f32.mxu0 0.0
    %v3157 = vand.u32 %v2728, 4294901760
    %v3158 = vsub.f32 %v2728, %v3157
    %3159 = vmatmul.mubr.f32.gmra.mrb[0].mxu0 %v3158
    %v3160 = vpop.f32.mrb[0].mxu0
    %v3161 = vadd.f32 %v3024, %v3160
    %v3162 = vpop.f32.mrb[0].mxu0
    %v3163 = vadd.f32 %v3026, %v3162
    %3164 = vdwg.mxu0
    %v3165 = vand.u32 %v65, 4294901760
    %3166 = vmatprep.subr.mxu0 %v3165
    %v3167 = vand.u32 %v64, 4294901760
    %3168 = vmatpush1.msra.mxu0 %v3167
    %v3169 = vand.u32 %v67, 4294901760
    %3170 = vmatprep.subr.mxu0 %v3169
    %v3171 = vand.u32 %v66, 4294901760
    %3172 = vmatpush1.msra.mxu0 %v3171
    %3173 = vmatprep.subr.mxu0 0.0
    %3174 = vmatpush1.msra.mxu0 0.0
    %3175 = vmatprep.subr.mxu0 0.0
    %3176 = vmatpush1.msra.mxu0 0.0
    %3177 = vmatprep.subr.mxu0 0.0
    %3178 = vmatpush1.msra.mxu0 0.0
    %3179 = vmatprep.subr.mxu0 0.0
    %3180 = vmatpush1.msra.mxu0 0.0
    %3181 = vmatprep.subr.mxu0 0.0
    %3182 = vmatpush1.msra.mxu0 0.0
    %3183 = vmatprep.subr.mxu0 0.0
    %3184 = vmatpush1.msra.mxu0 0.0
    %3185 = vmatprep.subr.mxu0 0.0
    %3186 = vmatpush1.msra.mxu0 0.0
    %3187 = vmatprep.subr.mxu0 0.0
    %3188 = vmatpush1.msra.mxu0 0.0
    %3189 = vmatprep.subr.mxu0 0.0
    %3190 = vmatpush1.msra.mxu0 0.0
    %3191 = vmatprep.subr.mxu0 0.0
    %3192 = vmatpush1.msra.mxu0 0.0
    %3193 = vmatprep.subr.mxu0 0.0
    %3194 = vmatpush1.msra.mxu0 0.0
    %3195 = vmatprep.subr.mxu0 0.0
    %3196 = vmatpush1.msra.mxu0 0.0
    %3197 = vmatprep.subr.mxu0 0.0
    %3198 = vmatpush1.msra.mxu0 0.0
    %3199 = vmatprep.subr.mxu0 0.0
    %3200 = vmatpush1.msra.mxu0 0.0
    %3201 = vmatprep.subr.mxu0 0.0
    %3202 = vmatpush1.msra.mxu0 0.0
    %3203 = vmatprep.subr.mxu0 0.0
    %3204 = vmatpush1.msra.mxu0 0.0
    %3205 = vmatprep.subr.mxu0 0.0
    %3206 = vmatpush1.msra.mxu0 0.0
    %3207 = vmatprep.subr.mxu0 0.0
    %3208 = vmatpush1.msra.mxu0 0.0
    %3209 = vmatprep.subr.mxu0 0.0
    %3210 = vmatpush1.msra.mxu0 0.0
    %3211 = vmatprep.subr.mxu0 0.0
    %3212 = vmatpush1.msra.mxu0 0.0
    %3213 = vmatprep.subr.mxu0 0.0
    %3214 = vmatpush1.msra.mxu0 0.0
    %3215 = vmatprep.subr.mxu0 0.0
    %3216 = vmatpush1.msra.mxu0 0.0
    %3217 = vmatprep.subr.mxu0 0.0
    %3218 = vmatpush1.msra.mxu0 0.0
    %3219 = vmatprep.subr.mxu0 0.0
    %3220 = vmatpush1.msra.mxu0 0.0
    %3221 = vmatprep.subr.mxu0 0.0
    %3222 = vmatpush1.msra.mxu0 0.0
    %3223 = vmatprep.subr.mxu0 0.0
    %3224 = vmatpush1.msra.mxu0 0.0
    %3225 = vmatprep.subr.mxu0 0.0
    %3226 = vmatpush1.msra.mxu0 0.0
    %3227 = vmatprep.subr.mxu0 0.0
    %3228 = vmatpush1.msra.mxu0 0.0
    %3229 = vmatprep.subr.mxu0 0.0
    %3230 = vmatpush1.msra.mxu0 0.0
    %3231 = vmatprep.subr.mxu0 0.0
    %3232 = vmatpush1.msra.mxu0 0.0
    %3233 = vmatprep.mubr.f32.mxu0 0.0
    %v3234 = vand.u32 %v2707, 4294901760
    %v3235 = vsub.f32 %v2707, %v3234
    %v3236 = vand.u32 %v3235, 4294901760
    %3237 = vmatmul.mubr.f32.gmra.mrb[0].mxu0 %v3236
    %v3238 = vpop.f32.mrb[0].mxu0
    %v3239 = vadd.f32 %v3105, %v3238
    %v3240 = vpop.f32.mrb[0].mxu0
    %v3241 = vadd.f32 %v3107, %v3240
    %3242 = vmatprep.mubr.f32.mxu0 0.0
    %v3243 = vand.u32 %v2710, 4294901760
    %v3244 = vsub.f32 %v2710, %v3243
    %v3245 = vand.u32 %v3244, 4294901760
    %3246 = vmatmul.mubr.f32.gmra.mrb[0].mxu0 %v3245
    %v3247 = vpop.f32.mrb[0].mxu0
    %v3248 = vadd.f32 %v3113, %v3247
    %v3249 = vpop.f32.mrb[0].mxu0
    %v3250 = vadd.f32 %v3115, %v3249
    %3251 = vmatprep.mubr.f32.mxu0 0.0
    %v3252 = vand.u32 %v2713, 4294901760
    %v3253 = vsub.f32 %v2713, %v3252
    %v3254 = vand.u32 %v3253, 4294901760
    %3255 = vmatmul.mubr.f32.gmra.mrb[0].mxu0 %v3254
    %v3256 = vpop.f32.mrb[0].mxu0
    %v3257 = vadd.f32 %v3121, %v3256
    %v3258 = vpop.f32.mrb[0].mxu0
    %v3259 = vadd.f32 %v3123, %v3258
    %3260 = vmatprep.mubr.f32.mxu0 0.0
    %v3261 = vand.u32 %v2716, 4294901760
    %v3262 = vsub.f32 %v2716, %v3261
    %v3263 = vand.u32 %v3262, 4294901760
    %3264 = vmatmul.mubr.f32.gmra.mrb[0].mxu0 %v3263
    %v3265 = vpop.f32.mrb[0].mxu0
    %v3266 = vadd.f32 %v3129, %v3265
    %v3267 = vpop.f32.mrb[0].mxu0
    %v3268 = vadd.f32 %v3131, %v3267
    %3269 = vmatprep.mubr.f32.mxu0 0.0
    %v3270 = vand.u32 %v2719, 4294901760
    %v3271 = vsub.f32 %v2719, %v3270
    %v3272 = vand.u32 %v3271, 4294901760
    %3273 = vmatmul.mubr.f32.gmra.mrb[0].mxu0 %v3272
    %v3274 = vpop.f32.mrb[0].mxu0
    %v3275 = vadd.f32 %v3137, %v3274
    %v3276 = vpop.f32.mrb[0].mxu0
    %v3277 = vadd.f32 %v3139, %v3276
    %3278 = vmatprep.mubr.f32.mxu0 0.0
    %v3279 = vand.u32 %v2722, 4294901760
    %v3280 = vsub.f32 %v2722, %v3279
    %v3281 = vand.u32 %v3280, 4294901760
    %3282 = vmatmul.mubr.f32.gmra.mrb[0].mxu0 %v3281
    %v3283 = vpop.f32.mrb[0].mxu0
    %v3284 = vadd.f32 %v3145, %v3283
    %v3285 = vpop.f32.mrb[0].mxu0
    %v3286 = vadd.f32 %v3147, %v3285
    %3287 = vmatprep.mubr.f32.mxu0 0.0
    %v3288 = vand.u32 %v2725, 4294901760
    %v3289 = vsub.f32 %v2725, %v3288
    %v3290 = vand.u32 %v3289, 4294901760
    %3291 = vmatmul.mubr.f32.gmra.mrb[0].mxu0 %v3290
    %v3292 = vpop.f32.mrb[0].mxu0
    %v3293 = vadd.f32 %v3153, %v3292
    %v3294 = vpop.f32.mrb[0].mxu0
    %v3295 = vadd.f32 %v3155, %v3294
    %3296 = vmatprep.mubr.f32.mxu0 0.0
    %v3297 = vand.u32 %v2728, 4294901760
    %v3298 = vsub.f32 %v2728, %v3297
    %v3299 = vand.u32 %v3298, 4294901760
    %3300 = vmatmul.mubr.f32.gmra.mrb[0].mxu0 %v3299
    %v3301 = vpop.f32.mrb[0].mxu0
    %v3302 = vadd.f32 %v3161, %v3301
    %v3303 = vpop.f32.mrb[0].mxu0
    %v3304 = vadd.f32 %v3163, %v3303
    %3305 = vdwg.mxu0
    %v3306 = vand.u32 %v65, 4294901760
    %v3307 = vsub.f32 %v65, %v3306
    %v3308 = vand.u32 %v3307, 4294901760
    %3309 = vmatprep.subr.mxu0 %v3308
    %v3310 = vand.u32 %v64, 4294901760
    %v3311 = vsub.f32 %v64, %v3310
    %v3312 = vand.u32 %v3311, 4294901760
    %3313 = vmatpush1.msra.mxu0 %v3312
    %v3314 = vand.u32 %v67, 4294901760
    %v3315 = vsub.f32 %v67, %v3314
    %v3316 = vand.u32 %v3315, 4294901760
    %3317 = vmatprep.subr.mxu0 %v3316
    %v3318 = vand.u32 %v66, 4294901760
    %v3319 = vsub.f32 %v66, %v3318
    %v3320 = vand.u32 %v3319, 4294901760
    %3321 = vmatpush1.msra.mxu0 %v3320
    %3322 = vmatprep.subr.mxu0 0.0
    %3323 = vmatpush1.msra.mxu0 0.0
    %3324 = vmatprep.subr.mxu0 0.0
    %3325 = vmatpush1.msra.mxu0 0.0
    %3326 = vmatprep.subr.mxu0 0.0
    %3327 = vmatpush1.msra.mxu0 0.0
    %3328 = vmatprep.subr.mxu0 0.0
    %3329 = vmatpush1.msra.mxu0 0.0
    %3330 = vmatprep.subr.mxu0 0.0
    %3331 = vmatpush1.msra.mxu0 0.0
    %3332 = vmatprep.subr.mxu0 0.0
    %3333 = vmatpush1.msra.mxu0 0.0
    %3334 = vmatprep.subr.mxu0 0.0
    %3335 = vmatpush1.msra.mxu0 0.0
    %3336 = vmatprep.subr.mxu0 0.0
    %3337 = vmatpush1.msra.mxu0 0.0
    %3338 = vmatprep.subr.mxu0 0.0
    %3339 = vmatpush1.msra.mxu0 0.0
    %3340 = vmatprep.subr.mxu0 0.0
    %3341 = vmatpush1.msra.mxu0 0.0
    %3342 = vmatprep.subr.mxu0 0.0
    %3343 = vmatpush1.msra.mxu0 0.0
    %3344 = vmatprep.subr.mxu0 0.0
    %3345 = vmatpush1.msra.mxu0 0.0
    %3346 = vmatprep.subr.mxu0 0.0
    %3347 = vmatpush1.msra.mxu0 0.0
    %3348 = vmatprep.subr.mxu0 0.0
    %3349 = vmatpush1.msra.mxu0 0.0
    %3350 = vmatprep.subr.mxu0 0.0
    %3351 = vmatpush1.msra.mxu0 0.0
    %3352 = vmatprep.subr.mxu0 0.0
    %3353 = vmatpush1.msra.mxu0 0.0
    %3354 = vmatprep.subr.mxu0 0.0
    %3355 = vmatpush1.msra.mxu0 0.0
    %3356 = vmatprep.subr.mxu0 0.0
    %3357 = vmatpush1.msra.mxu0 0.0
    %3358 = vmatprep.subr.mxu0 0.0
    %3359 = vmatpush1.msra.mxu0 0.0
    %3360 = vmatprep.subr.mxu0 0.0
    %3361 = vmatpush1.msra.mxu0 0.0
    %3362 = vmatprep.subr.mxu0 0.0
    %3363 = vmatpush1.msra.mxu0 0.0
    %3364 = vmatprep.subr.mxu0 0.0
    %3365 = vmatpush1.msra.mxu0 0.0
    %3366 = vmatprep.subr.mxu0 0.0
    %3367 = vmatpush1.msra.mxu0 0.0
    %3368 = vmatprep.subr.mxu0 0.0
    %3369 = vmatpush1.msra.mxu0 0.0
    %3370 = vmatprep.subr.mxu0 0.0
    %3371 = vmatpush1.msra.mxu0 0.0
    %3372 = vmatprep.subr.mxu0 0.0
    %3373 = vmatpush1.msra.mxu0 0.0
    %3374 = vmatprep.subr.mxu0 0.0
    %3375 = vmatpush1.msra.mxu0 0.0
    %3376 = vmatprep.subr.mxu0 0.0
    %3377 = vmatpush1.msra.mxu0 0.0
    %3378 = vmatprep.subr.mxu0 0.0
    %3379 = vmatpush1.msra.mxu0 0.0
    %3380 = vmatprep.subr.mxu0 0.0
    %3381 = vmatpush1.msra.mxu0 0.0
    %3382 = vmatprep.mubr.f32.mxu0 0.0
    %v3383 = vand.u32 %v2707, 4294901760
    %3384 = vmatmul.mubr.f32.gmra.mrb[0].mxu0 %v3383
    %v3385 = vpop.f32.mrb[0].mxu0
    %v3386 = vadd.f32 %v3239, %v3385
    %v3387 = vpop.f32.mrb[0].mxu0
    %v3388 = vadd.f32 %v3241, %v3387
    %3389 = vmatprep.mubr.f32.mxu0 0.0
    %v3390 = vand.u32 %v2710, 4294901760
    %3391 = vmatmul.mubr.f32.gmra.mrb[0].mxu0 %v3390
    %v3392 = vpop.f32.mrb[0].mxu0
    %v3393 = vadd.f32 %v3248, %v3392
    %v3394 = vpop.f32.mrb[0].mxu0
    %v3395 = vadd.f32 %v3250, %v3394
    %3396 = vmatprep.mubr.f32.mxu0 0.0
    %v3397 = vand.u32 %v2713, 4294901760
    %3398 = vmatmul.mubr.f32.gmra.mrb[0].mxu0 %v3397
    %v3399 = vpop.f32.mrb[0].mxu0
    %v3400 = vadd.f32 %v3257, %v3399
    %v3401 = vpop.f32.mrb[0].mxu0
    %v3402 = vadd.f32 %v3259, %v3401
    %3403 = vmatprep.mubr.f32.mxu0 0.0
    %v3404 = vand.u32 %v2716, 4294901760
    %3405 = vmatmul.mubr.f32.gmra.mrb[0].mxu0 %v3404
    %v3406 = vpop.f32.mrb[0].mxu0
    %v3407 = vadd.f32 %v3266, %v3406
    %v3408 = vpop.f32.mrb[0].mxu0
    %v3409 = vadd.f32 %v3268, %v3408
    %3410 = vmatprep.mubr.f32.mxu0 0.0
    %v3411 = vand.u32 %v2719, 4294901760
    %3412 = vmatmul.mubr.f32.gmra.mrb[0].mxu0 %v3411
    %v3413 = vpop.f32.mrb[0].mxu0
    %v3414 = vadd.f32 %v3275, %v3413
    %v3415 = vpop.f32.mrb[0].mxu0
    %v3416 = vadd.f32 %v3277, %v3415
    %3417 = vmatprep.mubr.f32.mxu0 0.0
    %v3418 = vand.u32 %v2722, 4294901760
    %3419 = vmatmul.mubr.f32.gmra.mrb[0].mxu0 %v3418
    %v3420 = vpop.f32.mrb[0].mxu0
    %v3421 = vadd.f32 %v3284, %v3420
    %v3422 = vpop.f32.mrb[0].mxu0
    %v3423 = vadd.f32 %v3286, %v3422
    %3424 = vmatprep.mubr.f32.mxu0 0.0
    %v3425 = vand.u32 %v2725, 4294901760
    %3426 = vmatmul.mubr.f32.gmra.mrb[0].mxu0 %v3425
    %v3427 = vpop.f32.mrb[0].mxu0
    %v3428 = vadd.f32 %v3293, %v3427
    %v3429 = vpop.f32.mrb[0].mxu0
    %v3430 = vadd.f32 %v3295, %v3429
    %3431 = vmatprep.mubr.f32.mxu0 0.0
    %v3432 = vand.u32 %v2728, 4294901760
    %3433 = vmatmul.mubr.f32.gmra.mrb[0].mxu0 %v3432
    %v3434 = vpop.f32.mrb[0].mxu0
    %v3435 = vadd.f32 %v3302, %v3434
    %v3436 = vpop.f32.mrb[0].mxu0
    %v3437 = vadd.f32 %v3304, %v3436
    %3438 = vdwg.mxu0
    %v3439 = vand.u32 %v65, 4294901760
    %3440 = vmatprep.subr.mxu0 %v3439
    %v3441 = vand.u32 %v64, 4294901760
    %3442 = vmatpush1.msra.mxu0 %v3441
    %v3443 = vand.u32 %v67, 4294901760
    %3444 = vmatprep.subr.mxu0 %v3443
    %v3445 = vand.u32 %v66, 4294901760
    %3446 = vmatpush1.msra.mxu0 %v3445
    %3447 = vmatprep.subr.mxu0 0.0
    %3448 = vmatpush1.msra.mxu0 0.0
    %3449 = vmatprep.subr.mxu0 0.0
    %3450 = vmatpush1.msra.mxu0 0.0
    %3451 = vmatprep.subr.mxu0 0.0
    %3452 = vmatpush1.msra.mxu0 0.0
    %3453 = vmatprep.subr.mxu0 0.0
    %3454 = vmatpush1.msra.mxu0 0.0
    %3455 = vmatprep.subr.mxu0 0.0
    %3456 = vmatpush1.msra.mxu0 0.0
    %3457 = vmatprep.subr.mxu0 0.0
    %3458 = vmatpush1.msra.mxu0 0.0
    %3459 = vmatprep.subr.mxu0 0.0
    %3460 = vmatpush1.msra.mxu0 0.0
    %3461 = vmatprep.subr.mxu0 0.0
    %3462 = vmatpush1.msra.mxu0 0.0
    %3463 = vmatprep.subr.mxu0 0.0
    %3464 = vmatpush1.msra.mxu0 0.0
    %3465 = vmatprep.subr.mxu0 0.0
    %3466 = vmatpush1.msra.mxu0 0.0
    %3467 = vmatprep.subr.mxu0 0.0
    %3468 = vmatpush1.msra.mxu0 0.0
    %3469 = vmatprep.subr.mxu0 0.0
    %3470 = vmatpush1.msra.mxu0 0.0
    %3471 = vmatprep.subr.mxu0 0.0
    %3472 = vmatpush1.msra.mxu0 0.0
    %3473 = vmatprep.subr.mxu0 0.0
    %3474 = vmatpush1.msra.mxu0 0.0
    %3475 = vmatprep.subr.mxu0 0.0
    %3476 = vmatpush1.msra.mxu0 0.0
    %3477 = vmatprep.subr.mxu0 0.0
    %3478 = vmatpush1.msra.mxu0 0.0
    %3479 = vmatprep.subr.mxu0 0.0
    %3480 = vmatpush1.msra.mxu0 0.0
    %3481 = vmatprep.subr.mxu0 0.0
    %3482 = vmatpush1.msra.mxu0 0.0
    %3483 = vmatprep.subr.mxu0 0.0
    %3484 = vmatpush1.msra.mxu0 0.0
    %3485 = vmatprep.subr.mxu0 0.0
    %3486 = vmatpush1.msra.mxu0 0.0
    %3487 = vmatprep.subr.mxu0 0.0
    %3488 = vmatpush1.msra.mxu0 0.0
    %3489 = vmatprep.subr.mxu0 0.0
    %3490 = vmatpush1.msra.mxu0 0.0
    %3491 = vmatprep.subr.mxu0 0.0
    %3492 = vmatpush1.msra.mxu0 0.0
    %3493 = vmatprep.subr.mxu0 0.0
    %3494 = vmatpush1.msra.mxu0 0.0
    %3495 = vmatprep.subr.mxu0 0.0
    %3496 = vmatpush1.msra.mxu0 0.0
    %3497 = vmatprep.subr.mxu0 0.0
    %3498 = vmatpush1.msra.mxu0 0.0
    %3499 = vmatprep.subr.mxu0 0.0
    %3500 = vmatpush1.msra.mxu0 0.0
    %3501 = vmatprep.subr.mxu0 0.0
    %3502 = vmatpush1.msra.mxu0 0.0
    %3503 = vmatprep.subr.mxu0 0.0
    %3504 = vmatpush1.msra.mxu0 0.0
    %3505 = vmatprep.subr.mxu0 0.0
    %3506 = vmatpush1.msra.mxu0 0.0
    %3507 = vmatprep.mubr.f32.mxu0 0.0
    %v3508 = vand.u32 %v2707, 4294901760
    %3509 = vmatmul.mubr.f32.gmra.mrb[0].mxu0 %v3508
    %v3510 = vpop.f32.mrb[0].mxu0
    %v3511 = vadd.f32 %v3386, %v3510
    %v3512 = vpop.f32.mrb[0].mxu0
    %v3513 = vadd.f32 %v3388, %v3512
    %3514 = vmatprep.mubr.f32.mxu0 0.0
    %v3515 = vand.u32 %v2710, 4294901760
    %3516 = vmatmul.mubr.f32.gmra.mrb[0].mxu0 %v3515
    %v3517 = vpop.f32.mrb[0].mxu0
    %v3518 = vadd.f32 %v3393, %v3517
    %v3519 = vpop.f32.mrb[0].mxu0
    %v3520 = vadd.f32 %v3395, %v3519
    %3521 = vmatprep.mubr.f32.mxu0 0.0
    %v3522 = vand.u32 %v2713, 4294901760
    %3523 = vmatmul.mubr.f32.gmra.mrb[0].mxu0 %v3522
    %v3524 = vpop.f32.mrb[0].mxu0
    %v3525 = vadd.f32 %v3400, %v3524
    %v3526 = vpop.f32.mrb[0].mxu0
    %v3527 = vadd.f32 %v3402, %v3526
    %3528 = vmatprep.mubr.f32.mxu0 0.0
    %v3529 = vand.u32 %v2716, 4294901760
    %3530 = vmatmul.mubr.f32.gmra.mrb[0].mxu0 %v3529
    %v3531 = vpop.f32.mrb[0].mxu0
    %v3532 = vadd.f32 %v3407, %v3531
    %v3533 = vpop.f32.mrb[0].mxu0
    %v3534 = vadd.f32 %v3409, %v3533
    %3535 = vmatprep.mubr.f32.mxu0 0.0
    %v3536 = vand.u32 %v2719, 4294901760
    %3537 = vmatmul.mubr.f32.gmra.mrb[0].mxu0 %v3536
    %v3538 = vpop.f32.mrb[0].mxu0
    %v3539 = vadd.f32 %v3414, %v3538
    %v3540 = vpop.f32.mrb[0].mxu0
    %v3541 = vadd.f32 %v3416, %v3540
    %3542 = vmatprep.mubr.f32.mxu0 0.0
    %v3543 = vand.u32 %v2722, 4294901760
    %3544 = vmatmul.mubr.f32.gmra.mrb[0].mxu0 %v3543
    %v3545 = vpop.f32.mrb[0].mxu0
    %v3546 = vadd.f32 %v3421, %v3545
    %v3547 = vpop.f32.mrb[0].mxu0
    %v3548 = vadd.f32 %v3423, %v3547
    %3549 = vmatprep.mubr.f32.mxu0 0.0
    %v3550 = vand.u32 %v2725, 4294901760
    %3551 = vmatmul.mubr.f32.gmra.mrb[0].mxu0 %v3550
    %v3552 = vpop.f32.mrb[0].mxu0
    %v3553 = vadd.f32 %v3428, %v3552
    %v3554 = vpop.f32.mrb[0].mxu0
    %v3555 = vadd.f32 %v3430, %v3554
    %3556 = vmatprep.mubr.f32.mxu0 0.0
    %v3557 = vand.u32 %v2728, 4294901760
    %3558 = vmatmul.mubr.f32.gmra.mrb[0].mxu0 %v3557
    %v3559 = vpop.f32.mrb[0].mxu0
    %v3560 = vadd.f32 %v3435, %v3559
    %v3561 = vpop.f32.mrb[0].mxu0
    %v3562 = vadd.f32 %v3437, %v3561
    %3563 = vdwg.mxu0
    %v3564 = vmul.f32 %v2653, %v3511
    %v3565 = vmul.f32 %v2655, %v3513
    %v3566 = vmul.f32 %v2660, %v3518
    %v3567 = vmul.f32 %v2662, %v3520
    %v3568 = vmul.f32 %v2667, %v3525
    %v3569 = vmul.f32 %v2669, %v3527
    %v3570 = vmul.f32 %v2674, %v3532
    %v3571 = vmul.f32 %v2676, %v3534
    %v3572 = vmul.f32 %v2681, %v3539
    %v3573 = vmul.f32 %v2683, %v3541
    %v3574 = vmul.f32 %v2688, %v3546
    %v3575 = vmul.f32 %v2690, %v3548
    %v3576 = vmul.f32 %v2695, %v3553
    %v3577 = vmul.f32 %v2697, %v3555
    %v3578 = vmul.f32 %v2702, %v3560
    %v3579 = vmul.f32 %v2704, %v3562
    %v3580 = vmul.f32 %v87, %v3564
    %v3581 = vmul.f32 %v88, %v3565
    %v3582 = vmul.f32 %v89, %v3566
    %v3583 = vmul.f32 %v90, %v3567
    %v3584 = vmul.f32 %v91, %v3568
    %v3585 = vmul.f32 %v92, %v3569
    %v3586 = vmul.f32 %v93, %v3570
    %v3587 = vmul.f32 %v94, %v3571
    %v3588 = vmul.f32 %v95, %v3572
    %v3589 = vmul.f32 %v96, %v3573
    %v3590 = vmul.f32 %v97, %v3574
    %v3591 = vmul.f32 %v98, %v3575
    %v3592 = vmul.f32 %v99, %v3576
    %v3593 = vmul.f32 %v100, %v3577
    %v3594 = vmul.f32 %v101, %v3578
    %v3595 = vmul.f32 %v102, %v3579
    %3596 = vst [vmem:[#allocation2] sm:$0xff] %v3580
    %3597 = vst [vmem:[#allocation2 + $0x8] sm:$0xff] %v3581
    %3598 = vst [vmem:[#allocation2 + $0x10] sm:$0xff] %v3582
    %3599 = vst [vmem:[#allocation2 + $0x18] sm:$0xff] %v3583
    %3600 = vst [vmem:[#allocation2 + $0x20] sm:$0xff] %v3584
    %3601 = vst [vmem:[#allocation2 + $0x28] sm:$0xff] %v3585
    %3602 = vst [vmem:[#allocation2 + $0x30] sm:$0xff] %v3586
    %3603 = vst [vmem:[#allocation2 + $0x38] sm:$0xff] %v3587
    %3604 = vst [vmem:[#allocation2 + $0x40] sm:$0xff] %v3588
    %3605 = vst [vmem:[#allocation2 + $0x48] sm:$0xff] %v3589
    %3606 = vst [vmem:[#allocation2 + $0x50] sm:$0xff] %v3590
    %3607 = vst [vmem:[#allocation2 + $0x58] sm:$0xff] %v3591
    %3608 = vst [vmem:[#allocation2 + $0x60] sm:$0xff] %v3592
    %3609 = vst [vmem:[#allocation2 + $0x68] sm:$0xff] %v3593
    %3610 = vst [vmem:[#allocation2 + $0x70] sm:$0xff] %v3594
    %3611 = vst [vmem:[#allocation2 + $0x78] sm:$0xff] %v3595
    // Predicated region
    $region30: #{tpu_custom_call.1} parent=1 // pred_check
      _
    $region31: #{tpu_custom_call.1} parent=1 // pred_check_branch
      %3613 = sbr.rel (0) target = $region33
    $region32: #{tpu_custom_call.1} parent=1 // pred_region
      %s3615 = ssub.s32 2048, 2048
      %3616 = vsyncadd [#allocation3], %s3615
      %s3617 = sshll.u32 [#allocation2], 4
      %s3618 = int_to_ptr.vmem [resolvable:$true] %s3617
      %3623 = dma.vmem_to_hbm [thread:$0]  %s3618, 2048, %s7, [#allocation3], 256, 256, 16
    $region33: #{tpu_custom_call.1} parent=1 // pred_fallthru
      _
    // Predicated region
    $region34: #{tpu_custom_call.1} parent=1 // pred_check
      _
    $region35: #{tpu_custom_call.1} parent=1 // pred_check_branch
      %3625 = sbr.rel (0) target = $region37
    $region36: #{tpu_custom_call.1} parent=1 // pred_region
      %3626 = dma.done [#allocation3], 2048
    $region37: #{tpu_custom_call.1} parent=1 // pred_fallthru
      _
    %3627 = vsyncpa [#allocation3], 1

</llo_original>
